<compile_context>
chip_gen: v6e
topology: v6e:2x2x1
jax: 0.10.0
libtpu: 0.0.40
codegen_flags: <defaults>
</compile_context>

<pallas_src>
import math
import numpy as np
import jax
import jax.numpy as jnp
from jax import lax
from jax.experimental import pallas as pl
from jax.experimental.pallas import tpu as pltpu

# Small shapes consistent with the module's forward.
B, T, D, H = 2, 8, 16, 32          # batch, max seq len, input_dim, hidden_dim
H2, H3, H6 = 2 * H, 3 * H, 6 * H
BC = 8                             # documents per grid step (sublane-aligned)


def document_encoder_kernel(
    x_ref,      # (T, BC, 2D)  row t holds [x(t) | x(T-1-t)] along features
    lens_ref,   # (BC, 1)      int32 sequence lengths
    wih_ref,    # (2D, 6H)     block input-gate weight, cols [rf|rb|zf|zb|nf|nb]
    bias_ref,   # (1, 6H)      b_ih (+ b_hh folded into r/z columns)
    whh_ref,    # (2H, 6H)     block-diagonal hidden weight, same column order
    bhn_ref,    # (1, 2H)      [b_hn_fwd | b_hn_bwd] (must stay inside r*(...))
    wpa_ref,    # (2H, 2H)     pre-attn Linear weight, transposed (in, out)
    bpa_ref,    # (1, 2H)
    ctx_ref,    # (1, 2H)      context vector as a row
    doc_ref,    # (BC, 2H)     out: document embeddings for this chunk
    attn_ref,   # (1, T*BC, 1) out: attention weights, time-major rows t*BC + b
):
    t_len, bc, d2 = x_ref.shape
    hidden = whh_ref.shape[0] // 2
    h2 = 2 * hidden

    lens_col = lens_ref[...]                                   # (BC, 1) int32

    # One fat input-gate projection for both directions & every timestep.
    # Off the serial chain -> HIGHEST (its error would compound otherwise).
    x_flat = x_ref[...].reshape(t_len * bc, d2)
    gx_all = jnp.dot(x_flat, wih_ref[...],
                     preferred_element_type=jnp.float32,
                     precision=lax.Precision.HIGHEST) + bias_ref[...]

    # Hoist loop-invariant loads out of the unrolled recurrence.
    whh = whh_ref[...]
    bhn = bhn_ref[...]

    # Per-step validity masks: fwd half compares against t, bwd half against
    # T-1-t. Pure function of lens -> off the serial carry chain.
    col_is_bwd = lax.broadcasted_iota(jnp.int32, (1, h2), 1) >= hidden
    masks = [lens_col > jnp.where(col_is_bwd, t_len - 1 - s, s)
             for s in range(t_len)]

    # Fused, fully-unrolled bidirectional recurrence: step s handles fwd time s
    # and bwd time T-1-s with ONE block-diagonal hidden matmul and ONE set of
    # gate nonlinearities on (BC, 2H) slabs.
    h_cat = jnp.zeros((bc, h2), jnp.float32)                   # [h_f | h_b]
    outs = []
    for s in range(t_len):
        gx = gx_all[s * bc:(s + 1) * bc, :]                    # (BC, 6H) aligned
        # Serial-chain matmul: DEFAULT precision = single bf16 MXU pass.
        gh = jnp.dot(h_cat, whh, preferred_element_type=jnp.float32)
        r = jax.nn.sigmoid(gx[:, 0:h2] + gh[:, 0:h2])
        z = jax.nn.sigmoid(gx[:, h2:2 * h2] + gh[:, h2:2 * h2])
        n = jnp.tanh(gx[:, 2 * h2:3 * h2] + r * (gh[:, 2 * h2:3 * h2] + bhn))
        hn = (1.0 - z) * n + z * h_cat
        m = masks[s]
        h_cat = jnp.where(m, hn, h_cat)
        outs.append(jnp.where(m, hn, 0.0))                     # padded slots -> 0

    # Re-pair halves to actual time: fwd(tau) from step tau, bwd(tau) from step
    # T-1-tau. Time-major (T*BC, H) slabs stay in vregs (no scratch buffer).
    fwd = jnp.concatenate([o[:, 0:hidden] for o in outs], axis=0)         # (T*BC, H)
    bwd = jnp.concatenate([o[:, hidden:h2] for o in outs[::-1]], axis=0)  # (T*BC, H)

    # pre_attn = Dropout(eval: identity) -> Linear(2H,2H) -> Tanh, as two fat
    # matmuls on the split halves (avoids a lane concat of the state slabs).
    wpa = wpa_ref[...]
    pre = jnp.tanh(
        jnp.dot(fwd, wpa[0:hidden, :], preferred_element_type=jnp.float32)
        + jnp.dot(bwd, wpa[hidden:h2, :], preferred_element_type=jnp.float32)
        + bpa_ref[...])                                        # (T*BC, 2H)

    # dot_product with the context vector: VPU multiply + XLU lane reduction.
    scores = jnp.sum(pre * ctx_ref[...], axis=1, keepdims=True)  # (T*BC, 1)

    # Masked softmax over time, vectorized across the whole batch chunk.
    # NOTE: requires len >= 1 per row (same NaN behaviour as the PyTorch module);
    # wrapper pad rows get dummy length 1.
    scores3 = scores.reshape(t_len, bc, 1)
    t_iota = lax.broadcasted_iota(jnp.int32, (t_len, bc, 1), 0)
    valid = t_iota < lens_col.reshape(1, bc, 1)
    sm = jnp.where(valid, scores3, -jnp.inf)
    mx = jnp.max(sm, axis=0, keepdims=True)                    # (1, BC, 1)
    ex = jnp.exp(sm - mx)                                      # invalid -> 0
    denom = jnp.sum(ex, axis=0, keepdims=True)
    attn3 = ex * pl.reciprocal(denom, approx=True)             # (T, BC, 1)

    attn_col = attn3.reshape(t_len * bc, 1)
    attn_ref[...] = attn_col.reshape(1, t_len * bc, 1)

    # Attention pooling: doc[b] = sum_t attn[t,b] * states[t,b,:], written as
    # two full (BC, H) column slabs (no per-batch row stores).
    doc_ref[:, 0:hidden] = jnp.sum((fwd * attn_col).reshape(t_len, bc, hidden), axis=0)
    doc_ref[:, hidden:h2] = jnp.sum((bwd * attn_col).reshape(t_len, bc, hidden), axis=0)


def _interleave_gates(wf, wb, hidden):
    """Reorder two (K, 3H) [r|z|n] matrices into (K, 6H) [rf|rb|zf|zb|nf|nb]."""
    return jnp.concatenate(
        [wf[:, 0:hidden], wb[:, 0:hidden],
         wf[:, hidden:2 * hidden], wb[:, hidden:2 * hidden],
         wf[:, 2 * hidden:3 * hidden], wb[:, 2 * hidden:3 * hidden]], axis=1)


def document_encoder_forward(x, len_x, params):
    b, t_len, d = x.shape
    hidden = params['whh_f'].shape[1]
    h2, h6 = 2 * hidden, 6 * hidden
    d2 = 2 * d

    # Pad batch (sublane dim) to a multiple of the chunk size. Pad rows get
    # zero inputs and dummy length 1 (avoids the all-masked softmax NaN) and
    # are sliced off before returning.
    bp = ((b + BC - 1) // BC) * BC
    nchunks = bp // BC
    pad = bp - b
    xf = x.astype(jnp.float32)
    if pad:
        xf = jnp.concatenate([xf, jnp.zeros((pad, t_len, d), jnp.float32)], axis=0)
        lens = jnp.concatenate([len_x.astype(jnp.int32),
                                jnp.ones((pad,), jnp.int32)], axis=0)
    else:
        lens = len_x.astype(jnp.int32)
    lens_col = lens.reshape(bp, 1)

    # Time-major input with its time-reverse appended along features, so one
    # block matmul produces fwd(t) and bwd(T-1-t) gates already interleaved.
    x_tm = jnp.transpose(xf, (1, 0, 2))                        # (T, Bp, D)
    x_cat = jnp.concatenate([x_tm, x_tm[::-1]], axis=2)        # (T, Bp, 2D)

    # Pre-transpose / interleave / block-structure all weights in the wrapper
    # (one-time XLA ops) so every in-kernel matmul is a plain (M,K)@(K,N).
    zf = jnp.zeros_like(params['wih_f'].T)
    wih_cat = jnp.concatenate(
        [_interleave_gates(params['wih_f'].T, zf, hidden),
         _interleave_gates(zf, params['wih_b'].T, hidden)], axis=0)       # (2D, 6H)
    zh = jnp.zeros_like(params['whh_f'].T)
    whh_cat = jnp.concatenate(
        [_interleave_gates(params['whh_f'].T, zh, hidden),
         _interleave_gates(zh, params['whh_b'].T, hidden)], axis=0)       # (2H, 6H)

    bih_int = _interleave_gates(params['bih_f'], params['bih_b'], hidden)  # (1, 6H)
    bhh_int = _interleave_gates(params['bhh_f'], params['bhh_b'], hidden)
    # Fold r/z hidden biases out of the recurrence; keep b_hn separate.
    bias_cat = jnp.concatenate([bih_int[:, :4 * hidden] + bhh_int[:, :4 * hidden],
                                bih_int[:, 4 * hidden:]], axis=1)          # (1, 6H)
    bhn_cat = bhh_int[:, 4 * hidden:]                                      # (1, 2H)

    wpa_t = params['wpa'].T                                                # (2H, 2H)
    ctx_row = params['ctx'].T                                              # (1, 2H)

    doc_pad, attn_flat = pl.pallas_call(
        document_encoder_kernel,
        out_shape=(jax.ShapeDtypeStruct((bp, h2), jnp.float32),
                   jax.ShapeDtypeStruct((nchunks, t_len * BC, 1), jnp.float32)),
        grid=(nchunks,),
        in_specs=[
            pl.BlockSpec((t_len, BC, d2), lambda i: (0, i, 0)),   # x chunk
            pl.BlockSpec((BC, 1), lambda i: (i, 0)),              # lens chunk
            pl.BlockSpec((d2, h6), lambda i: (0, 0)),             # resident weights
            pl.BlockSpec((1, h6), lambda i: (0, 0)),
            pl.BlockSpec((h2, h6), lambda i: (0, 0)),
            pl.BlockSpec((1, h2), lambda i: (0, 0)),
            pl.BlockSpec((h2, h2), lambda i: (0, 0)),
            pl.BlockSpec((1, h2), lambda i: (0, 0)),
            pl.BlockSpec((1, h2), lambda i: (0, 0)),
        ],
        out_specs=(pl.BlockSpec((BC, h2), lambda i: (i, 0)),
                   pl.BlockSpec((1, t_len * BC, 1), lambda i: (i, 0, 0))),
        compiler_params=pltpu.CompilerParams(
            dimension_semantics=("parallel",)),      # megacore over doc chunks (v7x)
    )(x_cat, lens_col, wih_cat, bias_cat, whh_cat, bhn_cat, wpa_t,
      params['bpa'], ctx_row)

    # (chunk, t*BC + b_local, 1) -> (batch, time, 1), drop pad rows.
    attn = jnp.transpose(attn_flat.reshape(nchunks, t_len, BC), (0, 2, 1))
    attn = attn.reshape(bp, t_len)[:b, :, None]
    return doc_pad[:b], attn


def init_params(key):
    """Deterministic synthetic parameters with PyTorch-like init scales."""
    ks = jax.random.split(key, 11)
    s_gru = 1.0 / math.sqrt(H)
    s_lin = 1.0 / math.sqrt(H2)
    u = lambda k, shape, s: jax.random.uniform(k, shape, jnp.float32, -s, s)
    return {
        'wih_f': u(ks[0], (H3, D), s_gru), 'whh_f': u(ks[1], (H3, H), s_gru),
        'bih_f': u(ks[2], (1, H3), s_gru), 'bhh_f': u(ks[3], (1, H3), s_gru),
        'wih_b': u(ks[4], (H3, D), s_gru), 'whh_b': u(ks[5], (H3, H), s_gru),
        'bih_b': u(ks[6], (1, H3), s_gru), 'bhh_b': u(ks[7], (1, H3), s_gru),
        'wpa': u(ks[8], (H2, H2), s_lin), 'bpa': u(ks[9], (1, H2), s_lin),
        'ctx': jax.random.normal(ks[10], (H2, 1), jnp.float32) * s_lin,
    }


def reference_forward(x, len_x, p):
    """Pure-JAX reference mirroring the PyTorch forward (packed bi-GRU + attention)."""
    b, t_len, d = x.shape
    hidden = p['whh_f'].shape[1]
    hp = lambda a, w: jnp.einsum('...h,gh->...g', a, w, precision=lax.Precision.HIGHEST)

    def run_dir(wih, whh, bih, bhh, reverse):
        h = jnp.zeros((b, hidden), jnp.float32)
        outs = [None] * t_len
        order = range(t_len - 1, -1, -1) if reverse else range(t_len)
        for t in order:
            gx = hp(x[:, t, :], wih) + bih[0]
            gh = hp(h, whh) + bhh[0]
            r = jax.nn.sigmoid(gx[:, :hidden] + gh[:, :hidden])
            z = jax.nn.sigmoid(gx[:, hidden:2 * hidden] + gh[:, hidden:2 * hidden])
            n = jnp.tanh(gx[:, 2 * hidden:] + r * gh[:, 2 * hidden:])
            h_new = (1.0 - z) * n + z * h
            valid = (len_x > t)[:, None]
            h = jnp.where(valid, h_new, h)
            outs[t] = jnp.where(valid, h, 0.0)
        return jnp.stack(outs, axis=1)                               # (B, T, H)

    hf = run_dir(p['wih_f'], p['whh_f'], p['bih_f'], p['bhh_f'], False)
    hb = run_dir(p['wih_b'], p['whh_b'], p['bih_b'], p['bhh_b'], True)
    states = jnp.concatenate([hf, hb], axis=-1)                      # (B, T, 2H)
    pre = jnp.tanh(hp(states, p['wpa']) + p['bpa'][0])
    scores = jnp.einsum('bto,oc->btc', pre, p['ctx'],
                        precision=lax.Precision.HIGHEST)[:, :, 0]
    mask = jnp.arange(t_len)[None, :] < len_x[:, None]
    scores = jnp.where(mask, scores, -jnp.inf)
    attn = jax.nn.softmax(scores, axis=1)
    doc = jnp.sum(attn[:, :, None] * states, axis=1)
    return doc, attn[:, :, None]


if __name__ == "__main__":
    key = jax.random.PRNGKey(0)
    kx, kp = jax.random.split(key)
    x = jax.random.normal(kx, (B, T, D), jnp.float32)
    # pack_padded_sequence default (enforce_sorted=True) requires descending lengths.
    len_x = jnp.array([T, 5], dtype=jnp.int32)
    params = init_params(kp)

    doc, attn = document_encoder_forward(x, len_x, params)
    jax.block_until_ready((doc, attn))

    doc_exp, attn_exp = reference_forward(x, len_x, params)
    # Tolerance sized for single-pass bf16 MXU matmuls on the recurrent chain and
    # the approx-reciprocal softmax vs. the float32 HIGHEST pure-JAX reference.
    np.testing.assert_allclose(np.asarray(doc), np.asarray(doc_exp), rtol=5e-3, atol=5e-3)
    np.testing.assert_allclose(np.asarray(attn), np.asarray(attn_exp), rtol=5e-3, atol=5e-3)
    print("KERNEL_OK")
</pallas_src>

<mosaic_0001>
module attributes {stable_mosaic.version = 11 : i64} {
  func.func @document_encoder_kernel(%arg0: i32, %arg1: memref<8x8x32xf32, #tpu.memory_space<vmem>>, %arg2: memref<8x1xi32, #tpu.memory_space<vmem>>, %arg3: memref<32x192xf32, #tpu.memory_space<vmem>>, %arg4: memref<1x192xf32, #tpu.memory_space<vmem>>, %arg5: memref<64x192xf32, #tpu.memory_space<vmem>>, %arg6: memref<1x64xf32, #tpu.memory_space<vmem>>, %arg7: memref<64x64xf32, #tpu.memory_space<vmem>>, %arg8: memref<1x64xf32, #tpu.memory_space<vmem>>, %arg9: memref<1x64xf32, #tpu.memory_space<vmem>>, %arg10: memref<8x64xf32, #tpu.memory_space<vmem>>, %arg11: memref<1x64x1xf32, #tpu.memory_space<vmem>>) attributes {dimension_semantics = [#tpu.dimension_semantics<parallel>], iteration_bounds = array<i64: 1>, scalar_prefetch = 0 : i64, scratch_operands = 0 : i64, tpu.core_type = #tpu.core_type<tc>, window_params = [{transform_indices = @transform_0, window_bounds = array<i64: 8, 8, 32>}, {transform_indices = @transform_1, window_bounds = array<i64: 8, 1>}, {pipeline_mode = #tpu.pipeline_mode<synchronous>, transform_indices = @transform_2, window_bounds = array<i64: 32, 192>}, {pipeline_mode = #tpu.pipeline_mode<synchronous>, transform_indices = @transform_3, window_bounds = array<i64: 1, 192>}, {pipeline_mode = #tpu.pipeline_mode<synchronous>, transform_indices = @transform_4, window_bounds = array<i64: 64, 192>}, {pipeline_mode = #tpu.pipeline_mode<synchronous>, transform_indices = @transform_5, window_bounds = array<i64: 1, 64>}, {pipeline_mode = #tpu.pipeline_mode<synchronous>, transform_indices = @transform_6, window_bounds = array<i64: 64, 64>}, {pipeline_mode = #tpu.pipeline_mode<synchronous>, transform_indices = @transform_7, window_bounds = array<i64: 1, 64>}, {pipeline_mode = #tpu.pipeline_mode<synchronous>, transform_indices = @transform_8, window_bounds = array<i64: 1, 64>}, {transform_indices = @transform_9, window_bounds = array<i64: 8, 64>}, {transform_indices = @transform_10, window_bounds = array<i64: 1, 64, 1>}]} {
    %c0 = arith.constant 0 : index
    %c0_0 = arith.constant 0 : index
    %0 = vector.load %arg2[%c0, %c0_0] : memref<8x1xi32, #tpu.memory_space<vmem>>, vector<8x1xi32>
    %c0_1 = arith.constant 0 : index
    %c0_2 = arith.constant 0 : index
    %c0_3 = arith.constant 0 : index
    %1 = vector.load %arg1[%c0_1, %c0_2, %c0_3] : memref<8x8x32xf32, #tpu.memory_space<vmem>>, vector<8x8x32xf32>
    %2 = vector.shape_cast %1 : vector<8x8x32xf32> to vector<64x32xf32>
    %c0_4 = arith.constant 0 : index
    %c0_5 = arith.constant 0 : index
    %3 = vector.load %arg3[%c0_4, %c0_5] : memref<32x192xf32, #tpu.memory_space<vmem>>, vector<32x192xf32>
    %cst = arith.constant dense<0.000000e+00> : vector<64x192xf32>
    %4 = tpu.matmul %2, %3, %cst {dimension_numbers = #tpu.dot_dimension_numbers<[1], [0], [0], [1], [0, 0, 1, 1], [], []>, precision = #tpu.contract_precision<fp32>} : vector<64x32xf32>, vector<32x192xf32>, vector<64x192xf32> -> vector<64x192xf32>
    %c0_6 = arith.constant 0 : index
    %c0_7 = arith.constant 0 : index
    %5 = vector.load %arg4[%c0_6, %c0_7] : memref<1x192xf32, #tpu.memory_space<vmem>>, vector<1x192xf32>
    %6 = vector.broadcast %5 : vector<1x192xf32> to vector<64x192xf32>
    %7 = arith.addf %4, %6 : vector<64x192xf32>
    %c0_8 = arith.constant 0 : index
    %c0_9 = arith.constant 0 : index
    %8 = vector.load %arg5[%c0_8, %c0_9] : memref<64x192xf32, #tpu.memory_space<vmem>>, vector<64x192xf32>
    %c0_10 = arith.constant 0 : index
    %c0_11 = arith.constant 0 : index
    %9 = vector.load %arg6[%c0_10, %c0_11] : memref<1x64xf32, #tpu.memory_space<vmem>>, vector<1x64xf32>
    %10 = tpu.iota {dimensions = array<i32: 1>} : vector<1x64xi32>
    %c32_i32 = arith.constant 32 : i32
    %11 = vector.broadcast %c32_i32 : i32 to vector<1x64xi32>
    %12 = arith.cmpi sge, %10, %11 : vector<1x64xi32>
    %c7_i32 = arith.constant 7 : i32
    %c0_i32 = arith.constant 0 : i32
    %13 = vector.broadcast %c7_i32 : i32 to vector<1x64xi32>
    %14 = vector.broadcast %c0_i32 : i32 to vector<1x64xi32>
    %15 = arith.select %12, %13, %14 : vector<1x64xi1>, vector<1x64xi32>
    %16 = vector.broadcast %0 : vector<8x1xi32> to vector<8x64xi32>
    %17 = vector.broadcast %15 : vector<1x64xi32> to vector<8x64xi32>
    %18 = arith.cmpi sgt, %16, %17 : vector<8x64xi32>
    %c6_i32 = arith.constant 6 : i32
    %c1_i32 = arith.constant 1 : i32
    %19 = vector.broadcast %c6_i32 : i32 to vector<1x64xi32>
    %20 = vector.broadcast %c1_i32 : i32 to vector<1x64xi32>
    %21 = arith.select %12, %19, %20 : vector<1x64xi1>, vector<1x64xi32>
    %22 = vector.broadcast %0 : vector<8x1xi32> to vector<8x64xi32>
    %23 = vector.broadcast %21 : vector<1x64xi32> to vector<8x64xi32>
    %24 = arith.cmpi sgt, %22, %23 : vector<8x64xi32>
    %c5_i32 = arith.constant 5 : i32
    %c2_i32 = arith.constant 2 : i32
    %25 = vector.broadcast %c5_i32 : i32 to vector<1x64xi32>
    %26 = vector.broadcast %c2_i32 : i32 to vector<1x64xi32>
    %27 = arith.select %12, %25, %26 : vector<1x64xi1>, vector<1x64xi32>
    %28 = vector.broadcast %0 : vector<8x1xi32> to vector<8x64xi32>
    %29 = vector.broadcast %27 : vector<1x64xi32> to vector<8x64xi32>
    %30 = arith.cmpi sgt, %28, %29 : vector<8x64xi32>
    %c4_i32 = arith.constant 4 : i32
    %c3_i32 = arith.constant 3 : i32
    %31 = vector.broadcast %c4_i32 : i32 to vector<1x64xi32>
    %32 = vector.broadcast %c3_i32 : i32 to vector<1x64xi32>
    %33 = arith.select %12, %31, %32 : vector<1x64xi1>, vector<1x64xi32>
    %34 = vector.broadcast %0 : vector<8x1xi32> to vector<8x64xi32>
    %35 = vector.broadcast %33 : vector<1x64xi32> to vector<8x64xi32>
    %36 = arith.cmpi sgt, %34, %35 : vector<8x64xi32>
    %c3_i32_12 = arith.constant 3 : i32
    %c4_i32_13 = arith.constant 4 : i32
    %37 = vector.broadcast %c3_i32_12 : i32 to vector<1x64xi32>
    %38 = vector.broadcast %c4_i32_13 : i32 to vector<1x64xi32>
    %39 = arith.select %12, %37, %38 : vector<1x64xi1>, vector<1x64xi32>
    %40 = vector.broadcast %0 : vector<8x1xi32> to vector<8x64xi32>
    %41 = vector.broadcast %39 : vector<1x64xi32> to vector<8x64xi32>
    %42 = arith.cmpi sgt, %40, %41 : vector<8x64xi32>
    %c2_i32_14 = arith.constant 2 : i32
    %c5_i32_15 = arith.constant 5 : i32
    %43 = vector.broadcast %c2_i32_14 : i32 to vector<1x64xi32>
    %44 = vector.broadcast %c5_i32_15 : i32 to vector<1x64xi32>
    %45 = arith.select %12, %43, %44 : vector<1x64xi1>, vector<1x64xi32>
    %46 = vector.broadcast %0 : vector<8x1xi32> to vector<8x64xi32>
    %47 = vector.broadcast %45 : vector<1x64xi32> to vector<8x64xi32>
    %48 = arith.cmpi sgt, %46, %47 : vector<8x64xi32>
    %c1_i32_16 = arith.constant 1 : i32
    %c6_i32_17 = arith.constant 6 : i32
    %49 = vector.broadcast %c1_i32_16 : i32 to vector<1x64xi32>
    %50 = vector.broadcast %c6_i32_17 : i32 to vector<1x64xi32>
    %51 = arith.select %12, %49, %50 : vector<1x64xi1>, vector<1x64xi32>
    %52 = vector.broadcast %0 : vector<8x1xi32> to vector<8x64xi32>
    %53 = vector.broadcast %51 : vector<1x64xi32> to vector<8x64xi32>
    %54 = arith.cmpi sgt, %52, %53 : vector<8x64xi32>
    %c0_i32_18 = arith.constant 0 : i32
    %c7_i32_19 = arith.constant 7 : i32
    %55 = vector.broadcast %c0_i32_18 : i32 to vector<1x64xi32>
    %56 = vector.broadcast %c7_i32_19 : i32 to vector<1x64xi32>
    %57 = arith.select %12, %55, %56 : vector<1x64xi1>, vector<1x64xi32>
    %58 = vector.broadcast %0 : vector<8x1xi32> to vector<8x64xi32>
    %59 = vector.broadcast %57 : vector<1x64xi32> to vector<8x64xi32>
    %60 = arith.cmpi sgt, %58, %59 : vector<8x64xi32>
    %cst_20 = arith.constant 0.000000e+00 : f32
    %61 = vector.broadcast %cst_20 : f32 to vector<8x64xf32>
    %62 = vector.extract_strided_slice %7 {offsets = [0, 0], sizes = [8, 192], strides = [1, 1]} : vector<64x192xf32> to vector<8x192xf32>
    %cst_21 = arith.constant dense<0.000000e+00> : vector<8x192xf32>
    %63 = tpu.matmul %61, %8, %cst_21 {dimension_numbers = #tpu.dot_dimension_numbers<[1], [0], [0], [1], [0, 0, 1, 1], [], []>} : vector<8x64xf32>, vector<64x192xf32>, vector<8x192xf32> -> vector<8x192xf32>
    %64 = vector.extract_strided_slice %62 {offsets = [0, 0], sizes = [8, 64], strides = [1, 1]} : vector<8x192xf32> to vector<8x64xf32>
    %65 = vector.extract_strided_slice %63 {offsets = [0, 0], sizes = [8, 64], strides = [1, 1]} : vector<8x192xf32> to vector<8x64xf32>
    %66 = arith.addf %64, %65 : vector<8x64xf32>
    %67 = arith.negf %66 : vector<8x64xf32>
    %68 = math.exp %67 : vector<8x64xf32>
    %cst_22 = arith.constant 1.000000e+00 : f32
    %69 = vector.broadcast %cst_22 : f32 to vector<8x64xf32>
    %70 = arith.addf %69, %68 : vector<8x64xf32>
    %71 = arith.divf %69, %70 : vector<8x64xf32>
    %72 = vector.extract_strided_slice %62 {offsets = [0, 64], sizes = [8, 64], strides = [1, 1]} : vector<8x192xf32> to vector<8x64xf32>
    %73 = vector.extract_strided_slice %63 {offsets = [0, 64], sizes = [8, 64], strides = [1, 1]} : vector<8x192xf32> to vector<8x64xf32>
    %74 = arith.addf %72, %73 : vector<8x64xf32>
    %75 = arith.negf %74 : vector<8x64xf32>
    %76 = math.exp %75 : vector<8x64xf32>
    %cst_23 = arith.constant 1.000000e+00 : f32
    %77 = vector.broadcast %cst_23 : f32 to vector<8x64xf32>
    %78 = arith.addf %77, %76 : vector<8x64xf32>
    %79 = arith.divf %77, %78 : vector<8x64xf32>
    %80 = vector.extract_strided_slice %62 {offsets = [0, 128], sizes = [8, 64], strides = [1, 1]} : vector<8x192xf32> to vector<8x64xf32>
    %81 = vector.extract_strided_slice %63 {offsets = [0, 128], sizes = [8, 64], strides = [1, 1]} : vector<8x192xf32> to vector<8x64xf32>
    %82 = vector.broadcast %9 : vector<1x64xf32> to vector<8x64xf32>
    %83 = arith.addf %81, %82 : vector<8x64xf32>
    %84 = arith.mulf %71, %83 : vector<8x64xf32>
    %85 = arith.addf %80, %84 : vector<8x64xf32>
    %86 = math.tanh %85 : vector<8x64xf32>
    %cst_24 = arith.constant 1.000000e+00 : f32
    %87 = vector.broadcast %cst_24 : f32 to vector<8x64xf32>
    %88 = arith.subf %87, %79 : vector<8x64xf32>
    %89 = arith.mulf %88, %86 : vector<8x64xf32>
    %90 = arith.mulf %79, %61 : vector<8x64xf32>
    %91 = arith.addf %89, %90 : vector<8x64xf32>
    %92 = arith.select %18, %91, %61 : vector<8x64xi1>, vector<8x64xf32>
    %cst_25 = arith.constant 0.000000e+00 : f32
    %93 = vector.broadcast %cst_25 : f32 to vector<8x64xf32>
    %94 = arith.select %18, %91, %93 : vector<8x64xi1>, vector<8x64xf32>
    %95 = vector.extract_strided_slice %7 {offsets = [8, 0], sizes = [8, 192], strides = [1, 1]} : vector<64x192xf32> to vector<8x192xf32>
    %cst_26 = arith.constant dense<0.000000e+00> : vector<8x192xf32>
    %96 = tpu.matmul %92, %8, %cst_26 {dimension_numbers = #tpu.dot_dimension_numbers<[1], [0], [0], [1], [0, 0, 1, 1], [], []>} : vector<8x64xf32>, vector<64x192xf32>, vector<8x192xf32> -> vector<8x192xf32>
    %97 = vector.extract_strided_slice %95 {offsets = [0, 0], sizes = [8, 64], strides = [1, 1]} : vector<8x192xf32> to vector<8x64xf32>
    %98 = vector.extract_strided_slice %96 {offsets = [0, 0], sizes = [8, 64], strides = [1, 1]} : vector<8x192xf32> to vector<8x64xf32>
    %99 = arith.addf %97, %98 : vector<8x64xf32>
    %100 = arith.negf %99 : vector<8x64xf32>
    %101 = math.exp %100 : vector<8x64xf32>
    %cst_27 = arith.constant 1.000000e+00 : f32
    %102 = vector.broadcast %cst_27 : f32 to vector<8x64xf32>
    %103 = arith.addf %102, %101 : vector<8x64xf32>
    %104 = arith.divf %102, %103 : vector<8x64xf32>
    %105 = vector.extract_strided_slice %95 {offsets = [0, 64], sizes = [8, 64], strides = [1, 1]} : vector<8x192xf32> to vector<8x64xf32>
    %106 = vector.extract_strided_slice %96 {offsets = [0, 64], sizes = [8, 64], strides = [1, 1]} : vector<8x192xf32> to vector<8x64xf32>
    %107 = arith.addf %105, %106 : vector<8x64xf32>
    %108 = arith.negf %107 : vector<8x64xf32>
    %109 = math.exp %108 : vector<8x64xf32>
    %cst_28 = arith.constant 1.000000e+00 : f32
    %110 = vector.broadcast %cst_28 : f32 to vector<8x64xf32>
    %111 = arith.addf %110, %109 : vector<8x64xf32>
    %112 = arith.divf %110, %111 : vector<8x64xf32>
    %113 = vector.extract_strided_slice %95 {offsets = [0, 128], sizes = [8, 64], strides = [1, 1]} : vector<8x192xf32> to vector<8x64xf32>
    %114 = vector.extract_strided_slice %96 {offsets = [0, 128], sizes = [8, 64], strides = [1, 1]} : vector<8x192xf32> to vector<8x64xf32>
    %115 = vector.broadcast %9 : vector<1x64xf32> to vector<8x64xf32>
    %116 = arith.addf %114, %115 : vector<8x64xf32>
    %117 = arith.mulf %104, %116 : vector<8x64xf32>
    %118 = arith.addf %113, %117 : vector<8x64xf32>
    %119 = math.tanh %118 : vector<8x64xf32>
    %cst_29 = arith.constant 1.000000e+00 : f32
    %120 = vector.broadcast %cst_29 : f32 to vector<8x64xf32>
    %121 = arith.subf %120, %112 : vector<8x64xf32>
    %122 = arith.mulf %121, %119 : vector<8x64xf32>
    %123 = arith.mulf %112, %92 : vector<8x64xf32>
    %124 = arith.addf %122, %123 : vector<8x64xf32>
    %125 = arith.select %24, %124, %92 : vector<8x64xi1>, vector<8x64xf32>
    %cst_30 = arith.constant 0.000000e+00 : f32
    %126 = vector.broadcast %cst_30 : f32 to vector<8x64xf32>
    %127 = arith.select %24, %124, %126 : vector<8x64xi1>, vector<8x64xf32>
    %128 = vector.extract_strided_slice %7 {offsets = [16, 0], sizes = [8, 192], strides = [1, 1]} : vector<64x192xf32> to vector<8x192xf32>
    %cst_31 = arith.constant dense<0.000000e+00> : vector<8x192xf32>
    %129 = tpu.matmul %125, %8, %cst_31 {dimension_numbers = #tpu.dot_dimension_numbers<[1], [0], [0], [1], [0, 0, 1, 1], [], []>} : vector<8x64xf32>, vector<64x192xf32>, vector<8x192xf32> -> vector<8x192xf32>
    %130 = vector.extract_strided_slice %128 {offsets = [0, 0], sizes = [8, 64], strides = [1, 1]} : vector<8x192xf32> to vector<8x64xf32>
    %131 = vector.extract_strided_slice %129 {offsets = [0, 0], sizes = [8, 64], strides = [1, 1]} : vector<8x192xf32> to vector<8x64xf32>
    %132 = arith.addf %130, %131 : vector<8x64xf32>
    %133 = arith.negf %132 : vector<8x64xf32>
    %134 = math.exp %133 : vector<8x64xf32>
    %cst_32 = arith.constant 1.000000e+00 : f32
    %135 = vector.broadcast %cst_32 : f32 to vector<8x64xf32>
    %136 = arith.addf %135, %134 : vector<8x64xf32>
    %137 = arith.divf %135, %136 : vector<8x64xf32>
    %138 = vector.extract_strided_slice %128 {offsets = [0, 64], sizes = [8, 64], strides = [1, 1]} : vector<8x192xf32> to vector<8x64xf32>
    %139 = vector.extract_strided_slice %129 {offsets = [0, 64], sizes = [8, 64], strides = [1, 1]} : vector<8x192xf32> to vector<8x64xf32>
    %140 = arith.addf %138, %139 : vector<8x64xf32>
    %141 = arith.negf %140 : vector<8x64xf32>
    %142 = math.exp %141 : vector<8x64xf32>
    %cst_33 = arith.constant 1.000000e+00 : f32
    %143 = vector.broadcast %cst_33 : f32 to vector<8x64xf32>
    %144 = arith.addf %143, %142 : vector<8x64xf32>
    %145 = arith.divf %143, %144 : vector<8x64xf32>
    %146 = vector.extract_strided_slice %128 {offsets = [0, 128], sizes = [8, 64], strides = [1, 1]} : vector<8x192xf32> to vector<8x64xf32>
    %147 = vector.extract_strided_slice %129 {offsets = [0, 128], sizes = [8, 64], strides = [1, 1]} : vector<8x192xf32> to vector<8x64xf32>
    %148 = vector.broadcast %9 : vector<1x64xf32> to vector<8x64xf32>
    %149 = arith.addf %147, %148 : vector<8x64xf32>
    %150 = arith.mulf %137, %149 : vector<8x64xf32>
    %151 = arith.addf %146, %150 : vector<8x64xf32>
    %152 = math.tanh %151 : vector<8x64xf32>
    %cst_34 = arith.constant 1.000000e+00 : f32
    %153 = vector.broadcast %cst_34 : f32 to vector<8x64xf32>
    %154 = arith.subf %153, %145 : vector<8x64xf32>
    %155 = arith.mulf %154, %152 : vector<8x64xf32>
    %156 = arith.mulf %145, %125 : vector<8x64xf32>
    %157 = arith.addf %155, %156 : vector<8x64xf32>
    %158 = arith.select %30, %157, %125 : vector<8x64xi1>, vector<8x64xf32>
    %cst_35 = arith.constant 0.000000e+00 : f32
    %159 = vector.broadcast %cst_35 : f32 to vector<8x64xf32>
    %160 = arith.select %30, %157, %159 : vector<8x64xi1>, vector<8x64xf32>
    %161 = vector.extract_strided_slice %7 {offsets = [24, 0], sizes = [8, 192], strides = [1, 1]} : vector<64x192xf32> to vector<8x192xf32>
    %cst_36 = arith.constant dense<0.000000e+00> : vector<8x192xf32>
    %162 = tpu.matmul %158, %8, %cst_36 {dimension_numbers = #tpu.dot_dimension_numbers<[1], [0], [0], [1], [0, 0, 1, 1], [], []>} : vector<8x64xf32>, vector<64x192xf32>, vector<8x192xf32> -> vector<8x192xf32>
    %163 = vector.extract_strided_slice %161 {offsets = [0, 0], sizes = [8, 64], strides = [1, 1]} : vector<8x192xf32> to vector<8x64xf32>
    %164 = vector.extract_strided_slice %162 {offsets = [0, 0], sizes = [8, 64], strides = [1, 1]} : vector<8x192xf32> to vector<8x64xf32>
    %165 = arith.addf %163, %164 : vector<8x64xf32>
    %166 = arith.negf %165 : vector<8x64xf32>
    %167 = math.exp %166 : vector<8x64xf32>
    %cst_37 = arith.constant 1.000000e+00 : f32
    %168 = vector.broadcast %cst_37 : f32 to vector<8x64xf32>
    %169 = arith.addf %168, %167 : vector<8x64xf32>
    %170 = arith.divf %168, %169 : vector<8x64xf32>
    %171 = vector.extract_strided_slice %161 {offsets = [0, 64], sizes = [8, 64], strides = [1, 1]} : vector<8x192xf32> to vector<8x64xf32>
    %172 = vector.extract_strided_slice %162 {offsets = [0, 64], sizes = [8, 64], strides = [1, 1]} : vector<8x192xf32> to vector<8x64xf32>
    %173 = arith.addf %171, %172 : vector<8x64xf32>
    %174 = arith.negf %173 : vector<8x64xf32>
    %175 = math.exp %174 : vector<8x64xf32>
    %cst_38 = arith.constant 1.000000e+00 : f32
    %176 = vector.broadcast %cst_38 : f32 to vector<8x64xf32>
    %177 = arith.addf %176, %175 : vector<8x64xf32>
    %178 = arith.divf %176, %177 : vector<8x64xf32>
    %179 = vector.extract_strided_slice %161 {offsets = [0, 128], sizes = [8, 64], strides = [1, 1]} : vector<8x192xf32> to vector<8x64xf32>
    %180 = vector.extract_strided_slice %162 {offsets = [0, 128], sizes = [8, 64], strides = [1, 1]} : vector<8x192xf32> to vector<8x64xf32>
    %181 = vector.broadcast %9 : vector<1x64xf32> to vector<8x64xf32>
    %182 = arith.addf %180, %181 : vector<8x64xf32>
    %183 = arith.mulf %170, %182 : vector<8x64xf32>
    %184 = arith.addf %179, %183 : vector<8x64xf32>
    %185 = math.tanh %184 : vector<8x64xf32>
    %cst_39 = arith.constant 1.000000e+00 : f32
    %186 = vector.broadcast %cst_39 : f32 to vector<8x64xf32>
    %187 = arith.subf %186, %178 : vector<8x64xf32>
    %188 = arith.mulf %187, %185 : vector<8x64xf32>
    %189 = arith.mulf %178, %158 : vector<8x64xf32>
    %190 = arith.addf %188, %189 : vector<8x64xf32>
    %191 = arith.select %36, %190, %158 : vector<8x64xi1>, vector<8x64xf32>
    %cst_40 = arith.constant 0.000000e+00 : f32
    %192 = vector.broadcast %cst_40 : f32 to vector<8x64xf32>
    %193 = arith.select %36, %190, %192 : vector<8x64xi1>, vector<8x64xf32>
    %194 = vector.extract_strided_slice %7 {offsets = [32, 0], sizes = [8, 192], strides = [1, 1]} : vector<64x192xf32> to vector<8x192xf32>
    %cst_41 = arith.constant dense<0.000000e+00> : vector<8x192xf32>
    %195 = tpu.matmul %191, %8, %cst_41 {dimension_numbers = #tpu.dot_dimension_numbers<[1], [0], [0], [1], [0, 0, 1, 1], [], []>} : vector<8x64xf32>, vector<64x192xf32>, vector<8x192xf32> -> vector<8x192xf32>
    %196 = vector.extract_strided_slice %194 {offsets = [0, 0], sizes = [8, 64], strides = [1, 1]} : vector<8x192xf32> to vector<8x64xf32>
    %197 = vector.extract_strided_slice %195 {offsets = [0, 0], sizes = [8, 64], strides = [1, 1]} : vector<8x192xf32> to vector<8x64xf32>
    %198 = arith.addf %196, %197 : vector<8x64xf32>
    %199 = arith.negf %198 : vector<8x64xf32>
    %200 = math.exp %199 : vector<8x64xf32>
    %cst_42 = arith.constant 1.000000e+00 : f32
    %201 = vector.broadcast %cst_42 : f32 to vector<8x64xf32>
    %202 = arith.addf %201, %200 : vector<8x64xf32>
    %203 = arith.divf %201, %202 : vector<8x64xf32>
    %204 = vector.extract_strided_slice %194 {offsets = [0, 64], sizes = [8, 64], strides = [1, 1]} : vector<8x192xf32> to vector<8x64xf32>
    %205 = vector.extract_strided_slice %195 {offsets = [0, 64], sizes = [8, 64], strides = [1, 1]} : vector<8x192xf32> to vector<8x64xf32>
    %206 = arith.addf %204, %205 : vector<8x64xf32>
    %207 = arith.negf %206 : vector<8x64xf32>
    %208 = math.exp %207 : vector<8x64xf32>
    %cst_43 = arith.constant 1.000000e+00 : f32
    %209 = vector.broadcast %cst_43 : f32 to vector<8x64xf32>
    %210 = arith.addf %209, %208 : vector<8x64xf32>
    %211 = arith.divf %209, %210 : vector<8x64xf32>
    %212 = vector.extract_strided_slice %194 {offsets = [0, 128], sizes = [8, 64], strides = [1, 1]} : vector<8x192xf32> to vector<8x64xf32>
    %213 = vector.extract_strided_slice %195 {offsets = [0, 128], sizes = [8, 64], strides = [1, 1]} : vector<8x192xf32> to vector<8x64xf32>
    %214 = vector.broadcast %9 : vector<1x64xf32> to vector<8x64xf32>
    %215 = arith.addf %213, %214 : vector<8x64xf32>
    %216 = arith.mulf %203, %215 : vector<8x64xf32>
    %217 = arith.addf %212, %216 : vector<8x64xf32>
    %218 = math.tanh %217 : vector<8x64xf32>
    %cst_44 = arith.constant 1.000000e+00 : f32
    %219 = vector.broadcast %cst_44 : f32 to vector<8x64xf32>
    %220 = arith.subf %219, %211 : vector<8x64xf32>
    %221 = arith.mulf %220, %218 : vector<8x64xf32>
    %222 = arith.mulf %211, %191 : vector<8x64xf32>
    %223 = arith.addf %221, %222 : vector<8x64xf32>
    %224 = arith.select %42, %223, %191 : vector<8x64xi1>, vector<8x64xf32>
    %cst_45 = arith.constant 0.000000e+00 : f32
    %225 = vector.broadcast %cst_45 : f32 to vector<8x64xf32>
    %226 = arith.select %42, %223, %225 : vector<8x64xi1>, vector<8x64xf32>
    %227 = vector.extract_strided_slice %7 {offsets = [40, 0], sizes = [8, 192], strides = [1, 1]} : vector<64x192xf32> to vector<8x192xf32>
    %cst_46 = arith.constant dense<0.000000e+00> : vector<8x192xf32>
    %228 = tpu.matmul %224, %8, %cst_46 {dimension_numbers = #tpu.dot_dimension_numbers<[1], [0], [0], [1], [0, 0, 1, 1], [], []>} : vector<8x64xf32>, vector<64x192xf32>, vector<8x192xf32> -> vector<8x192xf32>
    %229 = vector.extract_strided_slice %227 {offsets = [0, 0], sizes = [8, 64], strides = [1, 1]} : vector<8x192xf32> to vector<8x64xf32>
    %230 = vector.extract_strided_slice %228 {offsets = [0, 0], sizes = [8, 64], strides = [1, 1]} : vector<8x192xf32> to vector<8x64xf32>
    %231 = arith.addf %229, %230 : vector<8x64xf32>
    %232 = arith.negf %231 : vector<8x64xf32>
    %233 = math.exp %232 : vector<8x64xf32>
    %cst_47 = arith.constant 1.000000e+00 : f32
    %234 = vector.broadcast %cst_47 : f32 to vector<8x64xf32>
    %235 = arith.addf %234, %233 : vector<8x64xf32>
    %236 = arith.divf %234, %235 : vector<8x64xf32>
    %237 = vector.extract_strided_slice %227 {offsets = [0, 64], sizes = [8, 64], strides = [1, 1]} : vector<8x192xf32> to vector<8x64xf32>
    %238 = vector.extract_strided_slice %228 {offsets = [0, 64], sizes = [8, 64], strides = [1, 1]} : vector<8x192xf32> to vector<8x64xf32>
    %239 = arith.addf %237, %238 : vector<8x64xf32>
    %240 = arith.negf %239 : vector<8x64xf32>
    %241 = math.exp %240 : vector<8x64xf32>
    %cst_48 = arith.constant 1.000000e+00 : f32
    %242 = vector.broadcast %cst_48 : f32 to vector<8x64xf32>
    %243 = arith.addf %242, %241 : vector<8x64xf32>
    %244 = arith.divf %242, %243 : vector<8x64xf32>
    %245 = vector.extract_strided_slice %227 {offsets = [0, 128], sizes = [8, 64], strides = [1, 1]} : vector<8x192xf32> to vector<8x64xf32>
    %246 = vector.extract_strided_slice %228 {offsets = [0, 128], sizes = [8, 64], strides = [1, 1]} : vector<8x192xf32> to vector<8x64xf32>
    %247 = vector.broadcast %9 : vector<1x64xf32> to vector<8x64xf32>
    %248 = arith.addf %246, %247 : vector<8x64xf32>
    %249 = arith.mulf %236, %248 : vector<8x64xf32>
    %250 = arith.addf %245, %249 : vector<8x64xf32>
    %251 = math.tanh %250 : vector<8x64xf32>
    %cst_49 = arith.constant 1.000000e+00 : f32
    %252 = vector.broadcast %cst_49 : f32 to vector<8x64xf32>
    %253 = arith.subf %252, %244 : vector<8x64xf32>
    %254 = arith.mulf %253, %251 : vector<8x64xf32>
    %255 = arith.mulf %244, %224 : vector<8x64xf32>
    %256 = arith.addf %254, %255 : vector<8x64xf32>
    %257 = arith.select %48, %256, %224 : vector<8x64xi1>, vector<8x64xf32>
    %cst_50 = arith.constant 0.000000e+00 : f32
    %258 = vector.broadcast %cst_50 : f32 to vector<8x64xf32>
    %259 = arith.select %48, %256, %258 : vector<8x64xi1>, vector<8x64xf32>
    %260 = vector.extract_strided_slice %7 {offsets = [48, 0], sizes = [8, 192], strides = [1, 1]} : vector<64x192xf32> to vector<8x192xf32>
    %cst_51 = arith.constant dense<0.000000e+00> : vector<8x192xf32>
    %261 = tpu.matmul %257, %8, %cst_51 {dimension_numbers = #tpu.dot_dimension_numbers<[1], [0], [0], [1], [0, 0, 1, 1], [], []>} : vector<8x64xf32>, vector<64x192xf32>, vector<8x192xf32> -> vector<8x192xf32>
    %262 = vector.extract_strided_slice %260 {offsets = [0, 0], sizes = [8, 64], strides = [1, 1]} : vector<8x192xf32> to vector<8x64xf32>
    %263 = vector.extract_strided_slice %261 {offsets = [0, 0], sizes = [8, 64], strides = [1, 1]} : vector<8x192xf32> to vector<8x64xf32>
    %264 = arith.addf %262, %263 : vector<8x64xf32>
    %265 = arith.negf %264 : vector<8x64xf32>
    %266 = math.exp %265 : vector<8x64xf32>
    %cst_52 = arith.constant 1.000000e+00 : f32
    %267 = vector.broadcast %cst_52 : f32 to vector<8x64xf32>
    %268 = arith.addf %267, %266 : vector<8x64xf32>
    %269 = arith.divf %267, %268 : vector<8x64xf32>
    %270 = vector.extract_strided_slice %260 {offsets = [0, 64], sizes = [8, 64], strides = [1, 1]} : vector<8x192xf32> to vector<8x64xf32>
    %271 = vector.extract_strided_slice %261 {offsets = [0, 64], sizes = [8, 64], strides = [1, 1]} : vector<8x192xf32> to vector<8x64xf32>
    %272 = arith.addf %270, %271 : vector<8x64xf32>
    %273 = arith.negf %272 : vector<8x64xf32>
    %274 = math.exp %273 : vector<8x64xf32>
    %cst_53 = arith.constant 1.000000e+00 : f32
    %275 = vector.broadcast %cst_53 : f32 to vector<8x64xf32>
    %276 = arith.addf %275, %274 : vector<8x64xf32>
    %277 = arith.divf %275, %276 : vector<8x64xf32>
    %278 = vector.extract_strided_slice %260 {offsets = [0, 128], sizes = [8, 64], strides = [1, 1]} : vector<8x192xf32> to vector<8x64xf32>
    %279 = vector.extract_strided_slice %261 {offsets = [0, 128], sizes = [8, 64], strides = [1, 1]} : vector<8x192xf32> to vector<8x64xf32>
    %280 = vector.broadcast %9 : vector<1x64xf32> to vector<8x64xf32>
    %281 = arith.addf %279, %280 : vector<8x64xf32>
    %282 = arith.mulf %269, %281 : vector<8x64xf32>
    %283 = arith.addf %278, %282 : vector<8x64xf32>
    %284 = math.tanh %283 : vector<8x64xf32>
    %cst_54 = arith.constant 1.000000e+00 : f32
    %285 = vector.broadcast %cst_54 : f32 to vector<8x64xf32>
    %286 = arith.subf %285, %277 : vector<8x64xf32>
    %287 = arith.mulf %286, %284 : vector<8x64xf32>
    %288 = arith.mulf %277, %257 : vector<8x64xf32>
    %289 = arith.addf %287, %288 : vector<8x64xf32>
    %290 = arith.select %54, %289, %257 : vector<8x64xi1>, vector<8x64xf32>
    %cst_55 = arith.constant 0.000000e+00 : f32
    %291 = vector.broadcast %cst_55 : f32 to vector<8x64xf32>
    %292 = arith.select %54, %289, %291 : vector<8x64xi1>, vector<8x64xf32>
    %293 = vector.extract_strided_slice %7 {offsets = [56, 0], sizes = [8, 192], strides = [1, 1]} : vector<64x192xf32> to vector<8x192xf32>
    %cst_56 = arith.constant dense<0.000000e+00> : vector<8x192xf32>
    %294 = tpu.matmul %290, %8, %cst_56 {dimension_numbers = #tpu.dot_dimension_numbers<[1], [0], [0], [1], [0, 0, 1, 1], [], []>} : vector<8x64xf32>, vector<64x192xf32>, vector<8x192xf32> -> vector<8x192xf32>
    %295 = vector.extract_strided_slice %293 {offsets = [0, 0], sizes = [8, 64], strides = [1, 1]} : vector<8x192xf32> to vector<8x64xf32>
    %296 = vector.extract_strided_slice %294 {offsets = [0, 0], sizes = [8, 64], strides = [1, 1]} : vector<8x192xf32> to vector<8x64xf32>
    %297 = arith.addf %295, %296 : vector<8x64xf32>
    %298 = arith.negf %297 : vector<8x64xf32>
    %299 = math.exp %298 : vector<8x64xf32>
    %cst_57 = arith.constant 1.000000e+00 : f32
    %300 = vector.broadcast %cst_57 : f32 to vector<8x64xf32>
    %301 = arith.addf %300, %299 : vector<8x64xf32>
    %302 = arith.divf %300, %301 : vector<8x64xf32>
    %303 = vector.extract_strided_slice %293 {offsets = [0, 64], sizes = [8, 64], strides = [1, 1]} : vector<8x192xf32> to vector<8x64xf32>
    %304 = vector.extract_strided_slice %294 {offsets = [0, 64], sizes = [8, 64], strides = [1, 1]} : vector<8x192xf32> to vector<8x64xf32>
    %305 = arith.addf %303, %304 : vector<8x64xf32>
    %306 = arith.negf %305 : vector<8x64xf32>
    %307 = math.exp %306 : vector<8x64xf32>
    %cst_58 = arith.constant 1.000000e+00 : f32
    %308 = vector.broadcast %cst_58 : f32 to vector<8x64xf32>
    %309 = arith.addf %308, %307 : vector<8x64xf32>
    %310 = arith.divf %308, %309 : vector<8x64xf32>
    %311 = vector.extract_strided_slice %293 {offsets = [0, 128], sizes = [8, 64], strides = [1, 1]} : vector<8x192xf32> to vector<8x64xf32>
    %312 = vector.extract_strided_slice %294 {offsets = [0, 128], sizes = [8, 64], strides = [1, 1]} : vector<8x192xf32> to vector<8x64xf32>
    %313 = vector.broadcast %9 : vector<1x64xf32> to vector<8x64xf32>
    %314 = arith.addf %312, %313 : vector<8x64xf32>
    %315 = arith.mulf %302, %314 : vector<8x64xf32>
    %316 = arith.addf %311, %315 : vector<8x64xf32>
    %317 = math.tanh %316 : vector<8x64xf32>
    %cst_59 = arith.constant 1.000000e+00 : f32
    %318 = vector.broadcast %cst_59 : f32 to vector<8x64xf32>
    %319 = arith.subf %318, %310 : vector<8x64xf32>
    %320 = arith.mulf %319, %317 : vector<8x64xf32>
    %321 = arith.mulf %310, %290 : vector<8x64xf32>
    %322 = arith.addf %320, %321 : vector<8x64xf32>
    %cst_60 = arith.constant 0.000000e+00 : f32
    %323 = vector.broadcast %cst_60 : f32 to vector<8x64xf32>
    %324 = arith.select %60, %322, %323 : vector<8x64xi1>, vector<8x64xf32>
    %325 = vector.extract_strided_slice %94 {offsets = [0, 0], sizes = [8, 32], strides = [1, 1]} : vector<8x64xf32> to vector<8x32xf32>
    %326 = vector.extract_strided_slice %127 {offsets = [0, 0], sizes = [8, 32], strides = [1, 1]} : vector<8x64xf32> to vector<8x32xf32>
    %327 = vector.extract_strided_slice %160 {offsets = [0, 0], sizes = [8, 32], strides = [1, 1]} : vector<8x64xf32> to vector<8x32xf32>
    %328 = vector.extract_strided_slice %193 {offsets = [0, 0], sizes = [8, 32], strides = [1, 1]} : vector<8x64xf32> to vector<8x32xf32>
    %329 = vector.extract_strided_slice %226 {offsets = [0, 0], sizes = [8, 32], strides = [1, 1]} : vector<8x64xf32> to vector<8x32xf32>
    %330 = vector.extract_strided_slice %259 {offsets = [0, 0], sizes = [8, 32], strides = [1, 1]} : vector<8x64xf32> to vector<8x32xf32>
    %331 = vector.extract_strided_slice %292 {offsets = [0, 0], sizes = [8, 32], strides = [1, 1]} : vector<8x64xf32> to vector<8x32xf32>
    %332 = vector.extract_strided_slice %324 {offsets = [0, 0], sizes = [8, 32], strides = [1, 1]} : vector<8x64xf32> to vector<8x32xf32>
    %333 = tpu.concatenate %325, %326, %327, %328, %329, %330, %331, %332 in 0 : vector<8x32xf32>, vector<8x32xf32>, vector<8x32xf32>, vector<8x32xf32>, vector<8x32xf32>, vector<8x32xf32>, vector<8x32xf32>, vector<8x32xf32> -> vector<64x32xf32>
    %334 = vector.extract_strided_slice %324 {offsets = [0, 32], sizes = [8, 32], strides = [1, 1]} : vector<8x64xf32> to vector<8x32xf32>
    %335 = vector.extract_strided_slice %292 {offsets = [0, 32], sizes = [8, 32], strides = [1, 1]} : vector<8x64xf32> to vector<8x32xf32>
    %336 = vector.extract_strided_slice %259 {offsets = [0, 32], sizes = [8, 32], strides = [1, 1]} : vector<8x64xf32> to vector<8x32xf32>
    %337 = vector.extract_strided_slice %226 {offsets = [0, 32], sizes = [8, 32], strides = [1, 1]} : vector<8x64xf32> to vector<8x32xf32>
    %338 = vector.extract_strided_slice %193 {offsets = [0, 32], sizes = [8, 32], strides = [1, 1]} : vector<8x64xf32> to vector<8x32xf32>
    %339 = vector.extract_strided_slice %160 {offsets = [0, 32], sizes = [8, 32], strides = [1, 1]} : vector<8x64xf32> to vector<8x32xf32>
    %340 = vector.extract_strided_slice %127 {offsets = [0, 32], sizes = [8, 32], strides = [1, 1]} : vector<8x64xf32> to vector<8x32xf32>
    %341 = vector.extract_strided_slice %94 {offsets = [0, 32], sizes = [8, 32], strides = [1, 1]} : vector<8x64xf32> to vector<8x32xf32>
    %342 = tpu.concatenate %334, %335, %336, %337, %338, %339, %340, %341 in 0 : vector<8x32xf32>, vector<8x32xf32>, vector<8x32xf32>, vector<8x32xf32>, vector<8x32xf32>, vector<8x32xf32>, vector<8x32xf32>, vector<8x32xf32> -> vector<64x32xf32>
    %c0_61 = arith.constant 0 : index
    %c0_62 = arith.constant 0 : index
    %343 = vector.load %arg7[%c0_61, %c0_62] : memref<64x64xf32, #tpu.memory_space<vmem>>, vector<64x64xf32>
    %344 = vector.extract_strided_slice %343 {offsets = [0, 0], sizes = [32, 64], strides = [1, 1]} : vector<64x64xf32> to vector<32x64xf32>
    %cst_63 = arith.constant dense<0.000000e+00> : vector<64x64xf32>
    %345 = tpu.matmul %333, %344, %cst_63 {dimension_numbers = #tpu.dot_dimension_numbers<[1], [0], [0], [1], [0, 0, 1, 1], [], []>} : vector<64x32xf32>, vector<32x64xf32>, vector<64x64xf32> -> vector<64x64xf32>
    %346 = vector.extract_strided_slice %343 {offsets = [32, 0], sizes = [32, 64], strides = [1, 1]} : vector<64x64xf32> to vector<32x64xf32>
    %cst_64 = arith.constant dense<0.000000e+00> : vector<64x64xf32>
    %347 = tpu.matmul %342, %346, %cst_64 {dimension_numbers = #tpu.dot_dimension_numbers<[1], [0], [0], [1], [0, 0, 1, 1], [], []>} : vector<64x32xf32>, vector<32x64xf32>, vector<64x64xf32> -> vector<64x64xf32>
    %348 = arith.addf %345, %347 : vector<64x64xf32>
    %c0_65 = arith.constant 0 : index
    %c0_66 = arith.constant 0 : index
    %349 = vector.load %arg8[%c0_65, %c0_66] : memref<1x64xf32, #tpu.memory_space<vmem>>, vector<1x64xf32>
    %350 = vector.broadcast %349 : vector<1x64xf32> to vector<64x64xf32>
    %351 = arith.addf %348, %350 : vector<64x64xf32>
    %352 = math.tanh %351 : vector<64x64xf32>
    %c0_67 = arith.constant 0 : index
    %c0_68 = arith.constant 0 : index
    %353 = vector.load %arg9[%c0_67, %c0_68] : memref<1x64xf32, #tpu.memory_space<vmem>>, vector<1x64xf32>
    %354 = vector.broadcast %353 : vector<1x64xf32> to vector<64x64xf32>
    %355 = arith.mulf %352, %354 : vector<64x64xf32>
    %cst_69 = arith.constant dense<0.000000e+00> : vector<64xf32>
    %356 = vector.multi_reduction <add>, %355, %cst_69 [1] : vector<64x64xf32> to vector<64xf32>
    %357 = vector.shape_cast %356 : vector<64xf32> to vector<64x1xf32>
    %358 = vector.shape_cast %357 : vector<64x1xf32> to vector<8x8x1xf32>
    %359 = tpu.iota {dimensions = array<i32: 0>} : vector<8x8x1xi32>
    %360 = vector.shape_cast %0 : vector<8x1xi32> to vector<1x8x1xi32>
    %361 = vector.broadcast %360 : vector<1x8x1xi32> to vector<8x8x1xi32>
    %362 = arith.cmpi slt, %359, %361 : vector<8x8x1xi32>
    %cst_70 = arith.constant 0xFF800000 : f32
    %363 = vector.broadcast %cst_70 : f32 to vector<8x8x1xf32>
    %364 = arith.select %362, %358, %363 : vector<8x8x1xi1>, vector<8x8x1xf32>
    %cst_71 = arith.constant dense<0xFF800000> : vector<8x1xf32>
    %365 = vector.multi_reduction <maximumf>, %364, %cst_71 [0] : vector<8x8x1xf32> to vector<8x1xf32>
    %366 = vector.shape_cast %365 : vector<8x1xf32> to vector<1x8x1xf32>
    %367 = vector.broadcast %366 : vector<1x8x1xf32> to vector<8x8x1xf32>
    %368 = arith.subf %364, %367 : vector<8x8x1xf32>
    %369 = math.exp %368 : vector<8x8x1xf32>
    %cst_72 = arith.constant dense<0.000000e+00> : vector<8x1xf32>
    %370 = vector.multi_reduction <add>, %369, %cst_72 [0] : vector<8x8x1xf32> to vector<8x1xf32>
    %371 = vector.shape_cast %370 : vector<8x1xf32> to vector<1x8x1xf32>
    %372 = tpu.reciprocal %371 {approx = true} : vector<1x8x1xf32> -> vector<1x8x1xf32>
    %373 = vector.broadcast %372 : vector<1x8x1xf32> to vector<8x8x1xf32>
    %374 = arith.mulf %369, %373 : vector<8x8x1xf32>
    %375 = vector.shape_cast %374 : vector<8x8x1xf32> to vector<64x1xf32>
    %376 = vector.shape_cast %375 : vector<64x1xf32> to vector<1x64x1xf32>
    %c0_73 = arith.constant 0 : index
    %c0_74 = arith.constant 0 : index
    %c0_75 = arith.constant 0 : index
    %377 = vector.load %arg11[%c0_73, %c0_74, %c0_75] : memref<1x64x1xf32, #tpu.memory_space<vmem>>, vector<1x64x1xf32>
    tpu.vector_store %arg11[%c0_73, %c0_74, %c0_75], %376 {strides = array<i32>} : memref<1x64x1xf32, #tpu.memory_space<vmem>>, vector<1x64x1xf32>,
    %378 = vector.broadcast %375 : vector<64x1xf32> to vector<64x32xf32>
    %379 = arith.mulf %333, %378 : vector<64x32xf32>
    %380 = vector.shape_cast %379 : vector<64x32xf32> to vector<8x8x32xf32>
    %cst_76 = arith.constant dense<0.000000e+00> : vector<8x32xf32>
    %381 = vector.multi_reduction <add>, %380, %cst_76 [0] : vector<8x8x32xf32> to vector<8x32xf32>
    %c0_77 = arith.constant 0 : index
    %c0_78 = arith.constant 0 : index
    %382 = vector.load %arg10[%c0_77, %c0_78] : memref<8x64xf32, #tpu.memory_space<vmem>>, vector<8x32xf32>
    tpu.vector_store %arg10[%c0_77, %c0_78], %381 {strides = array<i32>} : memref<8x64xf32, #tpu.memory_space<vmem>>, vector<8x32xf32>,
    %383 = vector.broadcast %375 : vector<64x1xf32> to vector<64x32xf32>
    %384 = arith.mulf %342, %383 : vector<64x32xf32>
    %385 = vector.shape_cast %384 : vector<64x32xf32> to vector<8x8x32xf32>
    %cst_79 = arith.constant dense<0.000000e+00> : vector<8x32xf32>
    %386 = vector.multi_reduction <add>, %385, %cst_79 [0] : vector<8x8x32xf32> to vector<8x32xf32>
    %c0_80 = arith.constant 0 : index
    %c32 = arith.constant 32 : index
    %387 = vector.load %arg10[%c0_80, %c32] : memref<8x64xf32, #tpu.memory_space<vmem>>, vector<8x32xf32>
    tpu.vector_store %arg10[%c0_80, %c32], %386 {strides = array<i32>} : memref<8x64xf32, #tpu.memory_space<vmem>>, vector<8x32xf32>,
    return
  }
  func.func @transform_0(%arg0: i32) -> (i32, i32, i32) {
    %c0_i32 = arith.constant 0 : i32
    %c0_i32_0 = arith.constant 0 : i32
    %c0_i32_1 = arith.constant 0 : i32
    return %c0_i32, %arg0, %c0_i32_0 : i32, i32, i32
  }
  func.func @transform_1(%arg0: i32) -> (i32, i32) {
    %c0_i32 = arith.constant 0 : i32
    %c0_i32_0 = arith.constant 0 : i32
    return %arg0, %c0_i32 : i32, i32
  }
  func.func @transform_2(%arg0: i32) -> (i32, i32) {
    %c0_i32 = arith.constant 0 : i32
    %c0_i32_0 = arith.constant 0 : i32
    %c0_i32_1 = arith.constant 0 : i32
    return %c0_i32, %c0_i32_0 : i32, i32
  }
  func.func @transform_3(%arg0: i32) -> (i32, i32) {
    %c0_i32 = arith.constant 0 : i32
    %c0_i32_0 = arith.constant 0 : i32
    %c0_i32_1 = arith.constant 0 : i32
    return %c0_i32, %c0_i32_0 : i32, i32
  }
  func.func @transform_4(%arg0: i32) -> (i32, i32) {
    %c0_i32 = arith.constant 0 : i32
    %c0_i32_0 = arith.constant 0 : i32
    %c0_i32_1 = arith.constant 0 : i32
    return %c0_i32, %c0_i32_0 : i32, i32
  }
  func.func @transform_5(%arg0: i32) -> (i32, i32) {
    %c0_i32 = arith.constant 0 : i32
    %c0_i32_0 = arith.constant 0 : i32
    %c0_i32_1 = arith.constant 0 : i32
    return %c0_i32, %c0_i32_0 : i32, i32
  }
  func.func @transform_6(%arg0: i32) -> (i32, i32) {
    %c0_i32 = arith.constant 0 : i32
    %c0_i32_0 = arith.constant 0 : i32
    %c0_i32_1 = arith.constant 0 : i32
    return %c0_i32, %c0_i32_0 : i32, i32
  }
  func.func @transform_7(%arg0: i32) -> (i32, i32) {
    %c0_i32 = arith.constant 0 : i32
    %c0_i32_0 = arith.constant 0 : i32
    %c0_i32_1 = arith.constant 0 : i32
    return %c0_i32, %c0_i32_0 : i32, i32
  }
  func.func @transform_8(%arg0: i32) -> (i32, i32) {
    %c0_i32 = arith.constant 0 : i32
    %c0_i32_0 = arith.constant 0 : i32
    %c0_i32_1 = arith.constant 0 : i32
    return %c0_i32, %c0_i32_0 : i32, i32
  }
  func.func @transform_9(%arg0: i32) -> (i32, i32) {
    %c0_i32 = arith.constant 0 : i32
    %c0_i32_0 = arith.constant 0 : i32
    return %arg0, %c0_i32 : i32, i32
  }
  func.func @transform_10(%arg0: i32) -> (i32, i32, i32) {
    %c0_i32 = arith.constant 0 : i32
    %c0_i32_0 = arith.constant 0 : i32
    %c0_i32_1 = arith.constant 0 : i32
    return %arg0, %c0_i32, %c0_i32_0 : i32, i32, i32
  }
}

</mosaic_0001>

<llo_original>
// kernel: tpu_custom_call.1
$region0: #{tpu_custom_call.1}
  #allocation0 [shape = 'u32[]', space=smem, size = 0x4, offset = 0x4, fixed_abs, tag = 'smem constant byte address 0x4 - core index']
  #allocation1 [shape = 'u32[144,128]{1,0:T(1,128)}', space=vmem, size = 0x12000, scoped, tag = 'internal scratch']
  %s0 = inlined_call_operand.hbm [shape: f32[8,8,32], index: 0, kind: input, shape index: {}]
  %s1 = inlined_call_operand.vmem [shape: s32[8,1], index: 1, kind: input, shape index: {}]
  %s2 = inlined_call_operand.hbm [shape: f32[32,192], index: 2, kind: input, shape index: {}]
  %s3 = inlined_call_operand.vmem [shape: f32[1,192], index: 3, kind: input, shape index: {}]
  %s4 = inlined_call_operand.hbm [shape: f32[64,192], index: 4, kind: input, shape index: {}]
  %s5 = inlined_call_operand.vmem [shape: f32[1,64], index: 5, kind: input, shape index: {}]
  %s6 = inlined_call_operand.hbm [shape: f32[64,64], index: 6, kind: input, shape index: {}]
  %s7 = inlined_call_operand.vmem [shape: f32[1,64], index: 7, kind: input, shape index: {}]
  %s8 = inlined_call_operand.vmem [shape: f32[1,64], index: 8, kind: input, shape index: {}]
  %s9 = inlined_call_operand.hbm [shape: f32[8,64], index: 9, kind: output, shape index: {0}]
  %s10 = inlined_call_operand.vmem [shape: f32[1,64,1], index: 10, kind: output, shape index: {1}]
  %11 = xla_tuple %s9, %s10
  %s12 = sld [smem:[#allocation0]]
  $region70: #{tpu_custom_call.1} parent=0
    _
  %s14 = ssub.s32 1, %s12
  %s15 = scalar_select 0, %s14, %s12
  $region1: #{tpu_custom_call.1} parent=0
    #allocation2 [shape = 'u8[32768]{0}', space=vmem, size = 0x8000, scoped, tag = 'input window, operand 0, single buffered']
    #allocation3 [shape = 's32[1]{0}', space=sflag, size = 0x4, scoped, tag = 'scoped memory for tpu_custom_call.1']
    #allocation4 [shape = 's32[1]{0}', space=sflag, size = 0x4, scoped, tag = 'scoped memory for tpu_custom_call.1']
    #allocation5 [shape = 'u8[32768]{0}', space=vmem, size = 0x8000, scoped, tag = 'input window, operand 2, single buffered']
    #allocation6 [shape = 's32[1]{0}', space=sflag, size = 0x4, scoped, tag = 'scoped memory for tpu_custom_call.1']
    #allocation7 [shape = 'u8[65536]{0}', space=vmem, size = 0x10000, scoped, tag = 'input window, operand 4, single buffered']
    #allocation8 [shape = 'u8[32768]{0}', space=vmem, size = 0x8000, scoped, tag = 'input window, operand 6, single buffered']
    #allocation9 [shape = 's32[1]{0}', space=sflag, size = 0x4, scoped, tag = 'scoped memory for tpu_custom_call.1']
    #allocation10 [shape = 'u8[4096]{0}', space=vmem, size = 0x1000, scoped, tag = 'output window, operand 0, single buffered']
    %16 = vsyncpa [#allocation3], 0
    %17 = vsyncpa [#allocation6], 0
    %18 = vsyncpa [#allocation9], 0
    %19 = vsyncpa [#allocation4], 0
    // Predicated region
    $region2: #{tpu_custom_call.1} parent=1 // pred_check
      _
    $region3: #{tpu_custom_call.1} parent=1 // pred_check_branch
      %21 = sbr.rel (0) target = $region5
    $region4: #{tpu_custom_call.1} parent=1 // pred_region
      %s23 = ssub.s32 1024, 1024
      %24 = vsyncadd [#allocation3], %s23
      %s25 = sshll.u32 [#allocation2], 4
      %s26 = int_to_ptr.vmem [resolvable:$true] %s25
      %31 = dma.hbm_to_vmem [thread:$0]  %s0, 1024, %s26, [#allocation3], 128, 128, 8
    $region5: #{tpu_custom_call.1} parent=1 // pred_fallthru
      _
    // Predicated region
    $region6: #{tpu_custom_call.1} parent=1 // pred_check
      _
    $region7: #{tpu_custom_call.1} parent=1 // pred_check_branch
      %33 = sbr.rel (0) target = $region9
    $region8: #{tpu_custom_call.1} parent=1 // pred_region
      _
    $region9: #{tpu_custom_call.1} parent=1 // pred_fallthru
      _
    // Predicated region
    $region10: #{tpu_custom_call.1} parent=1 // pred_check
      _
    $region11: #{tpu_custom_call.1} parent=1 // pred_check_branch
      %35 = sbr.rel (0) target = $region13
    $region12: #{tpu_custom_call.1} parent=1 // pred_region
      %s37 = ssub.s32 1024, 1024
      %38 = vsyncadd [#allocation6], %s37
      %s39 = sshll.u32 [#allocation5], 4
      %s40 = int_to_ptr.vmem [resolvable:$true] %s39
      %45 = dma.hbm_to_vmem [thread:$0]  %s2, 1024, %s40, [#allocation6], 256, 256, 16
    $region13: #{tpu_custom_call.1} parent=1 // pred_fallthru
      _
    // Predicated region
    $region14: #{tpu_custom_call.1} parent=1 // pred_check
      _
    $region15: #{tpu_custom_call.1} parent=1 // pred_check_branch
      %47 = sbr.rel (0) target = $region17
    $region16: #{tpu_custom_call.1} parent=1 // pred_region
      _
    $region17: #{tpu_custom_call.1} parent=1 // pred_fallthru
      _
    // Predicated region
    $region18: #{tpu_custom_call.1} parent=1 // pred_check
      _
    $region19: #{tpu_custom_call.1} parent=1 // pred_check_branch
      %49 = sbr.rel (0) target = $region21
    $region20: #{tpu_custom_call.1} parent=1 // pred_region
      %s51 = ssub.s32 2048, 2048
      %52 = vsyncadd [#allocation6], %s51
      %s53 = sshll.u32 [#allocation7], 4
      %s54 = int_to_ptr.vmem [resolvable:$true] %s53
      %59 = dma.hbm_to_vmem [thread:$0]  %s4, 2048, %s54, [#allocation6], 256, 256, 16
    $region21: #{tpu_custom_call.1} parent=1 // pred_fallthru
      _
    // Predicated region
    $region22: #{tpu_custom_call.1} parent=1 // pred_check
      _
    $region23: #{tpu_custom_call.1} parent=1 // pred_check_branch
      %61 = sbr.rel (0) target = $region25
    $region24: #{tpu_custom_call.1} parent=1 // pred_region
      _
    $region25: #{tpu_custom_call.1} parent=1 // pred_fallthru
      _
    // Predicated region
    $region26: #{tpu_custom_call.1} parent=1 // pred_check
      _
    $region27: #{tpu_custom_call.1} parent=1 // pred_check_branch
      %63 = sbr.rel (0) target = $region29
    $region28: #{tpu_custom_call.1} parent=1 // pred_region
      %s65 = ssub.s32 1024, 1024
      %66 = vsyncadd [#allocation9], %s65
      %s67 = sshll.u32 [#allocation8], 4
      %s68 = int_to_ptr.vmem [resolvable:$true] %s67
      %73 = dma.hbm_to_vmem [thread:$0]  %s6, 1024, %s68, [#allocation9], 128, 128, 8
    $region29: #{tpu_custom_call.1} parent=1 // pred_fallthru
      _
    // Predicated region
    $region30: #{tpu_custom_call.1} parent=1 // pred_check
      _
    $region31: #{tpu_custom_call.1} parent=1 // pred_check_branch
      %75 = sbr.rel (0) target = $region33
    $region32: #{tpu_custom_call.1} parent=1 // pred_region
      _
    $region33: #{tpu_custom_call.1} parent=1 // pred_fallthru
      _
    // Predicated region
    $region34: #{tpu_custom_call.1} parent=1 // pred_check
      _
    $region35: #{tpu_custom_call.1} parent=1 // pred_check_branch
      %77 = sbr.rel (0) target = $region37
    $region36: #{tpu_custom_call.1} parent=1 // pred_region
      _
    $region37: #{tpu_custom_call.1} parent=1 // pred_fallthru
      _
    // Predicated region
    $region38: #{tpu_custom_call.1} parent=1 // pred_check
      _
    $region39: #{tpu_custom_call.1} parent=1 // pred_check_branch
      %79 = sbr.rel (0) target = $region41
    $region40: #{tpu_custom_call.1} parent=1 // pred_region
      %80 = dma.done [#allocation3], 1024
    $region41: #{tpu_custom_call.1} parent=1 // pred_fallthru
      _
    // Predicated region
    $region42: #{tpu_custom_call.1} parent=1 // pred_check
      _
    $region43: #{tpu_custom_call.1} parent=1 // pred_check_branch
      %82 = sbr.rel (0) target = $region45
    $region44: #{tpu_custom_call.1} parent=1 // pred_region
      %83 = dma.done [#allocation6], 1024
    $region45: #{tpu_custom_call.1} parent=1 // pred_fallthru
      _
    // Predicated region
    $region46: #{tpu_custom_call.1} parent=1 // pred_check
      _
    $region47: #{tpu_custom_call.1} parent=1 // pred_check_branch
      %85 = sbr.rel (0) target = $region49
    $region48: #{tpu_custom_call.1} parent=1 // pred_region
      %86 = dma.done [#allocation6], 2048
    $region49: #{tpu_custom_call.1} parent=1 // pred_fallthru
      _
    // Predicated region
    $region50: #{tpu_custom_call.1} parent=1 // pred_check
      _
    $region51: #{tpu_custom_call.1} parent=1 // pred_check_branch
      %88 = sbr.rel (0) target = $region53
    $region52: #{tpu_custom_call.1} parent=1 // pred_region
      %89 = dma.done [#allocation9], 1024
    $region53: #{tpu_custom_call.1} parent=1 // pred_fallthru
      _
    %v90 = vld [vmem:[%s1] sm:$0xff]
    %v91 = vld [vmem:[#allocation2] sm:$0xff]
    %v92 = vld [vmem:[#allocation2 + $0x8] sm:$0xff]
    %v93 = vld [vmem:[#allocation2 + $0x10] sm:$0xff]
    %v94 = vld [vmem:[#allocation2 + $0x18] sm:$0xff]
    %v95 = vld [vmem:[#allocation2 + $0x20] sm:$0xff]
    %v96 = vld [vmem:[#allocation2 + $0x28] sm:$0xff]
    %v97 = vld [vmem:[#allocation2 + $0x30] sm:$0xff]
    %v98 = vld [vmem:[#allocation2 + $0x38] sm:$0xff]
    %v99 = vld [vmem:[#allocation5] sm:$0xff]
    %v100 = vld [vmem:[#allocation5 + $0x8] sm:$0xff]
    %v101 = vld [vmem:[#allocation5 + $0x10] sm:$0xff]
    %v102 = vld [vmem:[#allocation5 + $0x18] sm:$0xff]
    %v103 = vld [vmem:[#allocation5 + $0x20] sm:$0xff]
    %v104 = vld [vmem:[#allocation5 + $0x28] sm:$0xff]
    %v105 = vld [vmem:[#allocation5 + $0x30] sm:$0xff]
    %v106 = vld [vmem:[#allocation5 + $0x38] sm:$0xff]
    %v107 = vld [vmem:[%s3] sm:$0x3]
    %v109 = vlaneseq
    %v110 = vshrl.u32 %v109, 7
    %v111 = vsub.s32 0, %v110
    %v112 = vrot.slane %v107, %v111
    %v113 = vlaneseq
    %v114 = vshrl.u32 %v113, 7
    %v115 = vsub.s32 1, %v114
    %v116 = vrot.slane %v107, %v115
    %vm119 = vcmask 261120
    %v121 = vsel %vm119, %v91, 0
    %v124 = vsel %vm119, %v92, 0
    %v127 = vsel %vm119, %v93, 0
    %v130 = vsel %vm119, %v94, 0
    %v133 = vsel %vm119, %v95, 0
    %v136 = vsel %vm119, %v96, 0
    %v139 = vsel %vm119, %v97, 0
    %v142 = vsel %vm119, %v98, 0
    %144 = vmatprep.subr.mxu0 0.0
    %145 = vmatpush1.msra.mxu0 0.0
    %146 = vmatprep.subr.mxu0 0.0
    %147 = vmatpush1.msra.mxu0 0.0
    %148 = vmatprep.subr.mxu0 0.0
    %149 = vmatpush1.msra.mxu0 0.0
    %150 = vmatprep.subr.mxu0 0.0
    %151 = vmatpush1.msra.mxu0 0.0
    %152 = vmatprep.subr.mxu0 0.0
    %153 = vmatpush1.msra.mxu0 0.0
    %154 = vmatprep.subr.mxu0 0.0
    %155 = vmatpush1.msra.mxu0 0.0
    %156 = vmatprep.subr.mxu0 0.0
    %157 = vmatpush1.msra.mxu0 0.0
    %158 = vmatprep.subr.mxu0 0.0
    %159 = vmatpush1.msra.mxu0 0.0
    %160 = vmatprep.subr.mxu0 0.0
    %161 = vmatpush1.msra.mxu0 0.0
    %162 = vmatprep.subr.mxu0 0.0
    %163 = vmatpush1.msra.mxu0 0.0
    %164 = vmatprep.subr.mxu0 0.0
    %165 = vmatpush1.msra.mxu0 0.0
    %166 = vmatprep.subr.mxu0 0.0
    %167 = vmatpush1.msra.mxu0 0.0
    %v168 = vand.u32 %v106, 4294901760
    %169 = vmatprep.subr.mxu0 %v168
    %v170 = vand.u32 %v105, 4294901760
    %171 = vmatpush1.msra.mxu0 %v170
    %v172 = vand.u32 %v104, 4294901760
    %173 = vmatprep.subr.mxu0 %v172
    %v174 = vand.u32 %v103, 4294901760
    %175 = vmatpush1.msra.mxu0 %v174
    %v176 = vand.u32 %v102, 4294901760
    %177 = vmatprep.subr.mxu0 %v176
    %v178 = vand.u32 %v101, 4294901760
    %179 = vmatpush1.msra.mxu0 %v178
    %v180 = vand.u32 %v100, 4294901760
    %181 = vmatprep.subr.mxu0 %v180
    %v182 = vand.u32 %v99, 4294901760
    %183 = vmatpush1.msra.mxu0 %v182
    %184 = vmatprep.subr.mxu0 0.0
    %185 = vmatpush2.msra.mxu0 0.0
    %186 = vmatprep.subr.mxu0 0.0
    %187 = vmatpush2.msra.mxu0 0.0
    %188 = vmatprep.subr.mxu0 0.0
    %189 = vmatpush2.msra.mxu0 0.0
    %190 = vmatprep.subr.mxu0 0.0
    %191 = vmatpush2.msra.mxu0 0.0
    %192 = vmatprep.subr.mxu0 0.0
    %193 = vmatpush2.msra.mxu0 0.0
    %194 = vmatprep.subr.mxu0 0.0
    %195 = vmatpush2.msra.mxu0 0.0
    %196 = vmatprep.subr.mxu0 0.0
    %197 = vmatpush2.msra.mxu0 0.0
    %198 = vmatprep.subr.mxu0 0.0
    %199 = vmatpush2.msra.mxu0 0.0
    %200 = vmatprep.subr.mxu0 0.0
    %201 = vmatpush2.msra.mxu0 0.0
    %202 = vmatprep.subr.mxu0 0.0
    %203 = vmatpush2.msra.mxu0 0.0
    %204 = vmatprep.subr.mxu0 0.0
    %205 = vmatpush2.msra.mxu0 0.0
    %206 = vmatprep.subr.mxu0 0.0
    %207 = vmatpush2.msra.mxu0 0.0
    %208 = vmatprep.subr.mxu0 0.0
    %209 = vmatpush2.msra.mxu0 0.0
    %210 = vmatprep.subr.mxu0 0.0
    %211 = vmatpush2.msra.mxu0 0.0
    %212 = vmatprep.subr.mxu0 0.0
    %213 = vmatpush2.msra.mxu0 0.0
    %214 = vmatprep.subr.mxu0 0.0
    %215 = vmatpush2.msra.mxu0 0.0
    %216 = vmatprep.mubr.f32.mxu0 0.0
    %v217 = vand.u32 %v121, 4294901760
    %v218 = vsub.f32 %v121, %v217
    %v219 = vand.u32 %v218, 4294901760
    %v220 = vsub.f32 %v218, %v219
    %v221 = vand.u32 %v220, 4294901760
    %222 = vmatmul.mubr.f32.gmra.mxu0 %v221
    %v223 = vpop.f32.mrf.mxu0
    %v224 = vadd.f32 %v112, %v223
    %v225 = vpop.f32.mrf.mxu0
    %v226 = vadd.f32 %v116, %v225
    %227 = vmatprep.mubr.f32.mxu0 0.0
    %v228 = vand.u32 %v124, 4294901760
    %v229 = vsub.f32 %v124, %v228
    %v230 = vand.u32 %v229, 4294901760
    %v231 = vsub.f32 %v229, %v230
    %v232 = vand.u32 %v231, 4294901760
    %233 = vmatmul.mubr.f32.gmra.mxu0 %v232
    %v234 = vpop.f32.mrf.mxu0
    %v235 = vadd.f32 %v112, %v234
    %v236 = vpop.f32.mrf.mxu0
    %v237 = vadd.f32 %v116, %v236
    %238 = vmatprep.mubr.f32.mxu0 0.0
    %v239 = vand.u32 %v127, 4294901760
    %v240 = vsub.f32 %v127, %v239
    %v241 = vand.u32 %v240, 4294901760
    %v242 = vsub.f32 %v240, %v241
    %v243 = vand.u32 %v242, 4294901760
    %244 = vmatmul.mubr.f32.gmra.mxu0 %v243
    %v245 = vpop.f32.mrf.mxu0
    %v246 = vadd.f32 %v112, %v245
    %v247 = vpop.f32.mrf.mxu0
    %v248 = vadd.f32 %v116, %v247
    %249 = vmatprep.mubr.f32.mxu0 0.0
    %v250 = vand.u32 %v130, 4294901760
    %v251 = vsub.f32 %v130, %v250
    %v252 = vand.u32 %v251, 4294901760
    %v253 = vsub.f32 %v251, %v252
    %v254 = vand.u32 %v253, 4294901760
    %255 = vmatmul.mubr.f32.gmra.mxu0 %v254
    %v256 = vpop.f32.mrf.mxu0
    %v257 = vadd.f32 %v112, %v256
    %v258 = vpop.f32.mrf.mxu0
    %v259 = vadd.f32 %v116, %v258
    %260 = vmatprep.mubr.f32.mxu0 0.0
    %v261 = vand.u32 %v133, 4294901760
    %v262 = vsub.f32 %v133, %v261
    %v263 = vand.u32 %v262, 4294901760
    %v264 = vsub.f32 %v262, %v263
    %v265 = vand.u32 %v264, 4294901760
    %266 = vmatmul.mubr.f32.gmra.mxu0 %v265
    %v267 = vpop.f32.mrf.mxu0
    %v268 = vadd.f32 %v112, %v267
    %v269 = vpop.f32.mrf.mxu0
    %v270 = vadd.f32 %v116, %v269
    %271 = vmatprep.mubr.f32.mxu0 0.0
    %v272 = vand.u32 %v136, 4294901760
    %v273 = vsub.f32 %v136, %v272
    %v274 = vand.u32 %v273, 4294901760
    %v275 = vsub.f32 %v273, %v274
    %v276 = vand.u32 %v275, 4294901760
    %277 = vmatmul.mubr.f32.gmra.mxu0 %v276
    %v278 = vpop.f32.mrf.mxu0
    %v279 = vadd.f32 %v112, %v278
    %v280 = vpop.f32.mrf.mxu0
    %v281 = vadd.f32 %v116, %v280
    %282 = vmatprep.mubr.f32.mxu0 0.0
    %v283 = vand.u32 %v139, 4294901760
    %v284 = vsub.f32 %v139, %v283
    %v285 = vand.u32 %v284, 4294901760
    %v286 = vsub.f32 %v284, %v285
    %v287 = vand.u32 %v286, 4294901760
    %288 = vmatmul.mubr.f32.gmra.mxu0 %v287
    %v289 = vpop.f32.mrf.mxu0
    %v290 = vadd.f32 %v112, %v289
    %v291 = vpop.f32.mrf.mxu0
    %v292 = vadd.f32 %v116, %v291
    %293 = vmatprep.mubr.f32.mxu0 0.0
    %v294 = vand.u32 %v142, 4294901760
    %v295 = vsub.f32 %v142, %v294
    %v296 = vand.u32 %v295, 4294901760
    %v297 = vsub.f32 %v295, %v296
    %v298 = vand.u32 %v297, 4294901760
    %299 = vmatmul.mubr.f32.gmra.mxu0 %v298
    %v300 = vpop.f32.mrf.mxu0
    %v301 = vadd.f32 %v112, %v300
    %v302 = vpop.f32.mrf.mxu0
    %v303 = vadd.f32 %v116, %v302
    %304 = vdwg.mxu0
    %305 = vmatprep.subr.mxu0 0.0
    %306 = vmatpush1.msra.mxu0 0.0
    %307 = vmatprep.subr.mxu0 0.0
    %308 = vmatpush1.msra.mxu0 0.0
    %309 = vmatprep.subr.mxu0 0.0
    %310 = vmatpush1.msra.mxu0 0.0
    %311 = vmatprep.subr.mxu0 0.0
    %312 = vmatpush1.msra.mxu0 0.0
    %313 = vmatprep.subr.mxu0 0.0
    %314 = vmatpush1.msra.mxu0 0.0
    %315 = vmatprep.subr.mxu0 0.0
    %316 = vmatpush1.msra.mxu0 0.0
    %317 = vmatprep.subr.mxu0 0.0
    %318 = vmatpush1.msra.mxu0 0.0
    %319 = vmatprep.subr.mxu0 0.0
    %320 = vmatpush1.msra.mxu0 0.0
    %321 = vmatprep.subr.mxu0 0.0
    %322 = vmatpush1.msra.mxu0 0.0
    %323 = vmatprep.subr.mxu0 0.0
    %324 = vmatpush1.msra.mxu0 0.0
    %325 = vmatprep.subr.mxu0 0.0
    %326 = vmatpush1.msra.mxu0 0.0
    %327 = vmatprep.subr.mxu0 0.0
    %328 = vmatpush1.msra.mxu0 0.0
    %v329 = vand.u32 %v106, 4294901760
    %v330 = vsub.f32 %v106, %v329
    %v331 = vand.u32 %v330, 4294901760
    %v332 = vsub.f32 %v330, %v331
    %v333 = vand.u32 %v332, 4294901760
    %334 = vmatprep.subr.mxu0 %v333
    %v335 = vand.u32 %v105, 4294901760
    %v336 = vsub.f32 %v105, %v335
    %v337 = vand.u32 %v336, 4294901760
    %v338 = vsub.f32 %v336, %v337
    %v339 = vand.u32 %v338, 4294901760
    %340 = vmatpush1.msra.mxu0 %v339
    %v341 = vand.u32 %v104, 4294901760
    %v342 = vsub.f32 %v104, %v341
    %v343 = vand.u32 %v342, 4294901760
    %v344 = vsub.f32 %v342, %v343
    %v345 = vand.u32 %v344, 4294901760
    %346 = vmatprep.subr.mxu0 %v345
    %v347 = vand.u32 %v103, 4294901760
    %v348 = vsub.f32 %v103, %v347
    %v349 = vand.u32 %v348, 4294901760
    %v350 = vsub.f32 %v348, %v349
    %v351 = vand.u32 %v350, 4294901760
    %352 = vmatpush1.msra.mxu0 %v351
    %v353 = vand.u32 %v102, 4294901760
    %v354 = vsub.f32 %v102, %v353
    %v355 = vand.u32 %v354, 4294901760
    %v356 = vsub.f32 %v354, %v355
    %v357 = vand.u32 %v356, 4294901760
    %358 = vmatprep.subr.mxu0 %v357
    %v359 = vand.u32 %v101, 4294901760
    %v360 = vsub.f32 %v101, %v359
    %v361 = vand.u32 %v360, 4294901760
    %v362 = vsub.f32 %v360, %v361
    %v363 = vand.u32 %v362, 4294901760
    %364 = vmatpush1.msra.mxu0 %v363
    %v365 = vand.u32 %v100, 4294901760
    %v366 = vsub.f32 %v100, %v365
    %v367 = vand.u32 %v366, 4294901760
    %v368 = vsub.f32 %v366, %v367
    %v369 = vand.u32 %v368, 4294901760
    %370 = vmatprep.subr.mxu0 %v369
    %v371 = vand.u32 %v99, 4294901760
    %v372 = vsub.f32 %v99, %v371
    %v373 = vand.u32 %v372, 4294901760
    %v374 = vsub.f32 %v372, %v373
    %v375 = vand.u32 %v374, 4294901760
    %376 = vmatpush1.msra.mxu0 %v375
    %377 = vmatprep.subr.mxu0 0.0
    %378 = vmatpush2.msra.mxu0 0.0
    %379 = vmatprep.subr.mxu0 0.0
    %380 = vmatpush2.msra.mxu0 0.0
    %381 = vmatprep.subr.mxu0 0.0
    %382 = vmatpush2.msra.mxu0 0.0
    %383 = vmatprep.subr.mxu0 0.0
    %384 = vmatpush2.msra.mxu0 0.0
    %385 = vmatprep.subr.mxu0 0.0
    %386 = vmatpush2.msra.mxu0 0.0
    %387 = vmatprep.subr.mxu0 0.0
    %388 = vmatpush2.msra.mxu0 0.0
    %389 = vmatprep.subr.mxu0 0.0
    %390 = vmatpush2.msra.mxu0 0.0
    %391 = vmatprep.subr.mxu0 0.0
    %392 = vmatpush2.msra.mxu0 0.0
    %393 = vmatprep.subr.mxu0 0.0
    %394 = vmatpush2.msra.mxu0 0.0
    %395 = vmatprep.subr.mxu0 0.0
    %396 = vmatpush2.msra.mxu0 0.0
    %397 = vmatprep.subr.mxu0 0.0
    %398 = vmatpush2.msra.mxu0 0.0
    %399 = vmatprep.subr.mxu0 0.0
    %400 = vmatpush2.msra.mxu0 0.0
    %401 = vmatprep.subr.mxu0 0.0
    %402 = vmatpush2.msra.mxu0 0.0
    %403 = vmatprep.subr.mxu0 0.0
    %404 = vmatpush2.msra.mxu0 0.0
    %405 = vmatprep.subr.mxu0 0.0
    %406 = vmatpush2.msra.mxu0 0.0
    %407 = vmatprep.subr.mxu0 0.0
    %408 = vmatpush2.msra.mxu0 0.0
    %409 = vmatprep.mubr.f32.mxu0 0.0
    %v410 = vand.u32 %v121, 4294901760
    %411 = vmatmul.mubr.f32.gmra.mxu0 %v410
    %v412 = vpop.f32.mrf.mxu0
    %v413 = vadd.f32 %v224, %v412
    %v414 = vpop.f32.mrf.mxu0
    %v415 = vadd.f32 %v226, %v414
    %416 = vmatprep.mubr.f32.mxu0 0.0
    %v417 = vand.u32 %v124, 4294901760
    %418 = vmatmul.mubr.f32.gmra.mxu0 %v417
    %v419 = vpop.f32.mrf.mxu0
    %v420 = vadd.f32 %v235, %v419
    %v421 = vpop.f32.mrf.mxu0
    %v422 = vadd.f32 %v237, %v421
    %423 = vmatprep.mubr.f32.mxu0 0.0
    %v424 = vand.u32 %v127, 4294901760
    %425 = vmatmul.mubr.f32.gmra.mxu0 %v424
    %v426 = vpop.f32.mrf.mxu0
    %v427 = vadd.f32 %v246, %v426
    %v428 = vpop.f32.mrf.mxu0
    %v429 = vadd.f32 %v248, %v428
    %430 = vmatprep.mubr.f32.mxu0 0.0
    %v431 = vand.u32 %v130, 4294901760
    %432 = vmatmul.mubr.f32.gmra.mxu0 %v431
    %v433 = vpop.f32.mrf.mxu0
    %v434 = vadd.f32 %v257, %v433
    %v435 = vpop.f32.mrf.mxu0
    %v436 = vadd.f32 %v259, %v435
    %437 = vmatprep.mubr.f32.mxu0 0.0
    %v438 = vand.u32 %v133, 4294901760
    %439 = vmatmul.mubr.f32.gmra.mxu0 %v438
    %v440 = vpop.f32.mrf.mxu0
    %v441 = vadd.f32 %v268, %v440
    %v442 = vpop.f32.mrf.mxu0
    %v443 = vadd.f32 %v270, %v442
    %444 = vmatprep.mubr.f32.mxu0 0.0
    %v445 = vand.u32 %v136, 4294901760
    %446 = vmatmul.mubr.f32.gmra.mxu0 %v445
    %v447 = vpop.f32.mrf.mxu0
    %v448 = vadd.f32 %v279, %v447
    %v449 = vpop.f32.mrf.mxu0
    %v450 = vadd.f32 %v281, %v449
    %451 = vmatprep.mubr.f32.mxu0 0.0
    %v452 = vand.u32 %v139, 4294901760
    %453 = vmatmul.mubr.f32.gmra.mxu0 %v452
    %v454 = vpop.f32.mrf.mxu0
    %v455 = vadd.f32 %v290, %v454
    %v456 = vpop.f32.mrf.mxu0
    %v457 = vadd.f32 %v292, %v456
    %458 = vmatprep.mubr.f32.mxu0 0.0
    %v459 = vand.u32 %v142, 4294901760
    %460 = vmatmul.mubr.f32.gmra.mxu0 %v459
    %v461 = vpop.f32.mrf.mxu0
    %v462 = vadd.f32 %v301, %v461
    %v463 = vpop.f32.mrf.mxu0
    %v464 = vadd.f32 %v303, %v463
    %465 = vdwg.mxu0
    %466 = vmatprep.subr.mxu0 0.0
    %467 = vmatpush1.msra.mxu0 0.0
    %468 = vmatprep.subr.mxu0 0.0
    %469 = vmatpush1.msra.mxu0 0.0
    %470 = vmatprep.subr.mxu0 0.0
    %471 = vmatpush1.msra.mxu0 0.0
    %472 = vmatprep.subr.mxu0 0.0
    %473 = vmatpush1.msra.mxu0 0.0
    %474 = vmatprep.subr.mxu0 0.0
    %475 = vmatpush1.msra.mxu0 0.0
    %476 = vmatprep.subr.mxu0 0.0
    %477 = vmatpush1.msra.mxu0 0.0
    %478 = vmatprep.subr.mxu0 0.0
    %479 = vmatpush1.msra.mxu0 0.0
    %480 = vmatprep.subr.mxu0 0.0
    %481 = vmatpush1.msra.mxu0 0.0
    %482 = vmatprep.subr.mxu0 0.0
    %483 = vmatpush1.msra.mxu0 0.0
    %484 = vmatprep.subr.mxu0 0.0
    %485 = vmatpush1.msra.mxu0 0.0
    %486 = vmatprep.subr.mxu0 0.0
    %487 = vmatpush1.msra.mxu0 0.0
    %488 = vmatprep.subr.mxu0 0.0
    %489 = vmatpush1.msra.mxu0 0.0
    %v490 = vand.u32 %v106, 4294901760
    %v491 = vsub.f32 %v106, %v490
    %492 = vmatprep.subr.mxu0 %v491
    %v493 = vand.u32 %v105, 4294901760
    %v494 = vsub.f32 %v105, %v493
    %495 = vmatpush1.msra.mxu0 %v494
    %v496 = vand.u32 %v104, 4294901760
    %v497 = vsub.f32 %v104, %v496
    %498 = vmatprep.subr.mxu0 %v497
    %v499 = vand.u32 %v103, 4294901760
    %v500 = vsub.f32 %v103, %v499
    %501 = vmatpush1.msra.mxu0 %v500
    %v502 = vand.u32 %v102, 4294901760
    %v503 = vsub.f32 %v102, %v502
    %504 = vmatprep.subr.mxu0 %v503
    %v505 = vand.u32 %v101, 4294901760
    %v506 = vsub.f32 %v101, %v505
    %507 = vmatpush1.msra.mxu0 %v506
    %v508 = vand.u32 %v100, 4294901760
    %v509 = vsub.f32 %v100, %v508
    %510 = vmatprep.subr.mxu0 %v509
    %v511 = vand.u32 %v99, 4294901760
    %v512 = vsub.f32 %v99, %v511
    %513 = vmatpush1.msra.mxu0 %v512
    %514 = vmatprep.subr.mxu0 0.0
    %515 = vmatpush2.msra.mxu0 0.0
    %516 = vmatprep.subr.mxu0 0.0
    %517 = vmatpush2.msra.mxu0 0.0
    %518 = vmatprep.subr.mxu0 0.0
    %519 = vmatpush2.msra.mxu0 0.0
    %520 = vmatprep.subr.mxu0 0.0
    %521 = vmatpush2.msra.mxu0 0.0
    %522 = vmatprep.subr.mxu0 0.0
    %523 = vmatpush2.msra.mxu0 0.0
    %524 = vmatprep.subr.mxu0 0.0
    %525 = vmatpush2.msra.mxu0 0.0
    %526 = vmatprep.subr.mxu0 0.0
    %527 = vmatpush2.msra.mxu0 0.0
    %528 = vmatprep.subr.mxu0 0.0
    %529 = vmatpush2.msra.mxu0 0.0
    %530 = vmatprep.subr.mxu0 0.0
    %531 = vmatpush2.msra.mxu0 0.0
    %532 = vmatprep.subr.mxu0 0.0
    %533 = vmatpush2.msra.mxu0 0.0
    %534 = vmatprep.subr.mxu0 0.0
    %535 = vmatpush2.msra.mxu0 0.0
    %536 = vmatprep.subr.mxu0 0.0
    %537 = vmatpush2.msra.mxu0 0.0
    %538 = vmatprep.subr.mxu0 0.0
    %539 = vmatpush2.msra.mxu0 0.0
    %540 = vmatprep.subr.mxu0 0.0
    %541 = vmatpush2.msra.mxu0 0.0
    %542 = vmatprep.subr.mxu0 0.0
    %543 = vmatpush2.msra.mxu0 0.0
    %544 = vmatprep.subr.mxu0 0.0
    %545 = vmatpush2.msra.mxu0 0.0
    %546 = vmatprep.mubr.f32.mxu0 0.0
    %v547 = vand.u32 %v121, 4294901760
    %v548 = vsub.f32 %v121, %v547
    %549 = vmatmul.mubr.f32.gmra.mxu0 %v548
    %v550 = vpop.f32.mrf.mxu0
    %v551 = vadd.f32 %v413, %v550
    %v552 = vpop.f32.mrf.mxu0
    %v553 = vadd.f32 %v415, %v552
    %554 = vmatprep.mubr.f32.mxu0 0.0
    %v555 = vand.u32 %v124, 4294901760
    %v556 = vsub.f32 %v124, %v555
    %557 = vmatmul.mubr.f32.gmra.mxu0 %v556
    %v558 = vpop.f32.mrf.mxu0
    %v559 = vadd.f32 %v420, %v558
    %v560 = vpop.f32.mrf.mxu0
    %v561 = vadd.f32 %v422, %v560
    %562 = vmatprep.mubr.f32.mxu0 0.0
    %v563 = vand.u32 %v127, 4294901760
    %v564 = vsub.f32 %v127, %v563
    %565 = vmatmul.mubr.f32.gmra.mxu0 %v564
    %v566 = vpop.f32.mrf.mxu0
    %v567 = vadd.f32 %v427, %v566
    %v568 = vpop.f32.mrf.mxu0
    %v569 = vadd.f32 %v429, %v568
    %570 = vmatprep.mubr.f32.mxu0 0.0
    %v571 = vand.u32 %v130, 4294901760
    %v572 = vsub.f32 %v130, %v571
    %573 = vmatmul.mubr.f32.gmra.mxu0 %v572
    %v574 = vpop.f32.mrf.mxu0
    %v575 = vadd.f32 %v434, %v574
    %v576 = vpop.f32.mrf.mxu0
    %v577 = vadd.f32 %v436, %v576
    %578 = vmatprep.mubr.f32.mxu0 0.0
    %v579 = vand.u32 %v133, 4294901760
    %v580 = vsub.f32 %v133, %v579
    %581 = vmatmul.mubr.f32.gmra.mxu0 %v580
    %v582 = vpop.f32.mrf.mxu0
    %v583 = vadd.f32 %v441, %v582
    %v584 = vpop.f32.mrf.mxu0
    %v585 = vadd.f32 %v443, %v584
    %586 = vmatprep.mubr.f32.mxu0 0.0
    %v587 = vand.u32 %v136, 4294901760
    %v588 = vsub.f32 %v136, %v587
    %589 = vmatmul.mubr.f32.gmra.mxu0 %v588
    %v590 = vpop.f32.mrf.mxu0
    %v591 = vadd.f32 %v448, %v590
    %v592 = vpop.f32.mrf.mxu0
    %v593 = vadd.f32 %v450, %v592
    %594 = vmatprep.mubr.f32.mxu0 0.0
    %v595 = vand.u32 %v139, 4294901760
    %v596 = vsub.f32 %v139, %v595
    %597 = vmatmul.mubr.f32.gmra.mxu0 %v596
    %v598 = vpop.f32.mrf.mxu0
    %v599 = vadd.f32 %v455, %v598
    %v600 = vpop.f32.mrf.mxu0
    %v601 = vadd.f32 %v457, %v600
    %602 = vmatprep.mubr.f32.mxu0 0.0
    %v603 = vand.u32 %v142, 4294901760
    %v604 = vsub.f32 %v142, %v603
    %605 = vmatmul.mubr.f32.gmra.mxu0 %v604
    %v606 = vpop.f32.mrf.mxu0
    %v607 = vadd.f32 %v462, %v606
    %v608 = vpop.f32.mrf.mxu0
    %v609 = vadd.f32 %v464, %v608
    %610 = vdwg.mxu0
    %611 = vmatprep.subr.mxu0 0.0
    %612 = vmatpush1.msra.mxu0 0.0
    %613 = vmatprep.subr.mxu0 0.0
    %614 = vmatpush1.msra.mxu0 0.0
    %615 = vmatprep.subr.mxu0 0.0
    %616 = vmatpush1.msra.mxu0 0.0
    %617 = vmatprep.subr.mxu0 0.0
    %618 = vmatpush1.msra.mxu0 0.0
    %619 = vmatprep.subr.mxu0 0.0
    %620 = vmatpush1.msra.mxu0 0.0
    %621 = vmatprep.subr.mxu0 0.0
    %622 = vmatpush1.msra.mxu0 0.0
    %623 = vmatprep.subr.mxu0 0.0
    %624 = vmatpush1.msra.mxu0 0.0
    %625 = vmatprep.subr.mxu0 0.0
    %626 = vmatpush1.msra.mxu0 0.0
    %627 = vmatprep.subr.mxu0 0.0
    %628 = vmatpush1.msra.mxu0 0.0
    %629 = vmatprep.subr.mxu0 0.0
    %630 = vmatpush1.msra.mxu0 0.0
    %631 = vmatprep.subr.mxu0 0.0
    %632 = vmatpush1.msra.mxu0 0.0
    %633 = vmatprep.subr.mxu0 0.0
    %634 = vmatpush1.msra.mxu0 0.0
    %v635 = vand.u32 %v106, 4294901760
    %636 = vmatprep.subr.mxu0 %v635
    %v637 = vand.u32 %v105, 4294901760
    %638 = vmatpush1.msra.mxu0 %v637
    %v639 = vand.u32 %v104, 4294901760
    %640 = vmatprep.subr.mxu0 %v639
    %v641 = vand.u32 %v103, 4294901760
    %642 = vmatpush1.msra.mxu0 %v641
    %v643 = vand.u32 %v102, 4294901760
    %644 = vmatprep.subr.mxu0 %v643
    %v645 = vand.u32 %v101, 4294901760
    %646 = vmatpush1.msra.mxu0 %v645
    %v647 = vand.u32 %v100, 4294901760
    %648 = vmatprep.subr.mxu0 %v647
    %v649 = vand.u32 %v99, 4294901760
    %650 = vmatpush1.msra.mxu0 %v649
    %651 = vmatprep.subr.mxu0 0.0
    %652 = vmatpush2.msra.mxu0 0.0
    %653 = vmatprep.subr.mxu0 0.0
    %654 = vmatpush2.msra.mxu0 0.0
    %655 = vmatprep.subr.mxu0 0.0
    %656 = vmatpush2.msra.mxu0 0.0
    %657 = vmatprep.subr.mxu0 0.0
    %658 = vmatpush2.msra.mxu0 0.0
    %659 = vmatprep.subr.mxu0 0.0
    %660 = vmatpush2.msra.mxu0 0.0
    %661 = vmatprep.subr.mxu0 0.0
    %662 = vmatpush2.msra.mxu0 0.0
    %663 = vmatprep.subr.mxu0 0.0
    %664 = vmatpush2.msra.mxu0 0.0
    %665 = vmatprep.subr.mxu0 0.0
    %666 = vmatpush2.msra.mxu0 0.0
    %667 = vmatprep.subr.mxu0 0.0
    %668 = vmatpush2.msra.mxu0 0.0
    %669 = vmatprep.subr.mxu0 0.0
    %670 = vmatpush2.msra.mxu0 0.0
    %671 = vmatprep.subr.mxu0 0.0
    %672 = vmatpush2.msra.mxu0 0.0
    %673 = vmatprep.subr.mxu0 0.0
    %674 = vmatpush2.msra.mxu0 0.0
    %675 = vmatprep.subr.mxu0 0.0
    %676 = vmatpush2.msra.mxu0 0.0
    %677 = vmatprep.subr.mxu0 0.0
    %678 = vmatpush2.msra.mxu0 0.0
    %679 = vmatprep.subr.mxu0 0.0
    %680 = vmatpush2.msra.mxu0 0.0
    %681 = vmatprep.subr.mxu0 0.0
    %682 = vmatpush2.msra.mxu0 0.0
    %683 = vmatprep.mubr.f32.mxu0 0.0
    %v684 = vand.u32 %v121, 4294901760
    %v685 = vsub.f32 %v121, %v684
    %v686 = vand.u32 %v685, 4294901760
    %687 = vmatmul.mubr.f32.gmra.mxu0 %v686
    %v688 = vpop.f32.mrf.mxu0
    %v689 = vadd.f32 %v551, %v688
    %v690 = vpop.f32.mrf.mxu0
    %v691 = vadd.f32 %v553, %v690
    %692 = vmatprep.mubr.f32.mxu0 0.0
    %v693 = vand.u32 %v124, 4294901760
    %v694 = vsub.f32 %v124, %v693
    %v695 = vand.u32 %v694, 4294901760
    %696 = vmatmul.mubr.f32.gmra.mxu0 %v695
    %v697 = vpop.f32.mrf.mxu0
    %v698 = vadd.f32 %v559, %v697
    %v699 = vpop.f32.mrf.mxu0
    %v700 = vadd.f32 %v561, %v699
    %701 = vmatprep.mubr.f32.mxu0 0.0
    %v702 = vand.u32 %v127, 4294901760
    %v703 = vsub.f32 %v127, %v702
    %v704 = vand.u32 %v703, 4294901760
    %705 = vmatmul.mubr.f32.gmra.mxu0 %v704
    %v706 = vpop.f32.mrf.mxu0
    %v707 = vadd.f32 %v567, %v706
    %v708 = vpop.f32.mrf.mxu0
    %v709 = vadd.f32 %v569, %v708
    %710 = vmatprep.mubr.f32.mxu0 0.0
    %v711 = vand.u32 %v130, 4294901760
    %v712 = vsub.f32 %v130, %v711
    %v713 = vand.u32 %v712, 4294901760
    %714 = vmatmul.mubr.f32.gmra.mxu0 %v713
    %v715 = vpop.f32.mrf.mxu0
    %v716 = vadd.f32 %v575, %v715
    %v717 = vpop.f32.mrf.mxu0
    %v718 = vadd.f32 %v577, %v717
    %719 = vmatprep.mubr.f32.mxu0 0.0
    %v720 = vand.u32 %v133, 4294901760
    %v721 = vsub.f32 %v133, %v720
    %v722 = vand.u32 %v721, 4294901760
    %723 = vmatmul.mubr.f32.gmra.mxu0 %v722
    %v724 = vpop.f32.mrf.mxu0
    %v725 = vadd.f32 %v583, %v724
    %v726 = vpop.f32.mrf.mxu0
    %v727 = vadd.f32 %v585, %v726
    %728 = vmatprep.mubr.f32.mxu0 0.0
    %v729 = vand.u32 %v136, 4294901760
    %v730 = vsub.f32 %v136, %v729
    %v731 = vand.u32 %v730, 4294901760
    %732 = vmatmul.mubr.f32.gmra.mxu0 %v731
    %v733 = vpop.f32.mrf.mxu0
    %v734 = vadd.f32 %v591, %v733
    %v735 = vpop.f32.mrf.mxu0
    %v736 = vadd.f32 %v593, %v735
    %737 = vmatprep.mubr.f32.mxu0 0.0
    %v738 = vand.u32 %v139, 4294901760
    %v739 = vsub.f32 %v139, %v738
    %v740 = vand.u32 %v739, 4294901760
    %741 = vmatmul.mubr.f32.gmra.mxu0 %v740
    %v742 = vpop.f32.mrf.mxu0
    %v743 = vadd.f32 %v599, %v742
    %v744 = vpop.f32.mrf.mxu0
    %v745 = vadd.f32 %v601, %v744
    %746 = vmatprep.mubr.f32.mxu0 0.0
    %v747 = vand.u32 %v142, 4294901760
    %v748 = vsub.f32 %v142, %v747
    %v749 = vand.u32 %v748, 4294901760
    %750 = vmatmul.mubr.f32.gmra.mxu0 %v749
    %v751 = vpop.f32.mrf.mxu0
    %v752 = vadd.f32 %v607, %v751
    %v753 = vpop.f32.mrf.mxu0
    %v754 = vadd.f32 %v609, %v753
    %755 = vdwg.mxu0
    %756 = vmatprep.subr.mxu0 0.0
    %757 = vmatpush1.msra.mxu0 0.0
    %758 = vmatprep.subr.mxu0 0.0
    %759 = vmatpush1.msra.mxu0 0.0
    %760 = vmatprep.subr.mxu0 0.0
    %761 = vmatpush1.msra.mxu0 0.0
    %762 = vmatprep.subr.mxu0 0.0
    %763 = vmatpush1.msra.mxu0 0.0
    %764 = vmatprep.subr.mxu0 0.0
    %765 = vmatpush1.msra.mxu0 0.0
    %766 = vmatprep.subr.mxu0 0.0
    %767 = vmatpush1.msra.mxu0 0.0
    %768 = vmatprep.subr.mxu0 0.0
    %769 = vmatpush1.msra.mxu0 0.0
    %770 = vmatprep.subr.mxu0 0.0
    %771 = vmatpush1.msra.mxu0 0.0
    %772 = vmatprep.subr.mxu0 0.0
    %773 = vmatpush1.msra.mxu0 0.0
    %774 = vmatprep.subr.mxu0 0.0
    %775 = vmatpush1.msra.mxu0 0.0
    %776 = vmatprep.subr.mxu0 0.0
    %777 = vmatpush1.msra.mxu0 0.0
    %778 = vmatprep.subr.mxu0 0.0
    %779 = vmatpush1.msra.mxu0 0.0
    %v780 = vand.u32 %v106, 4294901760
    %v781 = vsub.f32 %v106, %v780
    %v782 = vand.u32 %v781, 4294901760
    %783 = vmatprep.subr.mxu0 %v782
    %v784 = vand.u32 %v105, 4294901760
    %v785 = vsub.f32 %v105, %v784
    %v786 = vand.u32 %v785, 4294901760
    %787 = vmatpush1.msra.mxu0 %v786
    %v788 = vand.u32 %v104, 4294901760
    %v789 = vsub.f32 %v104, %v788
    %v790 = vand.u32 %v789, 4294901760
    %791 = vmatprep.subr.mxu0 %v790
    %v792 = vand.u32 %v103, 4294901760
    %v793 = vsub.f32 %v103, %v792
    %v794 = vand.u32 %v793, 4294901760
    %795 = vmatpush1.msra.mxu0 %v794
    %v796 = vand.u32 %v102, 4294901760
    %v797 = vsub.f32 %v102, %v796
    %v798 = vand.u32 %v797, 4294901760
    %799 = vmatprep.subr.mxu0 %v798
    %v800 = vand.u32 %v101, 4294901760
    %v801 = vsub.f32 %v101, %v800
    %v802 = vand.u32 %v801, 4294901760
    %803 = vmatpush1.msra.mxu0 %v802
    %v804 = vand.u32 %v100, 4294901760
    %v805 = vsub.f32 %v100, %v804
    %v806 = vand.u32 %v805, 4294901760
    %807 = vmatprep.subr.mxu0 %v806
    %v808 = vand.u32 %v99, 4294901760
    %v809 = vsub.f32 %v99, %v808
    %v810 = vand.u32 %v809, 4294901760
    %811 = vmatpush1.msra.mxu0 %v810
    %812 = vmatprep.subr.mxu0 0.0
    %813 = vmatpush2.msra.mxu0 0.0
    %814 = vmatprep.subr.mxu0 0.0
    %815 = vmatpush2.msra.mxu0 0.0
    %816 = vmatprep.subr.mxu0 0.0
    %817 = vmatpush2.msra.mxu0 0.0
    %818 = vmatprep.subr.mxu0 0.0
    %819 = vmatpush2.msra.mxu0 0.0
    %820 = vmatprep.subr.mxu0 0.0
    %821 = vmatpush2.msra.mxu0 0.0
    %822 = vmatprep.subr.mxu0 0.0
    %823 = vmatpush2.msra.mxu0 0.0
    %824 = vmatprep.subr.mxu0 0.0
    %825 = vmatpush2.msra.mxu0 0.0
    %826 = vmatprep.subr.mxu0 0.0
    %827 = vmatpush2.msra.mxu0 0.0
    %828 = vmatprep.subr.mxu0 0.0
    %829 = vmatpush2.msra.mxu0 0.0
    %830 = vmatprep.subr.mxu0 0.0
    %831 = vmatpush2.msra.mxu0 0.0
    %832 = vmatprep.subr.mxu0 0.0
    %833 = vmatpush2.msra.mxu0 0.0
    %834 = vmatprep.subr.mxu0 0.0
    %835 = vmatpush2.msra.mxu0 0.0
    %836 = vmatprep.subr.mxu0 0.0
    %837 = vmatpush2.msra.mxu0 0.0
    %838 = vmatprep.subr.mxu0 0.0
    %839 = vmatpush2.msra.mxu0 0.0
    %840 = vmatprep.subr.mxu0 0.0
    %841 = vmatpush2.msra.mxu0 0.0
    %842 = vmatprep.subr.mxu0 0.0
    %843 = vmatpush2.msra.mxu0 0.0
    %844 = vmatprep.mubr.f32.mxu0 0.0
    %v845 = vand.u32 %v121, 4294901760
    %846 = vmatmul.mubr.f32.gmra.mxu0 %v845
    %v847 = vpop.f32.mrf.mxu0
    %v848 = vadd.f32 %v689, %v847
    %v849 = vpop.f32.mrf.mxu0
    %v850 = vadd.f32 %v691, %v849
    %851 = vmatprep.mubr.f32.mxu0 0.0
    %v852 = vand.u32 %v124, 4294901760
    %853 = vmatmul.mubr.f32.gmra.mxu0 %v852
    %v854 = vpop.f32.mrf.mxu0
    %v855 = vadd.f32 %v698, %v854
    %v856 = vpop.f32.mrf.mxu0
    %v857 = vadd.f32 %v700, %v856
    %858 = vmatprep.mubr.f32.mxu0 0.0
    %v859 = vand.u32 %v127, 4294901760
    %860 = vmatmul.mubr.f32.gmra.mxu0 %v859
    %v861 = vpop.f32.mrf.mxu0
    %v862 = vadd.f32 %v707, %v861
    %v863 = vpop.f32.mrf.mxu0
    %v864 = vadd.f32 %v709, %v863
    %865 = vmatprep.mubr.f32.mxu0 0.0
    %v866 = vand.u32 %v130, 4294901760
    %867 = vmatmul.mubr.f32.gmra.mxu0 %v866
    %v868 = vpop.f32.mrf.mxu0
    %v869 = vadd.f32 %v716, %v868
    %v870 = vpop.f32.mrf.mxu0
    %v871 = vadd.f32 %v718, %v870
    %872 = vmatprep.mubr.f32.mxu0 0.0
    %v873 = vand.u32 %v133, 4294901760
    %874 = vmatmul.mubr.f32.gmra.mxu0 %v873
    %v875 = vpop.f32.mrf.mxu0
    %v876 = vadd.f32 %v725, %v875
    %v877 = vpop.f32.mrf.mxu0
    %v878 = vadd.f32 %v727, %v877
    %879 = vmatprep.mubr.f32.mxu0 0.0
    %v880 = vand.u32 %v136, 4294901760
    %881 = vmatmul.mubr.f32.gmra.mxu0 %v880
    %v882 = vpop.f32.mrf.mxu0
    %v883 = vadd.f32 %v734, %v882
    %v884 = vpop.f32.mrf.mxu0
    %v885 = vadd.f32 %v736, %v884
    %886 = vmatprep.mubr.f32.mxu0 0.0
    %v887 = vand.u32 %v139, 4294901760
    %888 = vmatmul.mubr.f32.gmra.mxu0 %v887
    %v889 = vpop.f32.mrf.mxu0
    %v890 = vadd.f32 %v743, %v889
    %v891 = vpop.f32.mrf.mxu0
    %v892 = vadd.f32 %v745, %v891
    %893 = vmatprep.mubr.f32.mxu0 0.0
    %v894 = vand.u32 %v142, 4294901760
    %895 = vmatmul.mubr.f32.gmra.mxu0 %v894
    %v896 = vpop.f32.mrf.mxu0
    %v897 = vadd.f32 %v752, %v896
    %v898 = vpop.f32.mrf.mxu0
    %v899 = vadd.f32 %v754, %v898
    %900 = vdwg.mxu0
    %901 = vmatprep.subr.mxu0 0.0
    %902 = vmatpush1.msra.mxu0 0.0
    %903 = vmatprep.subr.mxu0 0.0
    %904 = vmatpush1.msra.mxu0 0.0
    %905 = vmatprep.subr.mxu0 0.0
    %906 = vmatpush1.msra.mxu0 0.0
    %907 = vmatprep.subr.mxu0 0.0
    %908 = vmatpush1.msra.mxu0 0.0
    %909 = vmatprep.subr.mxu0 0.0
    %910 = vmatpush1.msra.mxu0 0.0
    %911 = vmatprep.subr.mxu0 0.0
    %912 = vmatpush1.msra.mxu0 0.0
    %913 = vmatprep.subr.mxu0 0.0
    %914 = vmatpush1.msra.mxu0 0.0
    %915 = vmatprep.subr.mxu0 0.0
    %916 = vmatpush1.msra.mxu0 0.0
    %917 = vmatprep.subr.mxu0 0.0
    %918 = vmatpush1.msra.mxu0 0.0
    %919 = vmatprep.subr.mxu0 0.0
    %920 = vmatpush1.msra.mxu0 0.0
    %921 = vmatprep.subr.mxu0 0.0
    %922 = vmatpush1.msra.mxu0 0.0
    %923 = vmatprep.subr.mxu0 0.0
    %924 = vmatpush1.msra.mxu0 0.0
    %v925 = vand.u32 %v106, 4294901760
    %926 = vmatprep.subr.mxu0 %v925
    %v927 = vand.u32 %v105, 4294901760
    %928 = vmatpush1.msra.mxu0 %v927
    %v929 = vand.u32 %v104, 4294901760
    %930 = vmatprep.subr.mxu0 %v929
    %v931 = vand.u32 %v103, 4294901760
    %932 = vmatpush1.msra.mxu0 %v931
    %v933 = vand.u32 %v102, 4294901760
    %934 = vmatprep.subr.mxu0 %v933
    %v935 = vand.u32 %v101, 4294901760
    %936 = vmatpush1.msra.mxu0 %v935
    %v937 = vand.u32 %v100, 4294901760
    %938 = vmatprep.subr.mxu0 %v937
    %v939 = vand.u32 %v99, 4294901760
    %940 = vmatpush1.msra.mxu0 %v939
    %941 = vmatprep.subr.mxu0 0.0
    %942 = vmatpush2.msra.mxu0 0.0
    %943 = vmatprep.subr.mxu0 0.0
    %944 = vmatpush2.msra.mxu0 0.0
    %945 = vmatprep.subr.mxu0 0.0
    %946 = vmatpush2.msra.mxu0 0.0
    %947 = vmatprep.subr.mxu0 0.0
    %948 = vmatpush2.msra.mxu0 0.0
    %949 = vmatprep.subr.mxu0 0.0
    %950 = vmatpush2.msra.mxu0 0.0
    %951 = vmatprep.subr.mxu0 0.0
    %952 = vmatpush2.msra.mxu0 0.0
    %953 = vmatprep.subr.mxu0 0.0
    %954 = vmatpush2.msra.mxu0 0.0
    %955 = vmatprep.subr.mxu0 0.0
    %956 = vmatpush2.msra.mxu0 0.0
    %957 = vmatprep.subr.mxu0 0.0
    %958 = vmatpush2.msra.mxu0 0.0
    %959 = vmatprep.subr.mxu0 0.0
    %960 = vmatpush2.msra.mxu0 0.0
    %961 = vmatprep.subr.mxu0 0.0
    %962 = vmatpush2.msra.mxu0 0.0
    %963 = vmatprep.subr.mxu0 0.0
    %964 = vmatpush2.msra.mxu0 0.0
    %965 = vmatprep.subr.mxu0 0.0
    %966 = vmatpush2.msra.mxu0 0.0
    %967 = vmatprep.subr.mxu0 0.0
    %968 = vmatpush2.msra.mxu0 0.0
    %969 = vmatprep.subr.mxu0 0.0
    %970 = vmatpush2.msra.mxu0 0.0
    %971 = vmatprep.subr.mxu0 0.0
    %972 = vmatpush2.msra.mxu0 0.0
    %973 = vmatprep.mubr.f32.mxu0 0.0
    %v974 = vand.u32 %v121, 4294901760
    %975 = vmatmul.mubr.f32.gmra.mxu0 %v974
    %v976 = vpop.f32.mrf.mxu0
    %v977 = vadd.f32 %v848, %v976
    %v978 = vpop.f32.mrf.mxu0
    %v979 = vadd.f32 %v850, %v978
    %980 = vmatprep.mubr.f32.mxu0 0.0
    %v981 = vand.u32 %v124, 4294901760
    %982 = vmatmul.mubr.f32.gmra.mxu0 %v981
    %v983 = vpop.f32.mrf.mxu0
    %v984 = vadd.f32 %v855, %v983
    %v985 = vpop.f32.mrf.mxu0
    %v986 = vadd.f32 %v857, %v985
    %987 = vmatprep.mubr.f32.mxu0 0.0
    %v988 = vand.u32 %v127, 4294901760
    %989 = vmatmul.mubr.f32.gmra.mxu0 %v988
    %v990 = vpop.f32.mrf.mxu0
    %v991 = vadd.f32 %v862, %v990
    %v992 = vpop.f32.mrf.mxu0
    %v993 = vadd.f32 %v864, %v992
    %994 = vmatprep.mubr.f32.mxu0 0.0
    %v995 = vand.u32 %v130, 4294901760
    %996 = vmatmul.mubr.f32.gmra.mxu0 %v995
    %v997 = vpop.f32.mrf.mxu0
    %v998 = vadd.f32 %v869, %v997
    %v999 = vpop.f32.mrf.mxu0
    %v1000 = vadd.f32 %v871, %v999
    %1001 = vmatprep.mubr.f32.mxu0 0.0
    %v1002 = vand.u32 %v133, 4294901760
    %1003 = vmatmul.mubr.f32.gmra.mxu0 %v1002
    %v1004 = vpop.f32.mrf.mxu0
    %v1005 = vadd.f32 %v876, %v1004
    %v1006 = vpop.f32.mrf.mxu0
    %v1007 = vadd.f32 %v878, %v1006
    %1008 = vmatprep.mubr.f32.mxu0 0.0
    %v1009 = vand.u32 %v136, 4294901760
    %1010 = vmatmul.mubr.f32.gmra.mxu0 %v1009
    %v1011 = vpop.f32.mrf.mxu0
    %v1012 = vadd.f32 %v883, %v1011
    %v1013 = vpop.f32.mrf.mxu0
    %v1014 = vadd.f32 %v885, %v1013
    %1015 = vmatprep.mubr.f32.mxu0 0.0
    %v1016 = vand.u32 %v139, 4294901760
    %1017 = vmatmul.mubr.f32.gmra.mxu0 %v1016
    %v1018 = vpop.f32.mrf.mxu0
    %v1019 = vadd.f32 %v890, %v1018
    %v1020 = vpop.f32.mrf.mxu0
    %v1021 = vadd.f32 %v892, %v1020
    %1022 = vmatprep.mubr.f32.mxu0 0.0
    %v1023 = vand.u32 %v142, 4294901760
    %1024 = vmatmul.mubr.f32.gmra.mxu0 %v1023
    %v1025 = vpop.f32.mrf.mxu0
    %v1026 = vadd.f32 %v897, %v1025
    %v1027 = vpop.f32.mrf.mxu0
    %v1028 = vadd.f32 %v899, %v1027
    %1029 = vdwg.mxu0
    %v1030 = vld [vmem:[#allocation7] sm:$0xff]
    %v1031 = vld [vmem:[#allocation7 + $0x8] sm:$0xff]
    %v1032 = vld [vmem:[#allocation7 + $0x10] sm:$0xff]
    %v1033 = vld [vmem:[#allocation7 + $0x18] sm:$0xff]
    %v1034 = vld [vmem:[#allocation7 + $0x20] sm:$0xff]
    %v1035 = vld [vmem:[#allocation7 + $0x28] sm:$0xff]
    %v1036 = vld [vmem:[#allocation7 + $0x30] sm:$0xff]
    %v1037 = vld [vmem:[#allocation7 + $0x38] sm:$0xff]
    %v1038 = vld [vmem:[#allocation7 + $0x40] sm:$0xff]
    %v1039 = vld [vmem:[#allocation7 + $0x48] sm:$0xff]
    %v1040 = vld [vmem:[#allocation7 + $0x50] sm:$0xff]
    %v1041 = vld [vmem:[#allocation7 + $0x58] sm:$0xff]
    %v1042 = vld [vmem:[#allocation7 + $0x60] sm:$0xff]
    %v1043 = vld [vmem:[#allocation7 + $0x68] sm:$0xff]
    %v1044 = vld [vmem:[#allocation7 + $0x70] sm:$0xff]
    %v1045 = vld [vmem:[#allocation7 + $0x78] sm:$0xff]
    %v1046 = vld [vmem:[%s5] sm:$0x1]
    %v1047 = vlaneseq
    %v1048 = vand.u32 %v1047, 127
    %vm1049 = vcmp.ge.s32.totalorder %v1048, 32
    %v1050 = vsel %vm1049, 7, 0
    %1051 = vset.pattern.permute.xlu0 0
    %1052 = vperm.xlu0 %1051, %v90
    %v1053 = vpop.permute.xlu0 %1052
    %vm1054 = vcmp.gt.s32.totalorder %v1053, %v1050
    %v1055 = vsel %vm1049, 6, 1
    %vm1056 = vcmp.gt.s32.totalorder %v1053, %v1055
    %v1057 = vsel %vm1049, 5, 2
    %vm1058 = vcmp.gt.s32.totalorder %v1053, %v1057
    %v1059 = vsel %vm1049, 4, 3
    %vm1060 = vcmp.gt.s32.totalorder %v1053, %v1059
    %v1061 = vsel %vm1049, 3, 4
    %vm1062 = vcmp.gt.s32.totalorder %v1053, %v1061
    %v1063 = vsel %vm1049, 2, 5
    %vm1064 = vcmp.gt.s32.totalorder %v1053, %v1063
    %v1065 = vsel %vm1049, 1, 6
    %vm1066 = vcmp.gt.s32.totalorder %v1053, %v1065
    %v1067 = vsel %vm1049, 0, 7
    %vm1068 = vcmp.gt.s32.totalorder %v1053, %v1067
    %vm1069 = vcmask 523264
    %v1071 = vsel %vm1069, 0.0, 0
    %1073 = vmatprep.subr.mxu0 0.0
    %1074 = vmatpush1.msra.mxu0 0.0
    %1075 = vmatprep.subr.mxu0 0.0
    %1076 = vmatpush1.msra.mxu0 0.0
    %1077 = vmatprep.subr.mxu0 0.0
    %1078 = vmatpush1.msra.mxu0 0.0
    %1079 = vmatprep.subr.mxu0 0.0
    %1080 = vmatpush1.msra.mxu0 0.0
    %1081 = vmatprep.subr.mxu0 0.0
    %1082 = vmatpush1.msra.mxu0 0.0
    %1083 = vmatprep.subr.mxu0 0.0
    %1084 = vmatpush1.msra.mxu0 0.0
    %1085 = vmatprep.subr.mxu0 0.0
    %1086 = vmatpush1.msra.mxu0 0.0
    %1087 = vmatprep.subr.mxu0 0.0
    %1088 = vmatpush1.msra.mxu0 0.0
    %1089 = vmatprep.subr.mxu0 %v1045
    %1090 = vmatpush1.msra.mxu0 %v1044
    %1091 = vmatprep.subr.mxu0 %v1043
    %1092 = vmatpush1.msra.mxu0 %v1042
    %1093 = vmatprep.subr.mxu0 %v1041
    %1094 = vmatpush1.msra.mxu0 %v1040
    %1095 = vmatprep.subr.mxu0 %v1039
    %1096 = vmatpush1.msra.mxu0 %v1038
    %1097 = vmatprep.subr.mxu0 %v1037
    %1098 = vmatpush1.msra.mxu0 %v1036
    %1099 = vmatprep.subr.mxu0 %v1035
    %1100 = vmatpush1.msra.mxu0 %v1034
    %1101 = vmatprep.subr.mxu0 %v1033
    %1102 = vmatpush1.msra.mxu0 %v1032
    %1103 = vmatprep.subr.mxu0 %v1031
    %1104 = vmatpush1.msra.mxu0 %v1030
    %1105 = vmatprep.subr.mxu0 0.0
    %1106 = vmatpush2.msra.mxu0 0.0
    %1107 = vmatprep.subr.mxu0 0.0
    %1108 = vmatpush2.msra.mxu0 0.0
    %1109 = vmatprep.subr.mxu0 0.0
    %1110 = vmatpush2.msra.mxu0 0.0
    %1111 = vmatprep.subr.mxu0 0.0
    %1112 = vmatpush2.msra.mxu0 0.0
    %1113 = vmatprep.subr.mxu0 0.0
    %1114 = vmatpush2.msra.mxu0 0.0
    %1115 = vmatprep.subr.mxu0 0.0
    %1116 = vmatpush2.msra.mxu0 0.0
    %1117 = vmatprep.subr.mxu0 0.0
    %1118 = vmatpush2.msra.mxu0 0.0
    %1119 = vmatprep.subr.mxu0 0.0
    %1120 = vmatpush2.msra.mxu0 0.0
    %1121 = vmatprep.subr.mxu0 0.0
    %1122 = vmatpush2.msra.mxu0 0.0
    %1123 = vmatprep.subr.mxu0 0.0
    %1124 = vmatpush2.msra.mxu0 0.0
    %1125 = vmatprep.subr.mxu0 0.0
    %1126 = vmatpush2.msra.mxu0 0.0
    %1127 = vmatprep.subr.mxu0 0.0
    %1128 = vmatpush2.msra.mxu0 0.0
    %1129 = vmatprep.subr.mxu0 0.0
    %1130 = vmatpush2.msra.mxu0 0.0
    %1131 = vmatprep.subr.mxu0 0.0
    %1132 = vmatpush2.msra.mxu0 0.0
    %1133 = vmatprep.subr.mxu0 0.0
    %1134 = vmatpush2.msra.mxu0 0.0
    %1135 = vmatprep.subr.mxu0 0.0
    %1136 = vmatpush2.msra.mxu0 0.0
    %1137 = vmatprep.mubr.f32.mxu0 0.0
    %1138 = vmatmul.mubr.f32.gmra.mxu0 %v1071
    %v1139 = vpop.f32.mrf.mxu0
    %v1140 = vadd.f32 0.0, %v1139
    %v1141 = vpop.f32.mrf.mxu0
    %v1142 = vadd.f32 0.0, %v1141
    %1143 = vdwg.mxu0
    %v1144 = vadd.f32 %v977, %v1140
    %v1145 = vxor.u32 %v1144, 2147483648
    %v1146 = vmul.f32 %v1145, 1.442695
    %v1147 = vpow.pop %v1146
    %v1148 = vadd.f32 %v1147, 1.0
    %v1149 = vrcp.pop %v1148
    %v1150 = vmul.f32 1.0, %v1149
    %v1152 = vlaneseq
    %v1153 = vshrl.u32 %v1152, 7
    %v1154 = vsub.s32 0, %v1153
    %v1155 = vrot.slane %v1046, %v1154
    %v1157 = vadd.f32 %v1142, %v1155
    %v1158 = vmul.f32 %v1150, %v1157
    %v1159 = vadd.f32 %v979, %v1158
    %v1160 = vtanh.pop %v1159
    %v1161 = vsub.f32 1.0, %v1150
    %1163 = vrot.lane.b32.xlu0 %v1160, 64
    %v1164 = vpop.permute.xlu0 %1163
    %v1166 = vmul.f32 %v1161, %v1164
    %v1167 = vmul.f32 %v1150, 0.0
    %v1168 = vadd.f32 %v1166, %v1167
    %1170 = vrot.lane.b32.xlu0 %v1168, 64
    %v1171 = vpop.permute.xlu0 %1170
    %v1173 = vsel %vm1054, %v1171, 0.0
    %v1175 = vsel %vm1069, %v1173, 0
    %1177 = vmatprep.subr.mxu0 0.0
    %1178 = vmatpush1.msra.mxu0 0.0
    %1179 = vmatprep.subr.mxu0 0.0
    %1180 = vmatpush1.msra.mxu0 0.0
    %1181 = vmatprep.subr.mxu0 0.0
    %1182 = vmatpush1.msra.mxu0 0.0
    %1183 = vmatprep.subr.mxu0 0.0
    %1184 = vmatpush1.msra.mxu0 0.0
    %1185 = vmatprep.subr.mxu0 0.0
    %1186 = vmatpush1.msra.mxu0 0.0
    %1187 = vmatprep.subr.mxu0 0.0
    %1188 = vmatpush1.msra.mxu0 0.0
    %1189 = vmatprep.subr.mxu0 0.0
    %1190 = vmatpush1.msra.mxu0 0.0
    %1191 = vmatprep.subr.mxu0 0.0
    %1192 = vmatpush1.msra.mxu0 0.0
    %1193 = vmatprep.subr.mxu0 %v1045
    %1194 = vmatpush1.msra.mxu0 %v1044
    %1195 = vmatprep.subr.mxu0 %v1043
    %1196 = vmatpush1.msra.mxu0 %v1042
    %1197 = vmatprep.subr.mxu0 %v1041
    %1198 = vmatpush1.msra.mxu0 %v1040
    %1199 = vmatprep.subr.mxu0 %v1039
    %1200 = vmatpush1.msra.mxu0 %v1038
    %1201 = vmatprep.subr.mxu0 %v1037
    %1202 = vmatpush1.msra.mxu0 %v1036
    %1203 = vmatprep.subr.mxu0 %v1035
    %1204 = vmatpush1.msra.mxu0 %v1034
    %1205 = vmatprep.subr.mxu0 %v1033
    %1206 = vmatpush1.msra.mxu0 %v1032
    %1207 = vmatprep.subr.mxu0 %v1031
    %1208 = vmatpush1.msra.mxu0 %v1030
    %1209 = vmatprep.subr.mxu0 0.0
    %1210 = vmatpush2.msra.mxu0 0.0
    %1211 = vmatprep.subr.mxu0 0.0
    %1212 = vmatpush2.msra.mxu0 0.0
    %1213 = vmatprep.subr.mxu0 0.0
    %1214 = vmatpush2.msra.mxu0 0.0
    %1215 = vmatprep.subr.mxu0 0.0
    %1216 = vmatpush2.msra.mxu0 0.0
    %1217 = vmatprep.subr.mxu0 0.0
    %1218 = vmatpush2.msra.mxu0 0.0
    %1219 = vmatprep.subr.mxu0 0.0
    %1220 = vmatpush2.msra.mxu0 0.0
    %1221 = vmatprep.subr.mxu0 0.0
    %1222 = vmatpush2.msra.mxu0 0.0
    %1223 = vmatprep.subr.mxu0 0.0
    %1224 = vmatpush2.msra.mxu0 0.0
    %1225 = vmatprep.subr.mxu0 0.0
    %1226 = vmatpush2.msra.mxu0 0.0
    %1227 = vmatprep.subr.mxu0 0.0
    %1228 = vmatpush2.msra.mxu0 0.0
    %1229 = vmatprep.subr.mxu0 0.0
    %1230 = vmatpush2.msra.mxu0 0.0
    %1231 = vmatprep.subr.mxu0 0.0
    %1232 = vmatpush2.msra.mxu0 0.0
    %1233 = vmatprep.subr.mxu0 0.0
    %1234 = vmatpush2.msra.mxu0 0.0
    %1235 = vmatprep.subr.mxu0 0.0
    %1236 = vmatpush2.msra.mxu0 0.0
    %1237 = vmatprep.subr.mxu0 0.0
    %1238 = vmatpush2.msra.mxu0 0.0
    %1239 = vmatprep.subr.mxu0 0.0
    %1240 = vmatpush2.msra.mxu0 0.0
    %1241 = vmatprep.mubr.f32.mxu0 0.0
    %1242 = vmatmul.mubr.f32.gmra.mxu0 %v1175
    %v1243 = vpop.f32.mrf.mxu0
    %v1244 = vadd.f32 0.0, %v1243
    %v1245 = vpop.f32.mrf.mxu0
    %v1246 = vadd.f32 0.0, %v1245
    %1247 = vdwg.mxu0
    %v1248 = vadd.f32 %v984, %v1244
    %v1249 = vxor.u32 %v1248, 2147483648
    %v1250 = vmul.f32 %v1249, 1.442695
    %v1251 = vpow.pop %v1250
    %v1252 = vadd.f32 %v1251, 1.0
    %v1253 = vrcp.pop %v1252
    %v1254 = vmul.f32 1.0, %v1253
    %v1255 = vadd.f32 %v1246, %v1155
    %v1256 = vmul.f32 %v1254, %v1255
    %v1257 = vadd.f32 %v986, %v1256
    %v1258 = vtanh.pop %v1257
    %v1259 = vsub.f32 1.0, %v1254
    %1261 = vrot.lane.b32.xlu0 %v1258, 64
    %v1262 = vpop.permute.xlu0 %1261
    %v1264 = vmul.f32 %v1259, %v1262
    %1265 = vrot.lane.b32.xlu0 %v1173, 64
    %v1266 = vpop.permute.xlu0 %1265
    %v1268 = vmul.f32 %v1254, %v1266
    %v1269 = vadd.f32 %v1264, %v1268
    %1271 = vrot.lane.b32.xlu0 %v1269, 64
    %v1272 = vpop.permute.xlu0 %1271
    %v1274 = vsel %vm1056, %v1272, %v1173
    %v1275 = vsel %vm1056, %v1272, 0.0
    %v1277 = vsel %vm1069, %v1274, 0
    %1279 = vmatprep.subr.mxu0 0.0
    %1280 = vmatpush1.msra.mxu0 0.0
    %1281 = vmatprep.subr.mxu0 0.0
    %1282 = vmatpush1.msra.mxu0 0.0
    %1283 = vmatprep.subr.mxu0 0.0
    %1284 = vmatpush1.msra.mxu0 0.0
    %1285 = vmatprep.subr.mxu0 0.0
    %1286 = vmatpush1.msra.mxu0 0.0
    %1287 = vmatprep.subr.mxu0 0.0
    %1288 = vmatpush1.msra.mxu0 0.0
    %1289 = vmatprep.subr.mxu0 0.0
    %1290 = vmatpush1.msra.mxu0 0.0
    %1291 = vmatprep.subr.mxu0 0.0
    %1292 = vmatpush1.msra.mxu0 0.0
    %1293 = vmatprep.subr.mxu0 0.0
    %1294 = vmatpush1.msra.mxu0 0.0
    %1295 = vmatprep.subr.mxu0 %v1045
    %1296 = vmatpush1.msra.mxu0 %v1044
    %1297 = vmatprep.subr.mxu0 %v1043
    %1298 = vmatpush1.msra.mxu0 %v1042
    %1299 = vmatprep.subr.mxu0 %v1041
    %1300 = vmatpush1.msra.mxu0 %v1040
    %1301 = vmatprep.subr.mxu0 %v1039
    %1302 = vmatpush1.msra.mxu0 %v1038
    %1303 = vmatprep.subr.mxu0 %v1037
    %1304 = vmatpush1.msra.mxu0 %v1036
    %1305 = vmatprep.subr.mxu0 %v1035
    %1306 = vmatpush1.msra.mxu0 %v1034
    %1307 = vmatprep.subr.mxu0 %v1033
    %1308 = vmatpush1.msra.mxu0 %v1032
    %1309 = vmatprep.subr.mxu0 %v1031
    %1310 = vmatpush1.msra.mxu0 %v1030
    %1311 = vmatprep.subr.mxu0 0.0
    %1312 = vmatpush2.msra.mxu0 0.0
    %1313 = vmatprep.subr.mxu0 0.0
    %1314 = vmatpush2.msra.mxu0 0.0
    %1315 = vmatprep.subr.mxu0 0.0
    %1316 = vmatpush2.msra.mxu0 0.0
    %1317 = vmatprep.subr.mxu0 0.0
    %1318 = vmatpush2.msra.mxu0 0.0
    %1319 = vmatprep.subr.mxu0 0.0
    %1320 = vmatpush2.msra.mxu0 0.0
    %1321 = vmatprep.subr.mxu0 0.0
    %1322 = vmatpush2.msra.mxu0 0.0
    %1323 = vmatprep.subr.mxu0 0.0
    %1324 = vmatpush2.msra.mxu0 0.0
    %1325 = vmatprep.subr.mxu0 0.0
    %1326 = vmatpush2.msra.mxu0 0.0
    %1327 = vmatprep.subr.mxu0 0.0
    %1328 = vmatpush2.msra.mxu0 0.0
    %1329 = vmatprep.subr.mxu0 0.0
    %1330 = vmatpush2.msra.mxu0 0.0
    %1331 = vmatprep.subr.mxu0 0.0
    %1332 = vmatpush2.msra.mxu0 0.0
    %1333 = vmatprep.subr.mxu0 0.0
    %1334 = vmatpush2.msra.mxu0 0.0
    %1335 = vmatprep.subr.mxu0 0.0
    %1336 = vmatpush2.msra.mxu0 0.0
    %1337 = vmatprep.subr.mxu0 0.0
    %1338 = vmatpush2.msra.mxu0 0.0
    %1339 = vmatprep.subr.mxu0 0.0
    %1340 = vmatpush2.msra.mxu0 0.0
    %1341 = vmatprep.subr.mxu0 0.0
    %1342 = vmatpush2.msra.mxu0 0.0
    %1343 = vmatprep.mubr.f32.mxu0 0.0
    %1344 = vmatmul.mubr.f32.gmra.mxu0 %v1277
    %v1345 = vpop.f32.mrf.mxu0
    %v1346 = vadd.f32 0.0, %v1345
    %v1347 = vpop.f32.mrf.mxu0
    %v1348 = vadd.f32 0.0, %v1347
    %1349 = vdwg.mxu0
    %v1350 = vadd.f32 %v991, %v1346
    %v1351 = vxor.u32 %v1350, 2147483648
    %v1352 = vmul.f32 %v1351, 1.442695
    %v1353 = vpow.pop %v1352
    %v1354 = vadd.f32 %v1353, 1.0
    %v1355 = vrcp.pop %v1354
    %v1356 = vmul.f32 1.0, %v1355
    %v1357 = vadd.f32 %v1348, %v1155
    %v1358 = vmul.f32 %v1356, %v1357
    %v1359 = vadd.f32 %v993, %v1358
    %v1360 = vtanh.pop %v1359
    %v1361 = vsub.f32 1.0, %v1356
    %1363 = vrot.lane.b32.xlu0 %v1360, 64
    %v1364 = vpop.permute.xlu0 %1363
    %v1366 = vmul.f32 %v1361, %v1364
    %1367 = vrot.lane.b32.xlu0 %v1274, 64
    %v1368 = vpop.permute.xlu0 %1367
    %v1370 = vmul.f32 %v1356, %v1368
    %v1371 = vadd.f32 %v1366, %v1370
    %1373 = vrot.lane.b32.xlu0 %v1371, 64
    %v1374 = vpop.permute.xlu0 %1373
    %v1376 = vsel %vm1058, %v1374, %v1274
    %v1377 = vsel %vm1058, %v1374, 0.0
    %v1379 = vsel %vm1069, %v1376, 0
    %1381 = vmatprep.subr.mxu0 0.0
    %1382 = vmatpush1.msra.mxu0 0.0
    %1383 = vmatprep.subr.mxu0 0.0
    %1384 = vmatpush1.msra.mxu0 0.0
    %1385 = vmatprep.subr.mxu0 0.0
    %1386 = vmatpush1.msra.mxu0 0.0
    %1387 = vmatprep.subr.mxu0 0.0
    %1388 = vmatpush1.msra.mxu0 0.0
    %1389 = vmatprep.subr.mxu0 0.0
    %1390 = vmatpush1.msra.mxu0 0.0
    %1391 = vmatprep.subr.mxu0 0.0
    %1392 = vmatpush1.msra.mxu0 0.0
    %1393 = vmatprep.subr.mxu0 0.0
    %1394 = vmatpush1.msra.mxu0 0.0
    %1395 = vmatprep.subr.mxu0 0.0
    %1396 = vmatpush1.msra.mxu0 0.0
    %1397 = vmatprep.subr.mxu0 %v1045
    %1398 = vmatpush1.msra.mxu0 %v1044
    %1399 = vmatprep.subr.mxu0 %v1043
    %1400 = vmatpush1.msra.mxu0 %v1042
    %1401 = vmatprep.subr.mxu0 %v1041
    %1402 = vmatpush1.msra.mxu0 %v1040
    %1403 = vmatprep.subr.mxu0 %v1039
    %1404 = vmatpush1.msra.mxu0 %v1038
    %1405 = vmatprep.subr.mxu0 %v1037
    %1406 = vmatpush1.msra.mxu0 %v1036
    %1407 = vmatprep.subr.mxu0 %v1035
    %1408 = vmatpush1.msra.mxu0 %v1034
    %1409 = vmatprep.subr.mxu0 %v1033
    %1410 = vmatpush1.msra.mxu0 %v1032
    %1411 = vmatprep.subr.mxu0 %v1031
    %1412 = vmatpush1.msra.mxu0 %v1030
    %1413 = vmatprep.subr.mxu0 0.0
    %1414 = vmatpush2.msra.mxu0 0.0
    %1415 = vmatprep.subr.mxu0 0.0
    %1416 = vmatpush2.msra.mxu0 0.0
    %1417 = vmatprep.subr.mxu0 0.0
    %1418 = vmatpush2.msra.mxu0 0.0
    %1419 = vmatprep.subr.mxu0 0.0
    %1420 = vmatpush2.msra.mxu0 0.0
    %1421 = vmatprep.subr.mxu0 0.0
    %1422 = vmatpush2.msra.mxu0 0.0
    %1423 = vmatprep.subr.mxu0 0.0
    %1424 = vmatpush2.msra.mxu0 0.0
    %1425 = vmatprep.subr.mxu0 0.0
    %1426 = vmatpush2.msra.mxu0 0.0
    %1427 = vmatprep.subr.mxu0 0.0
    %1428 = vmatpush2.msra.mxu0 0.0
    %1429 = vmatprep.subr.mxu0 0.0
    %1430 = vmatpush2.msra.mxu0 0.0
    %1431 = vmatprep.subr.mxu0 0.0
    %1432 = vmatpush2.msra.mxu0 0.0
    %1433 = vmatprep.subr.mxu0 0.0
    %1434 = vmatpush2.msra.mxu0 0.0
    %1435 = vmatprep.subr.mxu0 0.0
    %1436 = vmatpush2.msra.mxu0 0.0
    %1437 = vmatprep.subr.mxu0 0.0
    %1438 = vmatpush2.msra.mxu0 0.0
    %1439 = vmatprep.subr.mxu0 0.0
    %1440 = vmatpush2.msra.mxu0 0.0
    %1441 = vmatprep.subr.mxu0 0.0
    %1442 = vmatpush2.msra.mxu0 0.0
    %1443 = vmatprep.subr.mxu0 0.0
    %1444 = vmatpush2.msra.mxu0 0.0
    %1445 = vmatprep.mubr.f32.mxu0 0.0
    %1446 = vmatmul.mubr.f32.gmra.mxu0 %v1379
    %v1447 = vpop.f32.mrf.mxu0
    %v1448 = vadd.f32 0.0, %v1447
    %v1449 = vpop.f32.mrf.mxu0
    %v1450 = vadd.f32 0.0, %v1449
    %1451 = vdwg.mxu0
    %v1452 = vadd.f32 %v998, %v1448
    %v1453 = vxor.u32 %v1452, 2147483648
    %v1454 = vmul.f32 %v1453, 1.442695
    %v1455 = vpow.pop %v1454
    %v1456 = vadd.f32 %v1455, 1.0
    %v1457 = vrcp.pop %v1456
    %v1458 = vmul.f32 1.0, %v1457
    %v1459 = vadd.f32 %v1450, %v1155
    %v1460 = vmul.f32 %v1458, %v1459
    %v1461 = vadd.f32 %v1000, %v1460
    %v1462 = vtanh.pop %v1461
    %v1463 = vsub.f32 1.0, %v1458
    %1465 = vrot.lane.b32.xlu0 %v1462, 64
    %v1466 = vpop.permute.xlu0 %1465
    %v1468 = vmul.f32 %v1463, %v1466
    %1469 = vrot.lane.b32.xlu0 %v1376, 64
    %v1470 = vpop.permute.xlu0 %1469
    %v1472 = vmul.f32 %v1458, %v1470
    %v1473 = vadd.f32 %v1468, %v1472
    %1475 = vrot.lane.b32.xlu0 %v1473, 64
    %v1476 = vpop.permute.xlu0 %1475
    %v1478 = vsel %vm1060, %v1476, %v1376
    %v1479 = vsel %vm1060, %v1476, 0.0
    %v1481 = vsel %vm1069, %v1478, 0
    %1483 = vmatprep.subr.mxu0 0.0
    %1484 = vmatpush1.msra.mxu0 0.0
    %1485 = vmatprep.subr.mxu0 0.0
    %1486 = vmatpush1.msra.mxu0 0.0
    %1487 = vmatprep.subr.mxu0 0.0
    %1488 = vmatpush1.msra.mxu0 0.0
    %1489 = vmatprep.subr.mxu0 0.0
    %1490 = vmatpush1.msra.mxu0 0.0
    %1491 = vmatprep.subr.mxu0 0.0
    %1492 = vmatpush1.msra.mxu0 0.0
    %1493 = vmatprep.subr.mxu0 0.0
    %1494 = vmatpush1.msra.mxu0 0.0
    %1495 = vmatprep.subr.mxu0 0.0
    %1496 = vmatpush1.msra.mxu0 0.0
    %1497 = vmatprep.subr.mxu0 0.0
    %1498 = vmatpush1.msra.mxu0 0.0
    %1499 = vmatprep.subr.mxu0 %v1045
    %1500 = vmatpush1.msra.mxu0 %v1044
    %1501 = vmatprep.subr.mxu0 %v1043
    %1502 = vmatpush1.msra.mxu0 %v1042
    %1503 = vmatprep.subr.mxu0 %v1041
    %1504 = vmatpush1.msra.mxu0 %v1040
    %1505 = vmatprep.subr.mxu0 %v1039
    %1506 = vmatpush1.msra.mxu0 %v1038
    %1507 = vmatprep.subr.mxu0 %v1037
    %1508 = vmatpush1.msra.mxu0 %v1036
    %1509 = vmatprep.subr.mxu0 %v1035
    %1510 = vmatpush1.msra.mxu0 %v1034
    %1511 = vmatprep.subr.mxu0 %v1033
    %1512 = vmatpush1.msra.mxu0 %v1032
    %1513 = vmatprep.subr.mxu0 %v1031
    %1514 = vmatpush1.msra.mxu0 %v1030
    %1515 = vmatprep.subr.mxu0 0.0
    %1516 = vmatpush2.msra.mxu0 0.0
    %1517 = vmatprep.subr.mxu0 0.0
    %1518 = vmatpush2.msra.mxu0 0.0
    %1519 = vmatprep.subr.mxu0 0.0
    %1520 = vmatpush2.msra.mxu0 0.0
    %1521 = vmatprep.subr.mxu0 0.0
    %1522 = vmatpush2.msra.mxu0 0.0
    %1523 = vmatprep.subr.mxu0 0.0
    %1524 = vmatpush2.msra.mxu0 0.0
    %1525 = vmatprep.subr.mxu0 0.0
    %1526 = vmatpush2.msra.mxu0 0.0
    %1527 = vmatprep.subr.mxu0 0.0
    %1528 = vmatpush2.msra.mxu0 0.0
    %1529 = vmatprep.subr.mxu0 0.0
    %1530 = vmatpush2.msra.mxu0 0.0
    %1531 = vmatprep.subr.mxu0 0.0
    %1532 = vmatpush2.msra.mxu0 0.0
    %1533 = vmatprep.subr.mxu0 0.0
    %1534 = vmatpush2.msra.mxu0 0.0
    %1535 = vmatprep.subr.mxu0 0.0
    %1536 = vmatpush2.msra.mxu0 0.0
    %1537 = vmatprep.subr.mxu0 0.0
    %1538 = vmatpush2.msra.mxu0 0.0
    %1539 = vmatprep.subr.mxu0 0.0
    %1540 = vmatpush2.msra.mxu0 0.0
    %1541 = vmatprep.subr.mxu0 0.0
    %1542 = vmatpush2.msra.mxu0 0.0
    %1543 = vmatprep.subr.mxu0 0.0
    %1544 = vmatpush2.msra.mxu0 0.0
    %1545 = vmatprep.subr.mxu0 0.0
    %1546 = vmatpush2.msra.mxu0 0.0
    %1547 = vmatprep.mubr.f32.mxu0 0.0
    %1548 = vmatmul.mubr.f32.gmra.mxu0 %v1481
    %v1549 = vpop.f32.mrf.mxu0
    %v1550 = vadd.f32 0.0, %v1549
    %v1551 = vpop.f32.mrf.mxu0
    %v1552 = vadd.f32 0.0, %v1551
    %1553 = vdwg.mxu0
    %v1554 = vadd.f32 %v1005, %v1550
    %v1555 = vxor.u32 %v1554, 2147483648
    %v1556 = vmul.f32 %v1555, 1.442695
    %v1557 = vpow.pop %v1556
    %v1558 = vadd.f32 %v1557, 1.0
    %v1559 = vrcp.pop %v1558
    %v1560 = vmul.f32 1.0, %v1559
    %v1561 = vadd.f32 %v1552, %v1155
    %v1562 = vmul.f32 %v1560, %v1561
    %v1563 = vadd.f32 %v1007, %v1562
    %v1564 = vtanh.pop %v1563
    %v1565 = vsub.f32 1.0, %v1560
    %1567 = vrot.lane.b32.xlu0 %v1564, 64
    %v1568 = vpop.permute.xlu0 %1567
    %v1570 = vmul.f32 %v1565, %v1568
    %1571 = vrot.lane.b32.xlu0 %v1478, 64
    %v1572 = vpop.permute.xlu0 %1571
    %v1574 = vmul.f32 %v1560, %v1572
    %v1575 = vadd.f32 %v1570, %v1574
    %1577 = vrot.lane.b32.xlu0 %v1575, 64
    %v1578 = vpop.permute.xlu0 %1577
    %v1580 = vsel %vm1062, %v1578, %v1478
    %v1581 = vsel %vm1062, %v1578, 0.0
    %v1583 = vsel %vm1069, %v1580, 0
    %1585 = vmatprep.subr.mxu0 0.0
    %1586 = vmatpush1.msra.mxu0 0.0
    %1587 = vmatprep.subr.mxu0 0.0
    %1588 = vmatpush1.msra.mxu0 0.0
    %1589 = vmatprep.subr.mxu0 0.0
    %1590 = vmatpush1.msra.mxu0 0.0
    %1591 = vmatprep.subr.mxu0 0.0
    %1592 = vmatpush1.msra.mxu0 0.0
    %1593 = vmatprep.subr.mxu0 0.0
    %1594 = vmatpush1.msra.mxu0 0.0
    %1595 = vmatprep.subr.mxu0 0.0
    %1596 = vmatpush1.msra.mxu0 0.0
    %1597 = vmatprep.subr.mxu0 0.0
    %1598 = vmatpush1.msra.mxu0 0.0
    %1599 = vmatprep.subr.mxu0 0.0
    %1600 = vmatpush1.msra.mxu0 0.0
    %1601 = vmatprep.subr.mxu0 %v1045
    %1602 = vmatpush1.msra.mxu0 %v1044
    %1603 = vmatprep.subr.mxu0 %v1043
    %1604 = vmatpush1.msra.mxu0 %v1042
    %1605 = vmatprep.subr.mxu0 %v1041
    %1606 = vmatpush1.msra.mxu0 %v1040
    %1607 = vmatprep.subr.mxu0 %v1039
    %1608 = vmatpush1.msra.mxu0 %v1038
    %1609 = vmatprep.subr.mxu0 %v1037
    %1610 = vmatpush1.msra.mxu0 %v1036
    %1611 = vmatprep.subr.mxu0 %v1035
    %1612 = vmatpush1.msra.mxu0 %v1034
    %1613 = vmatprep.subr.mxu0 %v1033
    %1614 = vmatpush1.msra.mxu0 %v1032
    %1615 = vmatprep.subr.mxu0 %v1031
    %1616 = vmatpush1.msra.mxu0 %v1030
    %1617 = vmatprep.subr.mxu0 0.0
    %1618 = vmatpush2.msra.mxu0 0.0
    %1619 = vmatprep.subr.mxu0 0.0
    %1620 = vmatpush2.msra.mxu0 0.0
    %1621 = vmatprep.subr.mxu0 0.0
    %1622 = vmatpush2.msra.mxu0 0.0
    %1623 = vmatprep.subr.mxu0 0.0
    %1624 = vmatpush2.msra.mxu0 0.0
    %1625 = vmatprep.subr.mxu0 0.0
    %1626 = vmatpush2.msra.mxu0 0.0
    %1627 = vmatprep.subr.mxu0 0.0
    %1628 = vmatpush2.msra.mxu0 0.0
    %1629 = vmatprep.subr.mxu0 0.0
    %1630 = vmatpush2.msra.mxu0 0.0
    %1631 = vmatprep.subr.mxu0 0.0
    %1632 = vmatpush2.msra.mxu0 0.0
    %1633 = vmatprep.subr.mxu0 0.0
    %1634 = vmatpush2.msra.mxu0 0.0
    %1635 = vmatprep.subr.mxu0 0.0
    %1636 = vmatpush2.msra.mxu0 0.0
    %1637 = vmatprep.subr.mxu0 0.0
    %1638 = vmatpush2.msra.mxu0 0.0
    %1639 = vmatprep.subr.mxu0 0.0
    %1640 = vmatpush2.msra.mxu0 0.0
    %1641 = vmatprep.subr.mxu0 0.0
    %1642 = vmatpush2.msra.mxu0 0.0
    %1643 = vmatprep.subr.mxu0 0.0
    %1644 = vmatpush2.msra.mxu0 0.0
    %1645 = vmatprep.subr.mxu0 0.0
    %1646 = vmatpush2.msra.mxu0 0.0
    %1647 = vmatprep.subr.mxu0 0.0
    %1648 = vmatpush2.msra.mxu0 0.0
    %1649 = vmatprep.mubr.f32.mxu0 0.0
    %1650 = vmatmul.mubr.f32.gmra.mxu0 %v1583
    %v1651 = vpop.f32.mrf.mxu0
    %v1652 = vadd.f32 0.0, %v1651
    %v1653 = vpop.f32.mrf.mxu0
    %v1654 = vadd.f32 0.0, %v1653
    %1655 = vdwg.mxu0
    %v1656 = vadd.f32 %v1012, %v1652
    %v1657 = vxor.u32 %v1656, 2147483648
    %v1658 = vmul.f32 %v1657, 1.442695
    %v1659 = vpow.pop %v1658
    %v1660 = vadd.f32 %v1659, 1.0
    %v1661 = vrcp.pop %v1660
    %v1662 = vmul.f32 1.0, %v1661
    %v1663 = vadd.f32 %v1654, %v1155
    %v1664 = vmul.f32 %v1662, %v1663
    %v1665 = vadd.f32 %v1014, %v1664
    %v1666 = vtanh.pop %v1665
    %v1667 = vsub.f32 1.0, %v1662
    %1669 = vrot.lane.b32.xlu0 %v1666, 64
    %v1670 = vpop.permute.xlu0 %1669
    %v1672 = vmul.f32 %v1667, %v1670
    %1673 = vrot.lane.b32.xlu0 %v1580, 64
    %v1674 = vpop.permute.xlu0 %1673
    %v1676 = vmul.f32 %v1662, %v1674
    %v1677 = vadd.f32 %v1672, %v1676
    %1679 = vrot.lane.b32.xlu0 %v1677, 64
    %v1680 = vpop.permute.xlu0 %1679
    %v1682 = vsel %vm1064, %v1680, %v1580
    %v1683 = vsel %vm1064, %v1680, 0.0
    %v1685 = vsel %vm1069, %v1682, 0
    %1687 = vmatprep.subr.mxu0 0.0
    %1688 = vmatpush1.msra.mxu0 0.0
    %1689 = vmatprep.subr.mxu0 0.0
    %1690 = vmatpush1.msra.mxu0 0.0
    %1691 = vmatprep.subr.mxu0 0.0
    %1692 = vmatpush1.msra.mxu0 0.0
    %1693 = vmatprep.subr.mxu0 0.0
    %1694 = vmatpush1.msra.mxu0 0.0
    %1695 = vmatprep.subr.mxu0 0.0
    %1696 = vmatpush1.msra.mxu0 0.0
    %1697 = vmatprep.subr.mxu0 0.0
    %1698 = vmatpush1.msra.mxu0 0.0
    %1699 = vmatprep.subr.mxu0 0.0
    %1700 = vmatpush1.msra.mxu0 0.0
    %1701 = vmatprep.subr.mxu0 0.0
    %1702 = vmatpush1.msra.mxu0 0.0
    %1703 = vmatprep.subr.mxu0 %v1045
    %1704 = vmatpush1.msra.mxu0 %v1044
    %1705 = vmatprep.subr.mxu0 %v1043
    %1706 = vmatpush1.msra.mxu0 %v1042
    %1707 = vmatprep.subr.mxu0 %v1041
    %1708 = vmatpush1.msra.mxu0 %v1040
    %1709 = vmatprep.subr.mxu0 %v1039
    %1710 = vmatpush1.msra.mxu0 %v1038
    %1711 = vmatprep.subr.mxu0 %v1037
    %1712 = vmatpush1.msra.mxu0 %v1036
    %1713 = vmatprep.subr.mxu0 %v1035
    %1714 = vmatpush1.msra.mxu0 %v1034
    %1715 = vmatprep.subr.mxu0 %v1033
    %1716 = vmatpush1.msra.mxu0 %v1032
    %1717 = vmatprep.subr.mxu0 %v1031
    %1718 = vmatpush1.msra.mxu0 %v1030
    %1719 = vmatprep.subr.mxu0 0.0
    %1720 = vmatpush2.msra.mxu0 0.0
    %1721 = vmatprep.subr.mxu0 0.0
    %1722 = vmatpush2.msra.mxu0 0.0
    %1723 = vmatprep.subr.mxu0 0.0
    %1724 = vmatpush2.msra.mxu0 0.0
    %1725 = vmatprep.subr.mxu0 0.0
    %1726 = vmatpush2.msra.mxu0 0.0
    %1727 = vmatprep.subr.mxu0 0.0
    %1728 = vmatpush2.msra.mxu0 0.0
    %1729 = vmatprep.subr.mxu0 0.0
    %1730 = vmatpush2.msra.mxu0 0.0
    %1731 = vmatprep.subr.mxu0 0.0
    %1732 = vmatpush2.msra.mxu0 0.0
    %1733 = vmatprep.subr.mxu0 0.0
    %1734 = vmatpush2.msra.mxu0 0.0
    %1735 = vmatprep.subr.mxu0 0.0
    %1736 = vmatpush2.msra.mxu0 0.0
    %1737 = vmatprep.subr.mxu0 0.0
    %1738 = vmatpush2.msra.mxu0 0.0
    %1739 = vmatprep.subr.mxu0 0.0
    %1740 = vmatpush2.msra.mxu0 0.0
    %1741 = vmatprep.subr.mxu0 0.0
    %1742 = vmatpush2.msra.mxu0 0.0
    %1743 = vmatprep.subr.mxu0 0.0
    %1744 = vmatpush2.msra.mxu0 0.0
    %1745 = vmatprep.subr.mxu0 0.0
    %1746 = vmatpush2.msra.mxu0 0.0
    %1747 = vmatprep.subr.mxu0 0.0
    %1748 = vmatpush2.msra.mxu0 0.0
    %1749 = vmatprep.subr.mxu0 0.0
    %1750 = vmatpush2.msra.mxu0 0.0
    %1751 = vmatprep.mubr.f32.mxu0 0.0
    %1752 = vmatmul.mubr.f32.gmra.mxu0 %v1685
    %v1753 = vpop.f32.mrf.mxu0
    %v1754 = vadd.f32 0.0, %v1753
    %v1755 = vpop.f32.mrf.mxu0
    %v1756 = vadd.f32 0.0, %v1755
    %1757 = vdwg.mxu0
    %v1758 = vadd.f32 %v1019, %v1754
    %v1759 = vxor.u32 %v1758, 2147483648
    %v1760 = vmul.f32 %v1759, 1.442695
    %v1761 = vpow.pop %v1760
    %v1762 = vadd.f32 %v1761, 1.0
    %v1763 = vrcp.pop %v1762
    %v1764 = vmul.f32 1.0, %v1763
    %v1765 = vadd.f32 %v1756, %v1155
    %v1766 = vmul.f32 %v1764, %v1765
    %v1767 = vadd.f32 %v1021, %v1766
    %v1768 = vtanh.pop %v1767
    %v1769 = vsub.f32 1.0, %v1764
    %1771 = vrot.lane.b32.xlu0 %v1768, 64
    %v1772 = vpop.permute.xlu0 %1771
    %v1774 = vmul.f32 %v1769, %v1772
    %1775 = vrot.lane.b32.xlu0 %v1682, 64
    %v1776 = vpop.permute.xlu0 %1775
    %v1778 = vmul.f32 %v1764, %v1776
    %v1779 = vadd.f32 %v1774, %v1778
    %1781 = vrot.lane.b32.xlu0 %v1779, 64
    %v1782 = vpop.permute.xlu0 %1781
    %v1784 = vsel %vm1066, %v1782, %v1682
    %v1785 = vsel %vm1066, %v1782, 0.0
    %v1787 = vsel %vm1069, %v1784, 0
    %1789 = vmatprep.subr.mxu0 0.0
    %1790 = vmatpush1.msra.mxu0 0.0
    %1791 = vmatprep.subr.mxu0 0.0
    %1792 = vmatpush1.msra.mxu0 0.0
    %1793 = vmatprep.subr.mxu0 0.0
    %1794 = vmatpush1.msra.mxu0 0.0
    %1795 = vmatprep.subr.mxu0 0.0
    %1796 = vmatpush1.msra.mxu0 0.0
    %1797 = vmatprep.subr.mxu0 0.0
    %1798 = vmatpush1.msra.mxu0 0.0
    %1799 = vmatprep.subr.mxu0 0.0
    %1800 = vmatpush1.msra.mxu0 0.0
    %1801 = vmatprep.subr.mxu0 0.0
    %1802 = vmatpush1.msra.mxu0 0.0
    %1803 = vmatprep.subr.mxu0 0.0
    %1804 = vmatpush1.msra.mxu0 0.0
    %1805 = vmatprep.subr.mxu0 %v1045
    %1806 = vmatpush1.msra.mxu0 %v1044
    %1807 = vmatprep.subr.mxu0 %v1043
    %1808 = vmatpush1.msra.mxu0 %v1042
    %1809 = vmatprep.subr.mxu0 %v1041
    %1810 = vmatpush1.msra.mxu0 %v1040
    %1811 = vmatprep.subr.mxu0 %v1039
    %1812 = vmatpush1.msra.mxu0 %v1038
    %1813 = vmatprep.subr.mxu0 %v1037
    %1814 = vmatpush1.msra.mxu0 %v1036
    %1815 = vmatprep.subr.mxu0 %v1035
    %1816 = vmatpush1.msra.mxu0 %v1034
    %1817 = vmatprep.subr.mxu0 %v1033
    %1818 = vmatpush1.msra.mxu0 %v1032
    %1819 = vmatprep.subr.mxu0 %v1031
    %1820 = vmatpush1.msra.mxu0 %v1030
    %1821 = vmatprep.subr.mxu0 0.0
    %1822 = vmatpush2.msra.mxu0 0.0
    %1823 = vmatprep.subr.mxu0 0.0
    %1824 = vmatpush2.msra.mxu0 0.0
    %1825 = vmatprep.subr.mxu0 0.0
    %1826 = vmatpush2.msra.mxu0 0.0
    %1827 = vmatprep.subr.mxu0 0.0
    %1828 = vmatpush2.msra.mxu0 0.0
    %1829 = vmatprep.subr.mxu0 0.0
    %1830 = vmatpush2.msra.mxu0 0.0
    %1831 = vmatprep.subr.mxu0 0.0
    %1832 = vmatpush2.msra.mxu0 0.0
    %1833 = vmatprep.subr.mxu0 0.0
    %1834 = vmatpush2.msra.mxu0 0.0
    %1835 = vmatprep.subr.mxu0 0.0
    %1836 = vmatpush2.msra.mxu0 0.0
    %1837 = vmatprep.subr.mxu0 0.0
    %1838 = vmatpush2.msra.mxu0 0.0
    %1839 = vmatprep.subr.mxu0 0.0
    %1840 = vmatpush2.msra.mxu0 0.0
    %1841 = vmatprep.subr.mxu0 0.0
    %1842 = vmatpush2.msra.mxu0 0.0
    %1843 = vmatprep.subr.mxu0 0.0
    %1844 = vmatpush2.msra.mxu0 0.0
    %1845 = vmatprep.subr.mxu0 0.0
    %1846 = vmatpush2.msra.mxu0 0.0
    %1847 = vmatprep.subr.mxu0 0.0
    %1848 = vmatpush2.msra.mxu0 0.0
    %1849 = vmatprep.subr.mxu0 0.0
    %1850 = vmatpush2.msra.mxu0 0.0
    %1851 = vmatprep.subr.mxu0 0.0
    %1852 = vmatpush2.msra.mxu0 0.0
    %1853 = vmatprep.mubr.f32.mxu0 0.0
    %1854 = vmatmul.mubr.f32.gmra.mxu0 %v1787
    %v1855 = vpop.f32.mrf.mxu0
    %v1856 = vadd.f32 0.0, %v1855
    %v1857 = vpop.f32.mrf.mxu0
    %v1858 = vadd.f32 0.0, %v1857
    %1859 = vdwg.mxu0
    %v1860 = vadd.f32 %v1026, %v1856
    %v1861 = vxor.u32 %v1860, 2147483648
    %v1862 = vmul.f32 %v1861, 1.442695
    %v1863 = vpow.pop %v1862
    %v1864 = vadd.f32 %v1863, 1.0
    %v1865 = vrcp.pop %v1864
    %v1866 = vmul.f32 1.0, %v1865
    %v1867 = vadd.f32 %v1858, %v1155
    %v1868 = vmul.f32 %v1866, %v1867
    %v1869 = vadd.f32 %v1028, %v1868
    %v1870 = vtanh.pop %v1869
    %v1871 = vsub.f32 1.0, %v1866
    %1873 = vrot.lane.b32.xlu0 %v1870, 64
    %v1874 = vpop.permute.xlu0 %1873
    %v1876 = vmul.f32 %v1871, %v1874
    %1877 = vrot.lane.b32.xlu0 %v1784, 64
    %v1878 = vpop.permute.xlu0 %1877
    %v1880 = vmul.f32 %v1866, %v1878
    %v1881 = vadd.f32 %v1876, %v1880
    %1883 = vrot.lane.b32.xlu0 %v1881, 64
    %v1884 = vpop.permute.xlu0 %1883
    %v1886 = vsel %vm1068, %v1884, 0.0
    %v1887 = vld [vmem:[#allocation8] sm:$0xff]
    %v1888 = vld [vmem:[#allocation8 + $0x8] sm:$0xff]
    %v1889 = vld [vmem:[#allocation8 + $0x10] sm:$0xff]
    %v1890 = vld [vmem:[#allocation8 + $0x18] sm:$0xff]
    %v1891 = vld [vmem:[#allocation8 + $0x20] sm:$0xff]
    %v1892 = vld [vmem:[#allocation8 + $0x28] sm:$0xff]
    %v1893 = vld [vmem:[#allocation8 + $0x30] sm:$0xff]
    %v1894 = vld [vmem:[#allocation8 + $0x38] sm:$0xff]
    %1902 = vrot.lane.b32.xlu0 %v1886, 96
    %v1903 = vpop.permute.xlu0 %1902
    %1904 = vrot.lane.b32.xlu0 %v1785, 96
    %v1905 = vpop.permute.xlu0 %1904
    %1906 = vrot.lane.b32.xlu0 %v1683, 96
    %v1907 = vpop.permute.xlu0 %1906
    %1908 = vrot.lane.b32.xlu0 %v1581, 96
    %v1909 = vpop.permute.xlu0 %1908
    %1910 = vrot.lane.b32.xlu0 %v1479, 96
    %v1911 = vpop.permute.xlu0 %1910
    %1912 = vrot.lane.b32.xlu0 %v1377, 96
    %v1913 = vpop.permute.xlu0 %1912
    %1914 = vrot.lane.b32.xlu0 %v1275, 96
    %v1915 = vpop.permute.xlu0 %1914
    %1916 = vrot.lane.b32.xlu0 %v1173, 96
    %v1917 = vpop.permute.xlu0 %1916
    %v1918 = vsel %vm119, %v1903, 0
    %v1920 = vsel %vm119, %v1905, 0
    %v1922 = vsel %vm119, %v1907, 0
    %v1924 = vsel %vm119, %v1909, 0
    %v1926 = vsel %vm119, %v1911, 0
    %v1928 = vsel %vm119, %v1913, 0
    %v1930 = vsel %vm119, %v1915, 0
    %v1932 = vsel %vm119, %v1917, 0
    %1934 = vmatprep.subr.mxu0 0.0
    %1935 = vmatpush1.msra.mxu0 0.0
    %1936 = vmatprep.subr.mxu0 0.0
    %1937 = vmatpush1.msra.mxu0 0.0
    %1938 = vmatprep.subr.mxu0 0.0
    %1939 = vmatpush1.msra.mxu0 0.0
    %1940 = vmatprep.subr.mxu0 0.0
    %1941 = vmatpush1.msra.mxu0 0.0
    %1942 = vmatprep.subr.mxu0 0.0
    %1943 = vmatpush1.msra.mxu0 0.0
    %1944 = vmatprep.subr.mxu0 0.0
    %1945 = vmatpush1.msra.mxu0 0.0
    %1946 = vmatprep.subr.mxu0 0.0
    %1947 = vmatpush1.msra.mxu0 0.0
    %1948 = vmatprep.subr.mxu0 0.0
    %1949 = vmatpush1.msra.mxu0 0.0
    %1950 = vmatprep.subr.mxu0 0.0
    %1951 = vmatpush1.msra.mxu0 0.0
    %1952 = vmatprep.subr.mxu0 0.0
    %1953 = vmatpush1.msra.mxu0 0.0
    %1954 = vmatprep.subr.mxu0 0.0
    %1955 = vmatpush1.msra.mxu0 0.0
    %1956 = vmatprep.subr.mxu0 0.0
    %1957 = vmatpush1.msra.mxu0 0.0
    %1958 = vmatprep.subr.mxu0 0.0
    %1959 = vmatpush1.msra.mxu0 %v1894
    %1960 = vmatprep.subr.mxu0 0.0
    %1961 = vmatpush1.msra.mxu0 %v1893
    %1962 = vmatprep.subr.mxu0 0.0
    %1963 = vmatpush1.msra.mxu0 %v1892
    %1964 = vmatprep.subr.mxu0 0.0
    %1965 = vmatpush1.msra.mxu0 %v1891
    %1966 = vmatprep.subr.mxu0 0.0
    %1967 = vmatpush2.msra.mxu0 0.0
    %1968 = vmatprep.subr.mxu0 0.0
    %1969 = vmatpush2.msra.mxu0 0.0
    %1970 = vmatprep.subr.mxu0 0.0
    %1971 = vmatpush2.msra.mxu0 0.0
    %1972 = vmatprep.subr.mxu0 0.0
    %1973 = vmatpush2.msra.mxu0 0.0
    %1974 = vmatprep.subr.mxu0 0.0
    %1975 = vmatpush2.msra.mxu0 0.0
    %1976 = vmatprep.subr.mxu0 0.0
    %1977 = vmatpush2.msra.mxu0 0.0
    %1978 = vmatprep.subr.mxu0 0.0
    %1979 = vmatpush2.msra.mxu0 0.0
    %1980 = vmatprep.subr.mxu0 0.0
    %1981 = vmatpush2.msra.mxu0 0.0
    %1982 = vmatprep.subr.mxu0 0.0
    %1983 = vmatpush2.msra.mxu0 0.0
    %1984 = vmatprep.subr.mxu0 0.0
    %1985 = vmatpush2.msra.mxu0 0.0
    %1986 = vmatprep.subr.mxu0 0.0
    %1987 = vmatpush2.msra.mxu0 0.0
    %1988 = vmatprep.subr.mxu0 0.0
    %1989 = vmatpush2.msra.mxu0 0.0
    %1990 = vmatprep.subr.mxu0 0.0
    %1991 = vmatpush2.msra.mxu0 0.0
    %1992 = vmatprep.subr.mxu0 0.0
    %1993 = vmatpush2.msra.mxu0 0.0
    %1994 = vmatprep.subr.mxu0 0.0
    %1995 = vmatpush2.msra.mxu0 0.0
    %1996 = vmatprep.subr.mxu0 0.0
    %1997 = vmatpush2.msra.mxu0 0.0
    %1998 = vmatprep.mubr.f32.mxu0 0.0
    %1999 = vmatmul.mubr.f32.gmra.mxu0 %v1918
    %v2000 = vpop.f32.mrf.mxu0
    %v2001 = vadd.f32 0.0, %v2000
    %v2002 = vpop.f32.mrf.mxu0
    %2003 = vmatprep.mubr.f32.mxu0 0.0
    %2004 = vmatmul.mubr.f32.gmra.mxu0 %v1920
    %v2005 = vpop.f32.mrf.mxu0
    %v2006 = vadd.f32 0.0, %v2005
    %v2007 = vpop.f32.mrf.mxu0
    %2008 = vmatprep.mubr.f32.mxu0 0.0
    %2009 = vmatmul.mubr.f32.gmra.mxu0 %v1922
    %v2010 = vpop.f32.mrf.mxu0
    %v2011 = vadd.f32 0.0, %v2010
    %v2012 = vpop.f32.mrf.mxu0
    %2013 = vmatprep.mubr.f32.mxu0 0.0
    %2014 = vmatmul.mubr.f32.gmra.mxu0 %v1924
    %v2015 = vpop.f32.mrf.mxu0
    %v2016 = vadd.f32 0.0, %v2015
    %v2017 = vpop.f32.mrf.mxu0
    %2018 = vmatprep.mubr.f32.mxu0 0.0
    %2019 = vmatmul.mubr.f32.gmra.mxu0 %v1926
    %v2020 = vpop.f32.mrf.mxu0
    %v2021 = vadd.f32 0.0, %v2020
    %v2022 = vpop.f32.mrf.mxu0
    %2023 = vmatprep.mubr.f32.mxu0 0.0
    %2024 = vmatmul.mubr.f32.gmra.mxu0 %v1928
    %v2025 = vpop.f32.mrf.mxu0
    %v2026 = vadd.f32 0.0, %v2025
    %v2027 = vpop.f32.mrf.mxu0
    %2028 = vmatprep.mubr.f32.mxu0 0.0
    %2029 = vmatmul.mubr.f32.gmra.mxu0 %v1930
    %v2030 = vpop.f32.mrf.mxu0
    %v2031 = vadd.f32 0.0, %v2030
    %v2032 = vpop.f32.mrf.mxu0
    %2033 = vmatprep.mubr.f32.mxu0 0.0
    %2034 = vmatmul.mubr.f32.gmra.mxu0 %v1932
    %v2035 = vpop.f32.mrf.mxu0
    %v2036 = vadd.f32 0.0, %v2035
    %v2037 = vpop.f32.mrf.mxu0
    %2038 = vdwg.mxu0
    %v2039 = vsel %vm119, %v1173, 0
    %v2041 = vsel %vm119, %v1275, 0
    %v2043 = vsel %vm119, %v1377, 0
    %v2045 = vsel %vm119, %v1479, 0
    %v2047 = vsel %vm119, %v1581, 0
    %v2049 = vsel %vm119, %v1683, 0
    %v2051 = vsel %vm119, %v1785, 0
    %v2053 = vsel %vm119, %v1886, 0
    %2055 = vmatprep.subr.mxu0 0.0
    %2056 = vmatpush1.msra.mxu0 0.0
    %2057 = vmatprep.subr.mxu0 0.0
    %2058 = vmatpush1.msra.mxu0 0.0
    %2059 = vmatprep.subr.mxu0 0.0
    %2060 = vmatpush1.msra.mxu0 0.0
    %2061 = vmatprep.subr.mxu0 0.0
    %2062 = vmatpush1.msra.mxu0 0.0
    %2063 = vmatprep.subr.mxu0 0.0
    %2064 = vmatpush1.msra.mxu0 0.0
    %2065 = vmatprep.subr.mxu0 0.0
    %2066 = vmatpush1.msra.mxu0 0.0
    %2067 = vmatprep.subr.mxu0 0.0
    %2068 = vmatpush1.msra.mxu0 0.0
    %2069 = vmatprep.subr.mxu0 0.0
    %2070 = vmatpush1.msra.mxu0 0.0
    %2071 = vmatprep.subr.mxu0 0.0
    %2072 = vmatpush1.msra.mxu0 0.0
    %2073 = vmatprep.subr.mxu0 0.0
    %2074 = vmatpush1.msra.mxu0 0.0
    %2075 = vmatprep.subr.mxu0 0.0
    %2076 = vmatpush1.msra.mxu0 0.0
    %2077 = vmatprep.subr.mxu0 0.0
    %2078 = vmatpush1.msra.mxu0 0.0
    %2079 = vmatprep.subr.mxu0 0.0
    %2080 = vmatpush1.msra.mxu0 %v1890
    %2081 = vmatprep.subr.mxu0 0.0
    %2082 = vmatpush1.msra.mxu0 %v1889
    %2083 = vmatprep.subr.mxu0 0.0
    %2084 = vmatpush1.msra.mxu0 %v1888
    %2085 = vmatprep.subr.mxu0 0.0
    %2086 = vmatpush1.msra.mxu0 %v1887
    %2087 = vmatprep.subr.mxu0 0.0
    %2088 = vmatpush2.msra.mxu0 0.0
    %2089 = vmatprep.subr.mxu0 0.0
    %2090 = vmatpush2.msra.mxu0 0.0
    %2091 = vmatprep.subr.mxu0 0.0
    %2092 = vmatpush2.msra.mxu0 0.0
    %2093 = vmatprep.subr.mxu0 0.0
    %2094 = vmatpush2.msra.mxu0 0.0
    %2095 = vmatprep.subr.mxu0 0.0
    %2096 = vmatpush2.msra.mxu0 0.0
    %2097 = vmatprep.subr.mxu0 0.0
    %2098 = vmatpush2.msra.mxu0 0.0
    %2099 = vmatprep.subr.mxu0 0.0
    %2100 = vmatpush2.msra.mxu0 0.0
    %2101 = vmatprep.subr.mxu0 0.0
    %2102 = vmatpush2.msra.mxu0 0.0
    %2103 = vmatprep.subr.mxu0 0.0
    %2104 = vmatpush2.msra.mxu0 0.0
    %2105 = vmatprep.subr.mxu0 0.0
    %2106 = vmatpush2.msra.mxu0 0.0
    %2107 = vmatprep.subr.mxu0 0.0
    %2108 = vmatpush2.msra.mxu0 0.0
    %2109 = vmatprep.subr.mxu0 0.0
    %2110 = vmatpush2.msra.mxu0 0.0
    %2111 = vmatprep.subr.mxu0 0.0
    %2112 = vmatpush2.msra.mxu0 0.0
    %2113 = vmatprep.subr.mxu0 0.0
    %2114 = vmatpush2.msra.mxu0 0.0
    %2115 = vmatprep.subr.mxu0 0.0
    %2116 = vmatpush2.msra.mxu0 0.0
    %2117 = vmatprep.subr.mxu0 0.0
    %2118 = vmatpush2.msra.mxu0 0.0
    %2119 = vmatprep.mubr.f32.mxu0 0.0
    %2120 = vmatmul.mubr.f32.gmra.mxu0 %v2039
    %v2121 = vpop.f32.mrf.mxu0
    %v2122 = vadd.f32 %v2001, %v2121
    %v2123 = vpop.f32.mrf.mxu0
    %2124 = vmatprep.mubr.f32.mxu0 0.0
    %2125 = vmatmul.mubr.f32.gmra.mxu0 %v2041
    %v2126 = vpop.f32.mrf.mxu0
    %v2127 = vadd.f32 %v2006, %v2126
    %v2128 = vpop.f32.mrf.mxu0
    %2129 = vmatprep.mubr.f32.mxu0 0.0
    %2130 = vmatmul.mubr.f32.gmra.mxu0 %v2043
    %v2131 = vpop.f32.mrf.mxu0
    %v2132 = vadd.f32 %v2011, %v2131
    %v2133 = vpop.f32.mrf.mxu0
    %2134 = vmatprep.mubr.f32.mxu0 0.0
    %2135 = vmatmul.mubr.f32.gmra.mxu0 %v2045
    %v2136 = vpop.f32.mrf.mxu0
    %v2137 = vadd.f32 %v2016, %v2136
    %v2138 = vpop.f32.mrf.mxu0
    %2139 = vmatprep.mubr.f32.mxu0 0.0
    %2140 = vmatmul.mubr.f32.gmra.mxu0 %v2047
    %v2141 = vpop.f32.mrf.mxu0
    %v2142 = vadd.f32 %v2021, %v2141
    %v2143 = vpop.f32.mrf.mxu0
    %2144 = vmatprep.mubr.f32.mxu0 0.0
    %2145 = vmatmul.mubr.f32.gmra.mxu0 %v2049
    %v2146 = vpop.f32.mrf.mxu0
    %v2147 = vadd.f32 %v2026, %v2146
    %v2148 = vpop.f32.mrf.mxu0
    %2149 = vmatprep.mubr.f32.mxu0 0.0
    %2150 = vmatmul.mubr.f32.gmra.mxu0 %v2051
    %v2151 = vpop.f32.mrf.mxu0
    %v2152 = vadd.f32 %v2031, %v2151
    %v2153 = vpop.f32.mrf.mxu0
    %2154 = vmatprep.mubr.f32.mxu0 0.0
    %2155 = vmatmul.mubr.f32.gmra.mxu0 %v2053
    %v2156 = vpop.f32.mrf.mxu0
    %v2157 = vadd.f32 %v2036, %v2156
    %v2158 = vpop.f32.mrf.mxu0
    %2159 = vdwg.mxu0
    %v2160 = vld [vmem:[%s7] sm:$0x1]
    %v2162 = vlaneseq
    %v2163 = vshrl.u32 %v2162, 7
    %v2164 = vsub.s32 0, %v2163
    %v2165 = vrot.slane %v2160, %v2164
    %v2167 = vadd.f32 %v2122, %v2165
    %v2168 = vadd.f32 %v2127, %v2165
    %v2169 = vadd.f32 %v2132, %v2165
    %v2170 = vadd.f32 %v2137, %v2165
    %v2171 = vadd.f32 %v2142, %v2165
    %v2172 = vadd.f32 %v2147, %v2165
    %v2173 = vadd.f32 %v2152, %v2165
    %v2174 = vadd.f32 %v2157, %v2165
    %v2175 = vtanh.pop %v2167
    %v2176 = vtanh.pop %v2168
    %v2177 = vtanh.pop %v2169
    %v2178 = vtanh.pop %v2170
    %v2179 = vtanh.pop %v2171
    %v2180 = vtanh.pop %v2172
    %v2181 = vtanh.pop %v2173
    %v2182 = vtanh.pop %v2174
    %v2183 = vld [vmem:[%s8] sm:$0x1]
    %v2185 = vlaneseq
    %v2186 = vshrl.u32 %v2185, 7
    %v2187 = vsub.s32 0, %v2186
    %v2188 = vrot.slane %v2183, %v2187
    %v2190 = vmul.f32 %v2175, %v2188
    %v2191 = vmul.f32 %v2176, %v2188
    %v2192 = vmul.f32 %v2177, %v2188
    %v2193 = vmul.f32 %v2178, %v2188
    %v2194 = vmul.f32 %v2179, %v2188
    %v2195 = vmul.f32 %v2180, %v2188
    %v2196 = vmul.f32 %v2181, %v2188
    %v2197 = vmul.f32 %v2182, %v2188
    %v2198 = vsel %vm1069, %v2190, 0.0
    %2199 = vadd.xlane.f32.xlu0 %v2198
    %v2200 = vpop.xlane.xlu0 %2199
    %v2201 = vsel %vm1069, %v2191, 0.0
    %2202 = vadd.xlane.f32.xlu0 %v2201
    %v2203 = vpop.xlane.xlu0 %2202
    %v2204 = vsel %vm1069, %v2192, 0.0
    %2205 = vadd.xlane.f32.xlu0 %v2204
    %v2206 = vpop.xlane.xlu0 %2205
    %v2207 = vsel %vm1069, %v2193, 0.0
    %2208 = vadd.xlane.f32.xlu0 %v2207
    %v2209 = vpop.xlane.xlu0 %2208
    %v2210 = vsel %vm1069, %v2194, 0.0
    %2211 = vadd.xlane.f32.xlu0 %v2210
    %v2212 = vpop.xlane.xlu0 %2211
    %v2213 = vsel %vm1069, %v2195, 0.0
    %2214 = vadd.xlane.f32.xlu0 %v2213
    %v2215 = vpop.xlane.xlu0 %2214
    %v2216 = vsel %vm1069, %v2196, 0.0
    %2217 = vadd.xlane.f32.xlu0 %v2216
    %v2218 = vpop.xlane.xlu0 %2217
    %v2219 = vsel %vm1069, %v2197, 0.0
    %2220 = vadd.xlane.f32.xlu0 %v2219
    %v2221 = vpop.xlane.xlu0 %2220
    %vm2222 = vcmp.gt.s32.totalorder %v90, 0
    %vm2223 = vcmp.gt.s32.totalorder %v90, 1
    %vm2224 = vcmp.gt.s32.totalorder %v90, 2
    %vm2225 = vcmp.gt.s32.totalorder %v90, 3
    %vm2226 = vcmp.gt.s32.totalorder %v90, 4
    %vm2227 = vcmp.gt.s32.totalorder %v90, 5
    %vm2228 = vcmp.gt.s32.totalorder %v90, 6
    %vm2229 = vcmp.gt.s32.totalorder %v90, 7
    %v2230 = vsel %vm2222, %v2200, -inf
    %v2231 = vsel %vm2223, %v2203, -inf
    %v2232 = vsel %vm2224, %v2206, -inf
    %v2233 = vsel %vm2225, %v2209, -inf
    %v2234 = vsel %vm2226, %v2212, -inf
    %v2235 = vsel %vm2227, %v2215, -inf
    %v2236 = vsel %vm2228, %v2218, -inf
    %v2237 = vsel %vm2229, %v2221, -inf
    %vm2238 = vcmask 7168
    %v2239 = vsel %vm2238, %v2230, -inf
    %v2240 = vsel %vm2238, %v2231, -inf
    %v2241 = vsel %vm2238, %v2232, -inf
    %v2242 = vsel %vm2238, %v2233, -inf
    %v2243 = vsel %vm2238, %v2234, -inf
    %v2244 = vmax.f32 %v2239, %v2243
    %v2245 = vsel %vm2238, %v2235, -inf
    %v2246 = vmax.f32 %v2240, %v2245
    %v2247 = vsel %vm2238, %v2236, -inf
    %v2248 = vmax.f32 %v2241, %v2247
    %v2249 = vsel %vm2238, %v2237, -inf
    %v2250 = vmax.f32 %v2242, %v2249
    %v2251 = vmax.f32 %v2244, %v2246
    %v2252 = vmax.f32 %v2248, %v2250
    %v2253 = vmax.f32 %v2251, %v2252
    %v2254 = vsub.f32 %v2230, %v2253
    %v2255 = vsub.f32 %v2231, %v2253
    %v2256 = vsub.f32 %v2232, %v2253
    %v2257 = vsub.f32 %v2233, %v2253
    %v2258 = vsub.f32 %v2234, %v2253
    %v2259 = vsub.f32 %v2235, %v2253
    %v2260 = vsub.f32 %v2236, %v2253
    %v2261 = vsub.f32 %v2237, %v2253
    %v2262 = vmul.f32 %v2254, 1.442695
    %v2263 = vpow.pop %v2262
    %v2264 = vmul.f32 %v2255, 1.442695
    %v2265 = vpow.pop %v2264
    %v2266 = vmul.f32 %v2256, 1.442695
    %v2267 = vpow.pop %v2266
    %v2268 = vmul.f32 %v2257, 1.442695
    %v2269 = vpow.pop %v2268
    %v2270 = vmul.f32 %v2258, 1.442695
    %v2271 = vpow.pop %v2270
    %v2272 = vmul.f32 %v2259, 1.442695
    %v2273 = vpow.pop %v2272
    %v2274 = vmul.f32 %v2260, 1.442695
    %v2275 = vpow.pop %v2274
    %v2276 = vmul.f32 %v2261, 1.442695
    %v2277 = vpow.pop %v2276
    %v2278 = vsel %vm2238, %v2263, 0.0
    %v2279 = vsel %vm2238, %v2265, 0.0
    %v2280 = vadd.f32 %v2278, %v2279
    %v2281 = vsel %vm2238, %v2267, 0.0
    %v2282 = vadd.f32 %v2280, %v2281
    %v2283 = vsel %vm2238, %v2269, 0.0
    %v2284 = vadd.f32 %v2282, %v2283
    %v2285 = vsel %vm2238, %v2271, 0.0
    %v2286 = vadd.f32 %v2284, %v2285
    %v2287 = vsel %vm2238, %v2273, 0.0
    %v2288 = vadd.f32 %v2286, %v2287
    %v2289 = vsel %vm2238, %v2275, 0.0
    %v2290 = vadd.f32 %v2288, %v2289
    %v2291 = vsel %vm2238, %v2277, 0.0
    %v2292 = vadd.f32 %v2290, %v2291
    %v2293 = vrcp.pop %v2292
    %v2294 = vmul.f32 %v2263, %v2293
    %v2295 = vmul.f32 %v2265, %v2293
    %v2296 = vmul.f32 %v2267, %v2293
    %v2297 = vmul.f32 %v2269, %v2293
    %v2298 = vmul.f32 %v2271, %v2293
    %v2299 = vmul.f32 %v2273, %v2293
    %v2300 = vmul.f32 %v2275, %v2293
    %v2301 = vmul.f32 %v2277, %v2293
    %2302 = vst.msk [vmem:[%s10] sm:$0xff] %vm2238, %v2294
    %2303 = vst.msk [vmem:[%s10 + $0x8] sm:$0xff] %vm2238, %v2295
    %2304 = vst.msk [vmem:[%s10 + $0x10] sm:$0xff] %vm2238, %v2296
    %2305 = vst.msk [vmem:[%s10 + $0x18] sm:$0xff] %vm2238, %v2297
    %2306 = vst.msk [vmem:[%s10 + $0x20] sm:$0xff] %vm2238, %v2298
    %2307 = vst.msk [vmem:[%s10 + $0x28] sm:$0xff] %vm2238, %v2299
    %2308 = vst.msk [vmem:[%s10 + $0x30] sm:$0xff] %vm2238, %v2300
    %2309 = vst.msk [vmem:[%s10 + $0x38] sm:$0xff] %vm2238, %v2301
    %2311 = vset.pattern.permute.xlu0 0
    %2312 = vperm.xlu0 %2311, %v2294
    %v2313 = vpop.permute.xlu0 %2312
    %2316 = vset.pattern.permute.xlu0 0
    %2317 = vperm.xlu0 %2316, %v2295
    %v2318 = vpop.permute.xlu0 %2317
    %2321 = vset.pattern.permute.xlu0 0
    %2322 = vperm.xlu0 %2321, %v2296
    %v2323 = vpop.permute.xlu0 %2322
    %2326 = vset.pattern.permute.xlu0 0
    %2327 = vperm.xlu0 %2326, %v2297
    %v2328 = vpop.permute.xlu0 %2327
    %2331 = vset.pattern.permute.xlu0 0
    %2332 = vperm.xlu0 %2331, %v2298
    %v2333 = vpop.permute.xlu0 %2332
    %2336 = vset.pattern.permute.xlu0 0
    %2337 = vperm.xlu0 %2336, %v2299
    %v2338 = vpop.permute.xlu0 %2337
    %2341 = vset.pattern.permute.xlu0 0
    %2342 = vperm.xlu0 %2341, %v2300
    %v2343 = vpop.permute.xlu0 %2342
    %2346 = vset.pattern.permute.xlu0 0
    %2347 = vperm.xlu0 %2346, %v2301
    %v2348 = vpop.permute.xlu0 %2347
    %v2350 = vmul.f32 %v1173, %v2313
    %v2351 = vmul.f32 %v1275, %v2318
    %v2352 = vmul.f32 %v1377, %v2323
    %v2353 = vmul.f32 %v1479, %v2328
    %v2354 = vmul.f32 %v1581, %v2333
    %v2355 = vmul.f32 %v1683, %v2338
    %v2356 = vmul.f32 %v1785, %v2343
    %v2357 = vmul.f32 %v1886, %v2348
    %v2358 = vsel %vm119, %v2350, 0.0
    %v2359 = vsel %vm119, %v2351, 0.0
    %v2360 = vadd.f32 %v2358, %v2359
    %v2361 = vsel %vm119, %v2352, 0.0
    %v2362 = vadd.f32 %v2360, %v2361
    %v2363 = vsel %vm119, %v2353, 0.0
    %v2364 = vadd.f32 %v2362, %v2363
    %v2365 = vsel %vm119, %v2354, 0.0
    %v2366 = vadd.f32 %v2364, %v2365
    %v2367 = vsel %vm119, %v2355, 0.0
    %v2368 = vadd.f32 %v2366, %v2367
    %v2369 = vsel %vm119, %v2356, 0.0
    %v2370 = vadd.f32 %v2368, %v2369
    %v2371 = vsel %vm119, %v2357, 0.0
    %v2372 = vadd.f32 %v2370, %v2371
    %2373 = vst.msk [vmem:[#allocation10] sm:$0xff] %vm119, %v2372
    %v2374 = vmul.f32 %v1886, %v2313
    %v2375 = vmul.f32 %v1785, %v2318
    %v2376 = vmul.f32 %v1683, %v2323
    %v2377 = vmul.f32 %v1581, %v2328
    %v2378 = vmul.f32 %v1479, %v2333
    %v2379 = vmul.f32 %v1377, %v2338
    %v2380 = vmul.f32 %v1275, %v2343
    %v2381 = vmul.f32 %v1173, %v2348
    %vm2382 = vcmask 523520
    %v2383 = vsel %vm2382, %v2374, 0.0
    %v2384 = vsel %vm2382, %v2375, 0.0
    %v2385 = vadd.f32 %v2383, %v2384
    %v2386 = vsel %vm2382, %v2376, 0.0
    %v2387 = vadd.f32 %v2385, %v2386
    %v2388 = vsel %vm2382, %v2377, 0.0
    %v2389 = vadd.f32 %v2387, %v2388
    %v2390 = vsel %vm2382, %v2378, 0.0
    %v2391 = vadd.f32 %v2389, %v2390
    %v2392 = vsel %vm2382, %v2379, 0.0
    %v2393 = vadd.f32 %v2391, %v2392
    %v2394 = vsel %vm2382, %v2380, 0.0
    %v2395 = vadd.f32 %v2393, %v2394
    %v2396 = vsel %vm2382, %v2381, 0.0
    %v2397 = vadd.f32 %v2395, %v2396
    %2398 = vst.msk [vmem:[#allocation10] sm:$0xff] %vm2382, %v2397
    // Predicated region
    $region54: #{tpu_custom_call.1} parent=1 // pred_check
      _
    $region55: #{tpu_custom_call.1} parent=1 // pred_check_branch
      %2400 = sbr.rel (0) target = $region57
    $region56: #{tpu_custom_call.1} parent=1 // pred_region
      %s2402 = ssub.s32 128, 128
      %2403 = vsyncadd [#allocation4], %s2402
      %s2405 = sshll.u32 [#allocation10], 4
      %s2406 = int_to_ptr.vmem [resolvable:$true] %s2405
      %2408 = dma.vmem_to_hbm [thread:$0]  %s2406, 128, %s9, [#allocation4]
    $region57: #{tpu_custom_call.1} parent=1 // pred_fallthru
      _
    // Predicated region
    $region58: #{tpu_custom_call.1} parent=1 // pred_check
      _
    $region59: #{tpu_custom_call.1} parent=1 // pred_check_branch
      %2410 = sbr.rel (0) target = $region61
    $region60: #{tpu_custom_call.1} parent=1 // pred_region
      _
    $region61: #{tpu_custom_call.1} parent=1 // pred_fallthru
      _
    // Predicated region
    $region62: #{tpu_custom_call.1} parent=1 // pred_check
      _
    $region63: #{tpu_custom_call.1} parent=1 // pred_check_branch
      %2412 = sbr.rel (0) target = $region65
    $region64: #{tpu_custom_call.1} parent=1 // pred_region
      %2413 = dma.done [#allocation4], 128
    $region65: #{tpu_custom_call.1} parent=1 // pred_fallthru
      _
    // Predicated region
    $region66: #{tpu_custom_call.1} parent=1 // pred_check
      _
    $region67: #{tpu_custom_call.1} parent=1 // pred_check_branch
      %2415 = sbr.rel (0) target = $region69
    $region68: #{tpu_custom_call.1} parent=1 // pred_region
      _
    $region69: #{tpu_custom_call.1} parent=1 // pred_fallthru
      _
    %2416 = vsyncpa [#allocation3], 1
    %2417 = vsyncpa [#allocation6], 1
    %2418 = vsyncpa [#allocation9], 1
    %2419 = vsyncpa [#allocation4], 1

</llo_original>
